<compile_context>
chip_gen: v7x
topology: tpu7x:2x2x1
jax: 0.10.0
libtpu: 0.0.40
codegen_flags: <defaults>
</compile_context>

<pallas_src>
import math
import jax
import jax.numpy as jnp
from jax import lax
from jax.experimental import pallas as pl
from jax.experimental.pallas import tpu as pltpu

NHID = 128
NLAYERS = 28
INPUT_SIZE = 28
NCLASSES = 10


# ----------------------------------------------------------------------------
# Fused kernel: all layers, both directions, decoder.
# ----------------------------------------------------------------------------
def _bilstm_net_kernel(x_ref, wih_ref, whh_ref, b_ref, h0_ref, c0_ref,
                       dec_w_ref, dec_b_ref,
                       hn_ref, cn_ref, logp_ref,
                       act_sc, xproj_sc):
    l = pl.program_id(0)           # layer index
    d = pl.program_id(1)           # direction: 0 = forward, 1 = reverse
    n_layers = pl.num_programs(0)

    TB, H = x_ref.shape            # flattened (T*B, H) activation rows
    B = h0_ref.shape[0]
    T = TB // B

    # --- very first grid step: seed the ping-pong slab with the layer-0 input ---
    @pl.when(jnp.logical_and(l == 0, d == 0))
    def _():
        act_sc[2] = x_ref[...]                          # lane-padded real features
        act_sc[3] = jnp.zeros((TB, H), jnp.float32)     # layer 0 has no "bwd half"

    slot_in = 2 * ((l + 1) % 2)    # slab written by the previous layer
    slot_out = 2 * (l % 2)         # slab this layer writes

    # --- hoisted input projection (+ bias): one big matmul per input half -------
    # Input to layer l is concat([fwd_{l-1}, bwd_{l-1}]) along features; we keep
    # the halves separate and split W_ih rows, avoiding any in-kernel concat.
    xproj_sc[...] = (
        jnp.dot(act_sc[slot_in], wih_ref[0:H, :],
                preferred_element_type=jnp.float32)
        + jnp.dot(act_sc[slot_in + 1], wih_ref[H:2 * H, :],
                  preferred_element_type=jnp.float32)
        + b_ref[...])

    # --- serial recurrence over time (reverse direction via index arithmetic) ---
    def step(t, carry):
        h, c = carry
        t_orig = t + d * (T - 1 - 2 * t)                # fwd: t   rev: T-1-t
        row = pl.multiple_of(t_orig * B, B)
        gates = (xproj_sc[pl.ds(row, B), :]
                 + jnp.dot(h, whh_ref[...], preferred_element_type=jnp.float32))
        i_g = jax.nn.sigmoid(gates[:, 0 * H:1 * H])
        f_g = jax.nn.sigmoid(gates[:, 1 * H:2 * H])
        g_g = jnp.tanh(gates[:, 2 * H:3 * H])
        o_g = jax.nn.sigmoid(gates[:, 3 * H:4 * H])
        c_new = f_g * c + i_g * g_g
        h_new = o_g * jnp.tanh(c_new)
        # store this direction's output at its ORIGINAL time index
        act_sc[slot_out + d, pl.ds(row, B), :] = h_new
        return h_new, c_new

    h_fin, c_fin = lax.fori_loop(0, T, step, (h0_ref[...], c0_ref[...]),
                                 unroll=True)
    # written exactly once per (layer, direction)
    hn_ref[...] = h_fin
    cn_ref[...] = c_fin

    # --- fused decoder + log_softmax on output[-1] at the very last grid step ---
    @pl.when(jnp.logical_and(l == n_layers - 1, d == 1))
    def _():
        last = (T - 1) * B
        hf = act_sc[slot_out, pl.ds(last, B), :]        # fwd hidden at t = T-1
        hb = act_sc[slot_out + 1, pl.ds(last, B), :]    # rev hidden at t = T-1
        logits = (jnp.dot(hf, dec_w_ref[0:H, :], preferred_element_type=jnp.float32)
                  + jnp.dot(hb, dec_w_ref[H:2 * H, :],
                            preferred_element_type=jnp.float32)
                  + dec_b_ref[...])
        m = jnp.max(logits, axis=-1, keepdims=True)
        lse = m + jnp.log(jnp.sum(jnp.exp(logits - m), axis=-1, keepdims=True))
        logp_ref[...] = logits - lse


# ----------------------------------------------------------------------------
# Wrapper: Net.forward(input, hidden) -> (log_probs, (h_n, c_n))
# ----------------------------------------------------------------------------
def net_forward(params, x, hidden):
    h0_all, c0_all = hidden                      # (NLAYERS*2, B, H) each
    T, B, F = x.shape
    H, L, C = NHID, NLAYERS, NCLASSES

    # Lane-pad raw features (F -> H) and flatten (T, B) rows; padded lanes are
    # zero and multiply zeroed weight rows, so they never contribute.
    x_pad = jnp.zeros((T, B, H), jnp.float32).at[:, :, :F].set(x)
    x_pad = x_pad.reshape(T * B, H)
    h0 = h0_all.reshape(L, 2, B, H)
    c0 = c0_all.reshape(L, 2, B, H)

    hn, cn, logp = pl.pallas_call(
        _bilstm_net_kernel,
        out_shape=(jax.ShapeDtypeStruct((L, 2, B, H), jnp.float32),
                   jax.ShapeDtypeStruct((L, 2, B, H), jnp.float32),
                   jax.ShapeDtypeStruct((B, C), jnp.float32)),
        grid_spec=pltpu.PrefetchScalarGridSpec(
            num_scalar_prefetch=0,
            grid=(L, 2),
            in_specs=[
                pl.BlockSpec((T * B, H), lambda l, d: (0, 0)),                        # x
                pl.BlockSpec((None, None, 2 * H, 4 * H), lambda l, d: (l, d, 0, 0)),  # W_ih^T
                pl.BlockSpec((None, None, H, 4 * H), lambda l, d: (l, d, 0, 0)),      # W_hh^T
                pl.BlockSpec((None, None, 1, 4 * H), lambda l, d: (l, d, 0, 0)),      # bias
                pl.BlockSpec((None, None, B, H), lambda l, d: (l, d, 0, 0)),          # h0
                pl.BlockSpec((None, None, B, H), lambda l, d: (l, d, 0, 0)),          # c0
                pl.BlockSpec((2 * H, C), lambda l, d: (0, 0)),                        # dec W^T
                pl.BlockSpec((1, C), lambda l, d: (0, 0)),                            # dec b
            ],
            out_specs=(
                pl.BlockSpec((None, None, B, H), lambda l, d: (l, d, 0, 0)),          # h_n
                pl.BlockSpec((None, None, B, H), lambda l, d: (l, d, 0, 0)),          # c_n
                pl.BlockSpec((B, C), lambda l, d: (0, 0)),                            # log_probs
            ),
            scratch_shapes=[
                pltpu.VMEM((4, T * B, H), jnp.float32),    # activation ping-pong (2 layers x 2 dirs)
                pltpu.VMEM((T * B, 4 * H), jnp.float32),   # hoisted input projection
            ]),
        compiler_params=pltpu.CompilerParams(
            dimension_semantics=("arbitrary", "arbitrary")),
    )(x_pad, params["wih"], params["whh"], params["b"], h0, c0,
      params["dec_w_t"], params["dec_b"])

    return logp, (hn.reshape(L * 2, B, H), cn.reshape(L * 2, B, H))


# ----------------------------------------------------------------------------
# Parameters (mirror Net.init_weights: normal weights, zero biases).
# Stored pre-transposed with PyTorch gate order [i, f, g, o].
# ----------------------------------------------------------------------------
def init_params(key):
    H, L = NHID, NLAYERS
    std_lstm = math.sqrt(2.0 / (INPUT_SIZE + NHID))
    std_dec = math.sqrt(2.0 / (NHID * 2 + NCLASSES))
    k_ih, k_hh, k_dec = jax.random.split(key, 3)

    wih = jax.random.normal(k_ih, (L, 2, 2 * H, 4 * H), jnp.float32) * std_lstm
    # Layer 0's real input is only INPUT_SIZE features (first half, lane-padded);
    # zero the unused rows so the stored tensor is exactly PyTorch's (28 -> 4H) map.
    row_mask0 = (jnp.arange(2 * H) < INPUT_SIZE).astype(jnp.float32)[:, None]
    wih = wih.at[0].multiply(row_mask0)
    whh = jax.random.normal(k_hh, (L, 2, H, 4 * H), jnp.float32) * std_lstm
    b = jnp.zeros((L, 2, 1, 4 * H), jnp.float32)      # bias_ih + bias_hh (both zero)

    dec_w_t = jax.random.normal(k_dec, (2 * H, NCLASSES), jnp.float32) * std_dec
    dec_b = jnp.zeros((1, NCLASSES), jnp.float32)
    return {"wih": wih, "whh": whh, "b": b, "dec_w_t": dec_w_t, "dec_b": dec_b}


if __name__ == "__main__":
    key = jax.random.PRNGKey(0)
    pkey, xkey = jax.random.split(key)
    params = init_params(pkey)

    T, B = 8, 8                                   # small seq / batch for demo
    x = jax.random.normal(xkey, (T, B, INPUT_SIZE), dtype=jnp.float32)
    h0 = jnp.zeros((NLAYERS * 2, B, NHID), jnp.float32)   # init_hidden(bsz)
    c0 = jnp.zeros((NLAYERS * 2, B, NHID), jnp.float32)

    fwd = jax.jit(net_forward)
    log_probs, (h_n, c_n) = fwd(params, x, (h0, c0))
    jax.block_until_ready((log_probs, h_n, c_n))

    # sanity checks: shapes + valid log-probabilities + finite states
    assert log_probs.shape == (B, NCLASSES)
    assert h_n.shape == (NLAYERS * 2, B, NHID)
    assert c_n.shape == (NLAYERS * 2, B, NHID)
    assert bool(jnp.all(jnp.isfinite(log_probs)))
    assert bool(jnp.all(jnp.isfinite(h_n)))
    assert bool(jnp.all(jnp.isfinite(c_n)))
    assert bool(jnp.allclose(jnp.sum(jnp.exp(log_probs), axis=-1), 1.0, atol=1e-4))

    print("KERNEL_OK")
</pallas_src>

<mosaic_0001>
module attributes {stable_mosaic.version = 11 : i64} {
  func.func @_bilstm_net_kernel(%arg0: i32, %arg1: i32, %arg2: memref<64x128xf32, #tpu.memory_space<vmem>>, %arg3: memref<1x1x256x512xf32, #tpu.memory_space<vmem>>, %arg4: memref<1x1x128x512xf32, #tpu.memory_space<vmem>>, %arg5: memref<1x1x1x512xf32, #tpu.memory_space<vmem>>, %arg6: memref<1x1x8x128xf32, #tpu.memory_space<vmem>>, %arg7: memref<1x1x8x128xf32, #tpu.memory_space<vmem>>, %arg8: memref<256x10xf32, #tpu.memory_space<vmem>>, %arg9: memref<1x10xf32, #tpu.memory_space<vmem>>, %arg10: memref<1x1x8x128xf32, #tpu.memory_space<vmem>>, %arg11: memref<1x1x8x128xf32, #tpu.memory_space<vmem>>, %arg12: memref<8x10xf32, #tpu.memory_space<vmem>>, %arg13: memref<4x64x128xf32, #tpu.memory_space<vmem>>, %arg14: memref<64x512xf32, #tpu.memory_space<vmem>>) attributes {dimension_semantics = [#tpu.dimension_semantics<arbitrary>, #tpu.dimension_semantics<arbitrary>], iteration_bounds = array<i64: 28, 2>, scalar_prefetch = 0 : i64, scratch_operands = 2 : i64, tpu.core_type = #tpu.core_type<tc>, window_params = [{pipeline_mode = #tpu.pipeline_mode<synchronous>, transform_indices = @transform_0, window_bounds = array<i64: 64, 128>}, {transform_indices = @transform_1, window_bounds = array<i64: 1, 1, 256, 512>}, {transform_indices = @transform_2, window_bounds = array<i64: 1, 1, 128, 512>}, {transform_indices = @transform_3, window_bounds = array<i64: 1, 1, 1, 512>}, {transform_indices = @transform_4, window_bounds = array<i64: 1, 1, 8, 128>}, {transform_indices = @transform_5, window_bounds = array<i64: 1, 1, 8, 128>}, {pipeline_mode = #tpu.pipeline_mode<synchronous>, transform_indices = @transform_6, window_bounds = array<i64: 256, 10>}, {pipeline_mode = #tpu.pipeline_mode<synchronous>, transform_indices = @transform_7, window_bounds = array<i64: 1, 10>}, {transform_indices = @transform_8, window_bounds = array<i64: 1, 1, 8, 128>}, {transform_indices = @transform_9, window_bounds = array<i64: 1, 1, 8, 128>}, {pipeline_mode = #tpu.pipeline_mode<synchronous>, transform_indices = @transform_10, window_bounds = array<i64: 8, 10>}]} {
    %c0_i32 = arith.constant 0 : i32
    %0 = arith.cmpi eq, %arg0, %c0_i32 : i32
    %c0_i32_0 = arith.constant 0 : i32
    %1 = arith.cmpi eq, %arg1, %c0_i32_0 : i32
    %2 = arith.andi %0, %1 : i1
    %3 = arith.extui %2 : i1 to i32
    %c0_i32_1 = arith.constant 0 : i32
    %4 = arith.cmpi ne, %3, %c0_i32_1 : i32
    scf.if %4 {
      %c0_158 = arith.constant 0 : index
      %c0_159 = arith.constant 0 : index
      %406 = vector.load %arg2[%c0_158, %c0_159] : memref<64x128xf32, #tpu.memory_space<vmem>>, vector<64x128xf32>
      %c2 = arith.constant 2 : index
      %c0_160 = arith.constant 0 : index
      %c0_161 = arith.constant 0 : index
      %407 = vector.load %arg13[%c2, %c0_160, %c0_161] : memref<4x64x128xf32, #tpu.memory_space<vmem>>, vector<1x64x128xf32>
      %408 = vector.shape_cast %407 : vector<1x64x128xf32> to vector<64x128xf32>
      %409 = vector.shape_cast %406 : vector<64x128xf32> to vector<1x64x128xf32>
      tpu.vector_store %arg13[%c2, %c0_160, %c0_161], %409 {strides = array<i32>} : memref<4x64x128xf32, #tpu.memory_space<vmem>>, vector<1x64x128xf32>,
      %cst_162 = arith.constant 0.000000e+00 : f32
      %410 = vector.broadcast %cst_162 : f32 to vector<64x128xf32>
      %c3 = arith.constant 3 : index
      %c0_163 = arith.constant 0 : index
      %c0_164 = arith.constant 0 : index
      %411 = vector.load %arg13[%c3, %c0_163, %c0_164] : memref<4x64x128xf32, #tpu.memory_space<vmem>>, vector<1x64x128xf32>
      %412 = vector.shape_cast %411 : vector<1x64x128xf32> to vector<64x128xf32>
      %413 = vector.shape_cast %410 : vector<64x128xf32> to vector<1x64x128xf32>
      tpu.vector_store %arg13[%c3, %c0_163, %c0_164], %413 {strides = array<i32>} : memref<4x64x128xf32, #tpu.memory_space<vmem>>, vector<1x64x128xf32>,
    } else {
    }
    %c1_i32 = arith.constant 1 : i32
    %5 = arith.addi %arg0, %c1_i32 : i32
    %c2_i32 = arith.constant 2 : i32
    %c0_i32_2 = arith.constant 0 : i32
    %6 = arith.cmpi eq, %c2_i32, %c0_i32_2 : i32
    %c1_i32_3 = arith.constant 1 : i32
    %7 = arith.select %6, %c1_i32_3, %c2_i32 : i32
    %8 = arith.remsi %5, %7 : i32
    %c0_i32_4 = arith.constant 0 : i32
    %9 = arith.cmpi ne, %8, %c0_i32_4 : i32
    %c0_i32_5 = arith.constant 0 : i32
    %10 = arith.cmpi slt, %8, %c0_i32_5 : i32
    %c0_i32_6 = arith.constant 0 : i32
    %11 = arith.cmpi slt, %7, %c0_i32_6 : i32
    %12 = arith.xori %10, %11 : i1
    %13 = arith.andi %12, %9 : i1
    %14 = arith.addi %8, %7 : i32
    %15 = arith.select %13, %14, %8 : i32
    %c2_i32_7 = arith.constant 2 : i32
    %16 = arith.muli %c2_i32_7, %15 : i32
    %c2_i32_8 = arith.constant 2 : i32
    %c0_i32_9 = arith.constant 0 : i32
    %17 = arith.cmpi eq, %c2_i32_8, %c0_i32_9 : i32
    %c1_i32_10 = arith.constant 1 : i32
    %18 = arith.select %17, %c1_i32_10, %c2_i32_8 : i32
    %19 = arith.remsi %arg0, %18 : i32
    %c0_i32_11 = arith.constant 0 : i32
    %20 = arith.cmpi ne, %19, %c0_i32_11 : i32
    %c0_i32_12 = arith.constant 0 : i32
    %21 = arith.cmpi slt, %19, %c0_i32_12 : i32
    %c0_i32_13 = arith.constant 0 : i32
    %22 = arith.cmpi slt, %18, %c0_i32_13 : i32
    %23 = arith.xori %21, %22 : i1
    %24 = arith.andi %23, %20 : i1
    %25 = arith.addi %19, %18 : i32
    %26 = arith.select %24, %25, %19 : i32
    %c2_i32_14 = arith.constant 2 : i32
    %27 = arith.muli %c2_i32_14, %26 : i32
    %28 = arith.index_cast %16 : i32 to index
    %c0 = arith.constant 0 : index
    %c0_15 = arith.constant 0 : index
    %29 = vector.load %arg13[%28, %c0, %c0_15] : memref<4x64x128xf32, #tpu.memory_space<vmem>>, vector<1x64x128xf32>
    %30 = vector.shape_cast %29 : vector<1x64x128xf32> to vector<64x128xf32>
    %c0_16 = arith.constant 0 : index
    %c0_17 = arith.constant 0 : index
    %c0_18 = arith.constant 0 : index
    %c0_19 = arith.constant 0 : index
    %31 = vector.load %arg3[%c0_16, %c0_17, %c0_18, %c0_19] : memref<1x1x256x512xf32, #tpu.memory_space<vmem>>, vector<1x1x128x512xf32>
    %32 = vector.shape_cast %31 : vector<1x1x128x512xf32> to vector<128x512xf32>
    %cst = arith.constant dense<0.000000e+00> : vector<64x512xf32>
    %33 = tpu.matmul %30, %32, %cst {dimension_numbers = #tpu.dot_dimension_numbers<[1], [0], [0], [1], [0, 0, 1, 1], [], []>} : vector<64x128xf32>, vector<128x512xf32>, vector<64x512xf32> -> vector<64x512xf32>
    %c1_i32_20 = arith.constant 1 : i32
    %34 = arith.addi %16, %c1_i32_20 : i32
    %35 = arith.index_cast %34 : i32 to index
    %c0_21 = arith.constant 0 : index
    %c0_22 = arith.constant 0 : index
    %36 = vector.load %arg13[%35, %c0_21, %c0_22] : memref<4x64x128xf32, #tpu.memory_space<vmem>>, vector<1x64x128xf32>
    %37 = vector.shape_cast %36 : vector<1x64x128xf32> to vector<64x128xf32>
    %c0_23 = arith.constant 0 : index
    %c0_24 = arith.constant 0 : index
    %c128 = arith.constant 128 : index
    %c0_25 = arith.constant 0 : index
    %38 = vector.load %arg3[%c0_23, %c0_24, %c128, %c0_25] : memref<1x1x256x512xf32, #tpu.memory_space<vmem>>, vector<1x1x128x512xf32>
    %39 = vector.shape_cast %38 : vector<1x1x128x512xf32> to vector<128x512xf32>
    %cst_26 = arith.constant dense<0.000000e+00> : vector<64x512xf32>
    %40 = tpu.matmul %37, %39, %cst_26 {dimension_numbers = #tpu.dot_dimension_numbers<[1], [0], [0], [1], [0, 0, 1, 1], [], []>} : vector<64x128xf32>, vector<128x512xf32>, vector<64x512xf32> -> vector<64x512xf32>
    %41 = arith.addf %33, %40 : vector<64x512xf32>
    %c0_27 = arith.constant 0 : index
    %c0_28 = arith.constant 0 : index
    %c0_29 = arith.constant 0 : index
    %c0_30 = arith.constant 0 : index
    %42 = vector.load %arg5[%c0_27, %c0_28, %c0_29, %c0_30] : memref<1x1x1x512xf32, #tpu.memory_space<vmem>>, vector<1x1x1x512xf32>
    %43 = vector.shape_cast %42 : vector<1x1x1x512xf32> to vector<1x512xf32>
    %44 = vector.broadcast %43 : vector<1x512xf32> to vector<64x512xf32>
    %45 = arith.addf %41, %44 : vector<64x512xf32>
    %c0_31 = arith.constant 0 : index
    %c0_32 = arith.constant 0 : index
    %46 = vector.load %arg14[%c0_31, %c0_32] : memref<64x512xf32, #tpu.memory_space<vmem>>, vector<64x512xf32>
    tpu.vector_store %arg14[%c0_31, %c0_32], %45 {strides = array<i32>} : memref<64x512xf32, #tpu.memory_space<vmem>>, vector<64x512xf32>,
    %c0_33 = arith.constant 0 : index
    %c0_34 = arith.constant 0 : index
    %c0_35 = arith.constant 0 : index
    %c0_36 = arith.constant 0 : index
    %47 = vector.load %arg6[%c0_33, %c0_34, %c0_35, %c0_36] : memref<1x1x8x128xf32, #tpu.memory_space<vmem>>, vector<1x1x8x128xf32>
    %48 = vector.shape_cast %47 : vector<1x1x8x128xf32> to vector<8x128xf32>
    %c0_37 = arith.constant 0 : index
    %c0_38 = arith.constant 0 : index
    %c0_39 = arith.constant 0 : index
    %c0_40 = arith.constant 0 : index
    %49 = vector.load %arg7[%c0_37, %c0_38, %c0_39, %c0_40] : memref<1x1x8x128xf32, #tpu.memory_space<vmem>>, vector<1x1x8x128xf32>
    %50 = vector.shape_cast %49 : vector<1x1x8x128xf32> to vector<8x128xf32>
    %c0_i32_41 = arith.constant 0 : i32
    %c2_i32_42 = arith.constant 2 : i32
    %51 = arith.muli %c2_i32_42, %c0_i32_41 : i32
    %c7_i32 = arith.constant 7 : i32
    %52 = arith.subi %c7_i32, %51 : i32
    %53 = arith.muli %arg1, %52 : i32
    %54 = arith.addi %c0_i32_41, %53 : i32
    %c8_i32 = arith.constant 8 : i32
    %55 = arith.muli %54, %c8_i32 : i32
    %56 = tpu.assume_multiple %55, 8 : i32
    %57 = arith.index_cast %56 : i32 to index
    %c0_43 = arith.constant 0 : index
    %58 = vector.load %arg14[%57, %c0_43] : memref<64x512xf32, #tpu.memory_space<vmem>>, vector<8x512xf32>
    %c0_44 = arith.constant 0 : index
    %c0_45 = arith.constant 0 : index
    %c0_46 = arith.constant 0 : index
    %c0_47 = arith.constant 0 : index
    %59 = vector.load %arg4[%c0_44, %c0_45, %c0_46, %c0_47] : memref<1x1x128x512xf32, #tpu.memory_space<vmem>>, vector<1x1x128x512xf32>
    %60 = vector.shape_cast %59 : vector<1x1x128x512xf32> to vector<128x512xf32>
    %cst_48 = arith.constant dense<0.000000e+00> : vector<8x512xf32>
    %61 = tpu.matmul %48, %60, %cst_48 {dimension_numbers = #tpu.dot_dimension_numbers<[1], [0], [0], [1], [0, 0, 1, 1], [], []>} : vector<8x128xf32>, vector<128x512xf32>, vector<8x512xf32> -> vector<8x512xf32>
    %62 = arith.addf %58, %61 : vector<8x512xf32>
    %63 = vector.extract_strided_slice %62 {offsets = [0, 0], sizes = [8, 128], strides = [1, 1]} : vector<8x512xf32> to vector<8x128xf32>
    %64 = arith.negf %63 : vector<8x128xf32>
    %65 = math.exp %64 : vector<8x128xf32>
    %cst_49 = arith.constant 1.000000e+00 : f32
    %66 = vector.broadcast %cst_49 : f32 to vector<8x128xf32>
    %67 = arith.addf %66, %65 : vector<8x128xf32>
    %68 = arith.divf %66, %67 : vector<8x128xf32>
    %69 = vector.extract_strided_slice %62 {offsets = [0, 128], sizes = [8, 128], strides = [1, 1]} : vector<8x512xf32> to vector<8x128xf32>
    %70 = arith.negf %69 : vector<8x128xf32>
    %71 = math.exp %70 : vector<8x128xf32>
    %cst_50 = arith.constant 1.000000e+00 : f32
    %72 = vector.broadcast %cst_50 : f32 to vector<8x128xf32>
    %73 = arith.addf %72, %71 : vector<8x128xf32>
    %74 = arith.divf %72, %73 : vector<8x128xf32>
    %75 = vector.extract_strided_slice %62 {offsets = [0, 256], sizes = [8, 128], strides = [1, 1]} : vector<8x512xf32> to vector<8x128xf32>
    %76 = math.tanh %75 : vector<8x128xf32>
    %77 = vector.extract_strided_slice %62 {offsets = [0, 384], sizes = [8, 128], strides = [1, 1]} : vector<8x512xf32> to vector<8x128xf32>
    %78 = arith.negf %77 : vector<8x128xf32>
    %79 = math.exp %78 : vector<8x128xf32>
    %cst_51 = arith.constant 1.000000e+00 : f32
    %80 = vector.broadcast %cst_51 : f32 to vector<8x128xf32>
    %81 = arith.addf %80, %79 : vector<8x128xf32>
    %82 = arith.divf %80, %81 : vector<8x128xf32>
    %83 = arith.mulf %74, %50 : vector<8x128xf32>
    %84 = arith.mulf %68, %76 : vector<8x128xf32>
    %85 = arith.addf %83, %84 : vector<8x128xf32>
    %86 = math.tanh %85 : vector<8x128xf32>
    %87 = arith.mulf %82, %86 : vector<8x128xf32>
    %88 = arith.addi %27, %arg1 : i32
    %89 = arith.index_cast %88 : i32 to index
    %90 = arith.index_cast %56 : i32 to index
    %c0_52 = arith.constant 0 : index
    %91 = vector.load %arg13[%89, %90, %c0_52] : memref<4x64x128xf32, #tpu.memory_space<vmem>>, vector<1x8x128xf32>
    %92 = vector.shape_cast %91 : vector<1x8x128xf32> to vector<8x128xf32>
    %93 = vector.shape_cast %87 : vector<8x128xf32> to vector<1x8x128xf32>
    tpu.vector_store %arg13[%89, %90, %c0_52], %93 {strides = array<i32>} : memref<4x64x128xf32, #tpu.memory_space<vmem>>, vector<1x8x128xf32>,
    %c1_i32_53 = arith.constant 1 : i32
    %c2_i32_54 = arith.constant 2 : i32
    %94 = arith.muli %c2_i32_54, %c1_i32_53 : i32
    %c7_i32_55 = arith.constant 7 : i32
    %95 = arith.subi %c7_i32_55, %94 : i32
    %96 = arith.muli %arg1, %95 : i32
    %97 = arith.addi %c1_i32_53, %96 : i32
    %c8_i32_56 = arith.constant 8 : i32
    %98 = arith.muli %97, %c8_i32_56 : i32
    %99 = tpu.assume_multiple %98, 8 : i32
    %100 = arith.index_cast %99 : i32 to index
    %c0_57 = arith.constant 0 : index
    %101 = vector.load %arg14[%100, %c0_57] : memref<64x512xf32, #tpu.memory_space<vmem>>, vector<8x512xf32>
    %c0_58 = arith.constant 0 : index
    %c0_59 = arith.constant 0 : index
    %c0_60 = arith.constant 0 : index
    %c0_61 = arith.constant 0 : index
    %102 = vector.load %arg4[%c0_58, %c0_59, %c0_60, %c0_61] : memref<1x1x128x512xf32, #tpu.memory_space<vmem>>, vector<1x1x128x512xf32>
    %103 = vector.shape_cast %102 : vector<1x1x128x512xf32> to vector<128x512xf32>
    %cst_62 = arith.constant dense<0.000000e+00> : vector<8x512xf32>
    %104 = tpu.matmul %87, %103, %cst_62 {dimension_numbers = #tpu.dot_dimension_numbers<[1], [0], [0], [1], [0, 0, 1, 1], [], []>} : vector<8x128xf32>, vector<128x512xf32>, vector<8x512xf32> -> vector<8x512xf32>
    %105 = arith.addf %101, %104 : vector<8x512xf32>
    %106 = vector.extract_strided_slice %105 {offsets = [0, 0], sizes = [8, 128], strides = [1, 1]} : vector<8x512xf32> to vector<8x128xf32>
    %107 = arith.negf %106 : vector<8x128xf32>
    %108 = math.exp %107 : vector<8x128xf32>
    %cst_63 = arith.constant 1.000000e+00 : f32
    %109 = vector.broadcast %cst_63 : f32 to vector<8x128xf32>
    %110 = arith.addf %109, %108 : vector<8x128xf32>
    %111 = arith.divf %109, %110 : vector<8x128xf32>
    %112 = vector.extract_strided_slice %105 {offsets = [0, 128], sizes = [8, 128], strides = [1, 1]} : vector<8x512xf32> to vector<8x128xf32>
    %113 = arith.negf %112 : vector<8x128xf32>
    %114 = math.exp %113 : vector<8x128xf32>
    %cst_64 = arith.constant 1.000000e+00 : f32
    %115 = vector.broadcast %cst_64 : f32 to vector<8x128xf32>
    %116 = arith.addf %115, %114 : vector<8x128xf32>
    %117 = arith.divf %115, %116 : vector<8x128xf32>
    %118 = vector.extract_strided_slice %105 {offsets = [0, 256], sizes = [8, 128], strides = [1, 1]} : vector<8x512xf32> to vector<8x128xf32>
    %119 = math.tanh %118 : vector<8x128xf32>
    %120 = vector.extract_strided_slice %105 {offsets = [0, 384], sizes = [8, 128], strides = [1, 1]} : vector<8x512xf32> to vector<8x128xf32>
    %121 = arith.negf %120 : vector<8x128xf32>
    %122 = math.exp %121 : vector<8x128xf32>
    %cst_65 = arith.constant 1.000000e+00 : f32
    %123 = vector.broadcast %cst_65 : f32 to vector<8x128xf32>
    %124 = arith.addf %123, %122 : vector<8x128xf32>
    %125 = arith.divf %123, %124 : vector<8x128xf32>
    %126 = arith.mulf %117, %85 : vector<8x128xf32>
    %127 = arith.mulf %111, %119 : vector<8x128xf32>
    %128 = arith.addf %126, %127 : vector<8x128xf32>
    %129 = math.tanh %128 : vector<8x128xf32>
    %130 = arith.mulf %125, %129 : vector<8x128xf32>
    %131 = arith.addi %27, %arg1 : i32
    %132 = arith.index_cast %131 : i32 to index
    %133 = arith.index_cast %99 : i32 to index
    %c0_66 = arith.constant 0 : index
    %134 = vector.load %arg13[%132, %133, %c0_66] : memref<4x64x128xf32, #tpu.memory_space<vmem>>, vector<1x8x128xf32>
    %135 = vector.shape_cast %134 : vector<1x8x128xf32> to vector<8x128xf32>
    %136 = vector.shape_cast %130 : vector<8x128xf32> to vector<1x8x128xf32>
    tpu.vector_store %arg13[%132, %133, %c0_66], %136 {strides = array<i32>} : memref<4x64x128xf32, #tpu.memory_space<vmem>>, vector<1x8x128xf32>,
    %c2_i32_67 = arith.constant 2 : i32
    %c2_i32_68 = arith.constant 2 : i32
    %137 = arith.muli %c2_i32_68, %c2_i32_67 : i32
    %c7_i32_69 = arith.constant 7 : i32
    %138 = arith.subi %c7_i32_69, %137 : i32
    %139 = arith.muli %arg1, %138 : i32
    %140 = arith.addi %c2_i32_67, %139 : i32
    %c8_i32_70 = arith.constant 8 : i32
    %141 = arith.muli %140, %c8_i32_70 : i32
    %142 = tpu.assume_multiple %141, 8 : i32
    %143 = arith.index_cast %142 : i32 to index
    %c0_71 = arith.constant 0 : index
    %144 = vector.load %arg14[%143, %c0_71] : memref<64x512xf32, #tpu.memory_space<vmem>>, vector<8x512xf32>
    %c0_72 = arith.constant 0 : index
    %c0_73 = arith.constant 0 : index
    %c0_74 = arith.constant 0 : index
    %c0_75 = arith.constant 0 : index
    %145 = vector.load %arg4[%c0_72, %c0_73, %c0_74, %c0_75] : memref<1x1x128x512xf32, #tpu.memory_space<vmem>>, vector<1x1x128x512xf32>
    %146 = vector.shape_cast %145 : vector<1x1x128x512xf32> to vector<128x512xf32>
    %cst_76 = arith.constant dense<0.000000e+00> : vector<8x512xf32>
    %147 = tpu.matmul %130, %146, %cst_76 {dimension_numbers = #tpu.dot_dimension_numbers<[1], [0], [0], [1], [0, 0, 1, 1], [], []>} : vector<8x128xf32>, vector<128x512xf32>, vector<8x512xf32> -> vector<8x512xf32>
    %148 = arith.addf %144, %147 : vector<8x512xf32>
    %149 = vector.extract_strided_slice %148 {offsets = [0, 0], sizes = [8, 128], strides = [1, 1]} : vector<8x512xf32> to vector<8x128xf32>
    %150 = arith.negf %149 : vector<8x128xf32>
    %151 = math.exp %150 : vector<8x128xf32>
    %cst_77 = arith.constant 1.000000e+00 : f32
    %152 = vector.broadcast %cst_77 : f32 to vector<8x128xf32>
    %153 = arith.addf %152, %151 : vector<8x128xf32>
    %154 = arith.divf %152, %153 : vector<8x128xf32>
    %155 = vector.extract_strided_slice %148 {offsets = [0, 128], sizes = [8, 128], strides = [1, 1]} : vector<8x512xf32> to vector<8x128xf32>
    %156 = arith.negf %155 : vector<8x128xf32>
    %157 = math.exp %156 : vector<8x128xf32>
    %cst_78 = arith.constant 1.000000e+00 : f32
    %158 = vector.broadcast %cst_78 : f32 to vector<8x128xf32>
    %159 = arith.addf %158, %157 : vector<8x128xf32>
    %160 = arith.divf %158, %159 : vector<8x128xf32>
    %161 = vector.extract_strided_slice %148 {offsets = [0, 256], sizes = [8, 128], strides = [1, 1]} : vector<8x512xf32> to vector<8x128xf32>
    %162 = math.tanh %161 : vector<8x128xf32>
    %163 = vector.extract_strided_slice %148 {offsets = [0, 384], sizes = [8, 128], strides = [1, 1]} : vector<8x512xf32> to vector<8x128xf32>
    %164 = arith.negf %163 : vector<8x128xf32>
    %165 = math.exp %164 : vector<8x128xf32>
    %cst_79 = arith.constant 1.000000e+00 : f32
    %166 = vector.broadcast %cst_79 : f32 to vector<8x128xf32>
    %167 = arith.addf %166, %165 : vector<8x128xf32>
    %168 = arith.divf %166, %167 : vector<8x128xf32>
    %169 = arith.mulf %160, %128 : vector<8x128xf32>
    %170 = arith.mulf %154, %162 : vector<8x128xf32>
    %171 = arith.addf %169, %170 : vector<8x128xf32>
    %172 = math.tanh %171 : vector<8x128xf32>
    %173 = arith.mulf %168, %172 : vector<8x128xf32>
    %174 = arith.addi %27, %arg1 : i32
    %175 = arith.index_cast %174 : i32 to index
    %176 = arith.index_cast %142 : i32 to index
    %c0_80 = arith.constant 0 : index
    %177 = vector.load %arg13[%175, %176, %c0_80] : memref<4x64x128xf32, #tpu.memory_space<vmem>>, vector<1x8x128xf32>
    %178 = vector.shape_cast %177 : vector<1x8x128xf32> to vector<8x128xf32>
    %179 = vector.shape_cast %173 : vector<8x128xf32> to vector<1x8x128xf32>
    tpu.vector_store %arg13[%175, %176, %c0_80], %179 {strides = array<i32>} : memref<4x64x128xf32, #tpu.memory_space<vmem>>, vector<1x8x128xf32>,
    %c3_i32 = arith.constant 3 : i32
    %c2_i32_81 = arith.constant 2 : i32
    %180 = arith.muli %c2_i32_81, %c3_i32 : i32
    %c7_i32_82 = arith.constant 7 : i32
    %181 = arith.subi %c7_i32_82, %180 : i32
    %182 = arith.muli %arg1, %181 : i32
    %183 = arith.addi %c3_i32, %182 : i32
    %c8_i32_83 = arith.constant 8 : i32
    %184 = arith.muli %183, %c8_i32_83 : i32
    %185 = tpu.assume_multiple %184, 8 : i32
    %186 = arith.index_cast %185 : i32 to index
    %c0_84 = arith.constant 0 : index
    %187 = vector.load %arg14[%186, %c0_84] : memref<64x512xf32, #tpu.memory_space<vmem>>, vector<8x512xf32>
    %c0_85 = arith.constant 0 : index
    %c0_86 = arith.constant 0 : index
    %c0_87 = arith.constant 0 : index
    %c0_88 = arith.constant 0 : index
    %188 = vector.load %arg4[%c0_85, %c0_86, %c0_87, %c0_88] : memref<1x1x128x512xf32, #tpu.memory_space<vmem>>, vector<1x1x128x512xf32>
    %189 = vector.shape_cast %188 : vector<1x1x128x512xf32> to vector<128x512xf32>
    %cst_89 = arith.constant dense<0.000000e+00> : vector<8x512xf32>
    %190 = tpu.matmul %173, %189, %cst_89 {dimension_numbers = #tpu.dot_dimension_numbers<[1], [0], [0], [1], [0, 0, 1, 1], [], []>} : vector<8x128xf32>, vector<128x512xf32>, vector<8x512xf32> -> vector<8x512xf32>
    %191 = arith.addf %187, %190 : vector<8x512xf32>
    %192 = vector.extract_strided_slice %191 {offsets = [0, 0], sizes = [8, 128], strides = [1, 1]} : vector<8x512xf32> to vector<8x128xf32>
    %193 = arith.negf %192 : vector<8x128xf32>
    %194 = math.exp %193 : vector<8x128xf32>
    %cst_90 = arith.constant 1.000000e+00 : f32
    %195 = vector.broadcast %cst_90 : f32 to vector<8x128xf32>
    %196 = arith.addf %195, %194 : vector<8x128xf32>
    %197 = arith.divf %195, %196 : vector<8x128xf32>
    %198 = vector.extract_strided_slice %191 {offsets = [0, 128], sizes = [8, 128], strides = [1, 1]} : vector<8x512xf32> to vector<8x128xf32>
    %199 = arith.negf %198 : vector<8x128xf32>
    %200 = math.exp %199 : vector<8x128xf32>
    %cst_91 = arith.constant 1.000000e+00 : f32
    %201 = vector.broadcast %cst_91 : f32 to vector<8x128xf32>
    %202 = arith.addf %201, %200 : vector<8x128xf32>
    %203 = arith.divf %201, %202 : vector<8x128xf32>
    %204 = vector.extract_strided_slice %191 {offsets = [0, 256], sizes = [8, 128], strides = [1, 1]} : vector<8x512xf32> to vector<8x128xf32>
    %205 = math.tanh %204 : vector<8x128xf32>
    %206 = vector.extract_strided_slice %191 {offsets = [0, 384], sizes = [8, 128], strides = [1, 1]} : vector<8x512xf32> to vector<8x128xf32>
    %207 = arith.negf %206 : vector<8x128xf32>
    %208 = math.exp %207 : vector<8x128xf32>
    %cst_92 = arith.constant 1.000000e+00 : f32
    %209 = vector.broadcast %cst_92 : f32 to vector<8x128xf32>
    %210 = arith.addf %209, %208 : vector<8x128xf32>
    %211 = arith.divf %209, %210 : vector<8x128xf32>
    %212 = arith.mulf %203, %171 : vector<8x128xf32>
    %213 = arith.mulf %197, %205 : vector<8x128xf32>
    %214 = arith.addf %212, %213 : vector<8x128xf32>
    %215 = math.tanh %214 : vector<8x128xf32>
    %216 = arith.mulf %211, %215 : vector<8x128xf32>
    %217 = arith.addi %27, %arg1 : i32
    %218 = arith.index_cast %217 : i32 to index
    %219 = arith.index_cast %185 : i32 to index
    %c0_93 = arith.constant 0 : index
    %220 = vector.load %arg13[%218, %219, %c0_93] : memref<4x64x128xf32, #tpu.memory_space<vmem>>, vector<1x8x128xf32>
    %221 = vector.shape_cast %220 : vector<1x8x128xf32> to vector<8x128xf32>
    %222 = vector.shape_cast %216 : vector<8x128xf32> to vector<1x8x128xf32>
    tpu.vector_store %arg13[%218, %219, %c0_93], %222 {strides = array<i32>} : memref<4x64x128xf32, #tpu.memory_space<vmem>>, vector<1x8x128xf32>,
    %c4_i32 = arith.constant 4 : i32
    %c2_i32_94 = arith.constant 2 : i32
    %223 = arith.muli %c2_i32_94, %c4_i32 : i32
    %c7_i32_95 = arith.constant 7 : i32
    %224 = arith.subi %c7_i32_95, %223 : i32
    %225 = arith.muli %arg1, %224 : i32
    %226 = arith.addi %c4_i32, %225 : i32
    %c8_i32_96 = arith.constant 8 : i32
    %227 = arith.muli %226, %c8_i32_96 : i32
    %228 = tpu.assume_multiple %227, 8 : i32
    %229 = arith.index_cast %228 : i32 to index
    %c0_97 = arith.constant 0 : index
    %230 = vector.load %arg14[%229, %c0_97] : memref<64x512xf32, #tpu.memory_space<vmem>>, vector<8x512xf32>
    %c0_98 = arith.constant 0 : index
    %c0_99 = arith.constant 0 : index
    %c0_100 = arith.constant 0 : index
    %c0_101 = arith.constant 0 : index
    %231 = vector.load %arg4[%c0_98, %c0_99, %c0_100, %c0_101] : memref<1x1x128x512xf32, #tpu.memory_space<vmem>>, vector<1x1x128x512xf32>
    %232 = vector.shape_cast %231 : vector<1x1x128x512xf32> to vector<128x512xf32>
    %cst_102 = arith.constant dense<0.000000e+00> : vector<8x512xf32>
    %233 = tpu.matmul %216, %232, %cst_102 {dimension_numbers = #tpu.dot_dimension_numbers<[1], [0], [0], [1], [0, 0, 1, 1], [], []>} : vector<8x128xf32>, vector<128x512xf32>, vector<8x512xf32> -> vector<8x512xf32>
    %234 = arith.addf %230, %233 : vector<8x512xf32>
    %235 = vector.extract_strided_slice %234 {offsets = [0, 0], sizes = [8, 128], strides = [1, 1]} : vector<8x512xf32> to vector<8x128xf32>
    %236 = arith.negf %235 : vector<8x128xf32>
    %237 = math.exp %236 : vector<8x128xf32>
    %cst_103 = arith.constant 1.000000e+00 : f32
    %238 = vector.broadcast %cst_103 : f32 to vector<8x128xf32>
    %239 = arith.addf %238, %237 : vector<8x128xf32>
    %240 = arith.divf %238, %239 : vector<8x128xf32>
    %241 = vector.extract_strided_slice %234 {offsets = [0, 128], sizes = [8, 128], strides = [1, 1]} : vector<8x512xf32> to vector<8x128xf32>
    %242 = arith.negf %241 : vector<8x128xf32>
    %243 = math.exp %242 : vector<8x128xf32>
    %cst_104 = arith.constant 1.000000e+00 : f32
    %244 = vector.broadcast %cst_104 : f32 to vector<8x128xf32>
    %245 = arith.addf %244, %243 : vector<8x128xf32>
    %246 = arith.divf %244, %245 : vector<8x128xf32>
    %247 = vector.extract_strided_slice %234 {offsets = [0, 256], sizes = [8, 128], strides = [1, 1]} : vector<8x512xf32> to vector<8x128xf32>
    %248 = math.tanh %247 : vector<8x128xf32>
    %249 = vector.extract_strided_slice %234 {offsets = [0, 384], sizes = [8, 128], strides = [1, 1]} : vector<8x512xf32> to vector<8x128xf32>
    %250 = arith.negf %249 : vector<8x128xf32>
    %251 = math.exp %250 : vector<8x128xf32>
    %cst_105 = arith.constant 1.000000e+00 : f32
    %252 = vector.broadcast %cst_105 : f32 to vector<8x128xf32>
    %253 = arith.addf %252, %251 : vector<8x128xf32>
    %254 = arith.divf %252, %253 : vector<8x128xf32>
    %255 = arith.mulf %246, %214 : vector<8x128xf32>
    %256 = arith.mulf %240, %248 : vector<8x128xf32>
    %257 = arith.addf %255, %256 : vector<8x128xf32>
    %258 = math.tanh %257 : vector<8x128xf32>
    %259 = arith.mulf %254, %258 : vector<8x128xf32>
    %260 = arith.addi %27, %arg1 : i32
    %261 = arith.index_cast %260 : i32 to index
    %262 = arith.index_cast %228 : i32 to index
    %c0_106 = arith.constant 0 : index
    %263 = vector.load %arg13[%261, %262, %c0_106] : memref<4x64x128xf32, #tpu.memory_space<vmem>>, vector<1x8x128xf32>
    %264 = vector.shape_cast %263 : vector<1x8x128xf32> to vector<8x128xf32>
    %265 = vector.shape_cast %259 : vector<8x128xf32> to vector<1x8x128xf32>
    tpu.vector_store %arg13[%261, %262, %c0_106], %265 {strides = array<i32>} : memref<4x64x128xf32, #tpu.memory_space<vmem>>, vector<1x8x128xf32>,
    %c5_i32 = arith.constant 5 : i32
    %c2_i32_107 = arith.constant 2 : i32
    %266 = arith.muli %c2_i32_107, %c5_i32 : i32
    %c7_i32_108 = arith.constant 7 : i32
    %267 = arith.subi %c7_i32_108, %266 : i32
    %268 = arith.muli %arg1, %267 : i32
    %269 = arith.addi %c5_i32, %268 : i32
    %c8_i32_109 = arith.constant 8 : i32
    %270 = arith.muli %269, %c8_i32_109 : i32
    %271 = tpu.assume_multiple %270, 8 : i32
    %272 = arith.index_cast %271 : i32 to index
    %c0_110 = arith.constant 0 : index
    %273 = vector.load %arg14[%272, %c0_110] : memref<64x512xf32, #tpu.memory_space<vmem>>, vector<8x512xf32>
    %c0_111 = arith.constant 0 : index
    %c0_112 = arith.constant 0 : index
    %c0_113 = arith.constant 0 : index
    %c0_114 = arith.constant 0 : index
    %274 = vector.load %arg4[%c0_111, %c0_112, %c0_113, %c0_114] : memref<1x1x128x512xf32, #tpu.memory_space<vmem>>, vector<1x1x128x512xf32>
    %275 = vector.shape_cast %274 : vector<1x1x128x512xf32> to vector<128x512xf32>
    %cst_115 = arith.constant dense<0.000000e+00> : vector<8x512xf32>
    %276 = tpu.matmul %259, %275, %cst_115 {dimension_numbers = #tpu.dot_dimension_numbers<[1], [0], [0], [1], [0, 0, 1, 1], [], []>} : vector<8x128xf32>, vector<128x512xf32>, vector<8x512xf32> -> vector<8x512xf32>
    %277 = arith.addf %273, %276 : vector<8x512xf32>
    %278 = vector.extract_strided_slice %277 {offsets = [0, 0], sizes = [8, 128], strides = [1, 1]} : vector<8x512xf32> to vector<8x128xf32>
    %279 = arith.negf %278 : vector<8x128xf32>
    %280 = math.exp %279 : vector<8x128xf32>
    %cst_116 = arith.constant 1.000000e+00 : f32
    %281 = vector.broadcast %cst_116 : f32 to vector<8x128xf32>
    %282 = arith.addf %281, %280 : vector<8x128xf32>
    %283 = arith.divf %281, %282 : vector<8x128xf32>
    %284 = vector.extract_strided_slice %277 {offsets = [0, 128], sizes = [8, 128], strides = [1, 1]} : vector<8x512xf32> to vector<8x128xf32>
    %285 = arith.negf %284 : vector<8x128xf32>
    %286 = math.exp %285 : vector<8x128xf32>
    %cst_117 = arith.constant 1.000000e+00 : f32
    %287 = vector.broadcast %cst_117 : f32 to vector<8x128xf32>
    %288 = arith.addf %287, %286 : vector<8x128xf32>
    %289 = arith.divf %287, %288 : vector<8x128xf32>
    %290 = vector.extract_strided_slice %277 {offsets = [0, 256], sizes = [8, 128], strides = [1, 1]} : vector<8x512xf32> to vector<8x128xf32>
    %291 = math.tanh %290 : vector<8x128xf32>
    %292 = vector.extract_strided_slice %277 {offsets = [0, 384], sizes = [8, 128], strides = [1, 1]} : vector<8x512xf32> to vector<8x128xf32>
    %293 = arith.negf %292 : vector<8x128xf32>
    %294 = math.exp %293 : vector<8x128xf32>
    %cst_118 = arith.constant 1.000000e+00 : f32
    %295 = vector.broadcast %cst_118 : f32 to vector<8x128xf32>
    %296 = arith.addf %295, %294 : vector<8x128xf32>
    %297 = arith.divf %295, %296 : vector<8x128xf32>
    %298 = arith.mulf %289, %257 : vector<8x128xf32>
    %299 = arith.mulf %283, %291 : vector<8x128xf32>
    %300 = arith.addf %298, %299 : vector<8x128xf32>
    %301 = math.tanh %300 : vector<8x128xf32>
    %302 = arith.mulf %297, %301 : vector<8x128xf32>
    %303 = arith.addi %27, %arg1 : i32
    %304 = arith.index_cast %303 : i32 to index
    %305 = arith.index_cast %271 : i32 to index
    %c0_119 = arith.constant 0 : index
    %306 = vector.load %arg13[%304, %305, %c0_119] : memref<4x64x128xf32, #tpu.memory_space<vmem>>, vector<1x8x128xf32>
    %307 = vector.shape_cast %306 : vector<1x8x128xf32> to vector<8x128xf32>
    %308 = vector.shape_cast %302 : vector<8x128xf32> to vector<1x8x128xf32>
    tpu.vector_store %arg13[%304, %305, %c0_119], %308 {strides = array<i32>} : memref<4x64x128xf32, #tpu.memory_space<vmem>>, vector<1x8x128xf32>,
    %c6_i32 = arith.constant 6 : i32
    %c2_i32_120 = arith.constant 2 : i32
    %309 = arith.muli %c2_i32_120, %c6_i32 : i32
    %c7_i32_121 = arith.constant 7 : i32
    %310 = arith.subi %c7_i32_121, %309 : i32
    %311 = arith.muli %arg1, %310 : i32
    %312 = arith.addi %c6_i32, %311 : i32
    %c8_i32_122 = arith.constant 8 : i32
    %313 = arith.muli %312, %c8_i32_122 : i32
    %314 = tpu.assume_multiple %313, 8 : i32
    %315 = arith.index_cast %314 : i32 to index
    %c0_123 = arith.constant 0 : index
    %316 = vector.load %arg14[%315, %c0_123] : memref<64x512xf32, #tpu.memory_space<vmem>>, vector<8x512xf32>
    %c0_124 = arith.constant 0 : index
    %c0_125 = arith.constant 0 : index
    %c0_126 = arith.constant 0 : index
    %c0_127 = arith.constant 0 : index
    %317 = vector.load %arg4[%c0_124, %c0_125, %c0_126, %c0_127] : memref<1x1x128x512xf32, #tpu.memory_space<vmem>>, vector<1x1x128x512xf32>
    %318 = vector.shape_cast %317 : vector<1x1x128x512xf32> to vector<128x512xf32>
    %cst_128 = arith.constant dense<0.000000e+00> : vector<8x512xf32>
    %319 = tpu.matmul %302, %318, %cst_128 {dimension_numbers = #tpu.dot_dimension_numbers<[1], [0], [0], [1], [0, 0, 1, 1], [], []>} : vector<8x128xf32>, vector<128x512xf32>, vector<8x512xf32> -> vector<8x512xf32>
    %320 = arith.addf %316, %319 : vector<8x512xf32>
    %321 = vector.extract_strided_slice %320 {offsets = [0, 0], sizes = [8, 128], strides = [1, 1]} : vector<8x512xf32> to vector<8x128xf32>
    %322 = arith.negf %321 : vector<8x128xf32>
    %323 = math.exp %322 : vector<8x128xf32>
    %cst_129 = arith.constant 1.000000e+00 : f32
    %324 = vector.broadcast %cst_129 : f32 to vector<8x128xf32>
    %325 = arith.addf %324, %323 : vector<8x128xf32>
    %326 = arith.divf %324, %325 : vector<8x128xf32>
    %327 = vector.extract_strided_slice %320 {offsets = [0, 128], sizes = [8, 128], strides = [1, 1]} : vector<8x512xf32> to vector<8x128xf32>
    %328 = arith.negf %327 : vector<8x128xf32>
    %329 = math.exp %328 : vector<8x128xf32>
    %cst_130 = arith.constant 1.000000e+00 : f32
    %330 = vector.broadcast %cst_130 : f32 to vector<8x128xf32>
    %331 = arith.addf %330, %329 : vector<8x128xf32>
    %332 = arith.divf %330, %331 : vector<8x128xf32>
    %333 = vector.extract_strided_slice %320 {offsets = [0, 256], sizes = [8, 128], strides = [1, 1]} : vector<8x512xf32> to vector<8x128xf32>
    %334 = math.tanh %333 : vector<8x128xf32>
    %335 = vector.extract_strided_slice %320 {offsets = [0, 384], sizes = [8, 128], strides = [1, 1]} : vector<8x512xf32> to vector<8x128xf32>
    %336 = arith.negf %335 : vector<8x128xf32>
    %337 = math.exp %336 : vector<8x128xf32>
    %cst_131 = arith.constant 1.000000e+00 : f32
    %338 = vector.broadcast %cst_131 : f32 to vector<8x128xf32>
    %339 = arith.addf %338, %337 : vector<8x128xf32>
    %340 = arith.divf %338, %339 : vector<8x128xf32>
    %341 = arith.mulf %332, %300 : vector<8x128xf32>
    %342 = arith.mulf %326, %334 : vector<8x128xf32>
    %343 = arith.addf %341, %342 : vector<8x128xf32>
    %344 = math.tanh %343 : vector<8x128xf32>
    %345 = arith.mulf %340, %344 : vector<8x128xf32>
    %346 = arith.addi %27, %arg1 : i32
    %347 = arith.index_cast %346 : i32 to index
    %348 = arith.index_cast %314 : i32 to index
    %c0_132 = arith.constant 0 : index
    %349 = vector.load %arg13[%347, %348, %c0_132] : memref<4x64x128xf32, #tpu.memory_space<vmem>>, vector<1x8x128xf32>
    %350 = vector.shape_cast %349 : vector<1x8x128xf32> to vector<8x128xf32>
    %351 = vector.shape_cast %345 : vector<8x128xf32> to vector<1x8x128xf32>
    tpu.vector_store %arg13[%347, %348, %c0_132], %351 {strides = array<i32>} : memref<4x64x128xf32, #tpu.memory_space<vmem>>, vector<1x8x128xf32>,
    %c7_i32_133 = arith.constant 7 : i32
    %c2_i32_134 = arith.constant 2 : i32
    %352 = arith.muli %c2_i32_134, %c7_i32_133 : i32
    %c7_i32_135 = arith.constant 7 : i32
    %353 = arith.subi %c7_i32_135, %352 : i32
    %354 = arith.muli %arg1, %353 : i32
    %355 = arith.addi %c7_i32_133, %354 : i32
    %c8_i32_136 = arith.constant 8 : i32
    %356 = arith.muli %355, %c8_i32_136 : i32
    %357 = tpu.assume_multiple %356, 8 : i32
    %358 = arith.index_cast %357 : i32 to index
    %c0_137 = arith.constant 0 : index
    %359 = vector.load %arg14[%358, %c0_137] : memref<64x512xf32, #tpu.memory_space<vmem>>, vector<8x512xf32>
    %c0_138 = arith.constant 0 : index
    %c0_139 = arith.constant 0 : index
    %c0_140 = arith.constant 0 : index
    %c0_141 = arith.constant 0 : index
    %360 = vector.load %arg4[%c0_138, %c0_139, %c0_140, %c0_141] : memref<1x1x128x512xf32, #tpu.memory_space<vmem>>, vector<1x1x128x512xf32>
    %361 = vector.shape_cast %360 : vector<1x1x128x512xf32> to vector<128x512xf32>
    %cst_142 = arith.constant dense<0.000000e+00> : vector<8x512xf32>
    %362 = tpu.matmul %345, %361, %cst_142 {dimension_numbers = #tpu.dot_dimension_numbers<[1], [0], [0], [1], [0, 0, 1, 1], [], []>} : vector<8x128xf32>, vector<128x512xf32>, vector<8x512xf32> -> vector<8x512xf32>
    %363 = arith.addf %359, %362 : vector<8x512xf32>
    %364 = vector.extract_strided_slice %363 {offsets = [0, 0], sizes = [8, 128], strides = [1, 1]} : vector<8x512xf32> to vector<8x128xf32>
    %365 = arith.negf %364 : vector<8x128xf32>
    %366 = math.exp %365 : vector<8x128xf32>
    %cst_143 = arith.constant 1.000000e+00 : f32
    %367 = vector.broadcast %cst_143 : f32 to vector<8x128xf32>
    %368 = arith.addf %367, %366 : vector<8x128xf32>
    %369 = arith.divf %367, %368 : vector<8x128xf32>
    %370 = vector.extract_strided_slice %363 {offsets = [0, 128], sizes = [8, 128], strides = [1, 1]} : vector<8x512xf32> to vector<8x128xf32>
    %371 = arith.negf %370 : vector<8x128xf32>
    %372 = math.exp %371 : vector<8x128xf32>
    %cst_144 = arith.constant 1.000000e+00 : f32
    %373 = vector.broadcast %cst_144 : f32 to vector<8x128xf32>
    %374 = arith.addf %373, %372 : vector<8x128xf32>
    %375 = arith.divf %373, %374 : vector<8x128xf32>
    %376 = vector.extract_strided_slice %363 {offsets = [0, 256], sizes = [8, 128], strides = [1, 1]} : vector<8x512xf32> to vector<8x128xf32>
    %377 = math.tanh %376 : vector<8x128xf32>
    %378 = vector.extract_strided_slice %363 {offsets = [0, 384], sizes = [8, 128], strides = [1, 1]} : vector<8x512xf32> to vector<8x128xf32>
    %379 = arith.negf %378 : vector<8x128xf32>
    %380 = math.exp %379 : vector<8x128xf32>
    %cst_145 = arith.constant 1.000000e+00 : f32
    %381 = vector.broadcast %cst_145 : f32 to vector<8x128xf32>
    %382 = arith.addf %381, %380 : vector<8x128xf32>
    %383 = arith.divf %381, %382 : vector<8x128xf32>
    %384 = arith.mulf %375, %343 : vector<8x128xf32>
    %385 = arith.mulf %369, %377 : vector<8x128xf32>
    %386 = arith.addf %384, %385 : vector<8x128xf32>
    %387 = math.tanh %386 : vector<8x128xf32>
    %388 = arith.mulf %383, %387 : vector<8x128xf32>
    %389 = arith.addi %27, %arg1 : i32
    %390 = arith.index_cast %389 : i32 to index
    %391 = arith.index_cast %357 : i32 to index
    %c0_146 = arith.constant 0 : index
    %392 = vector.load %arg13[%390, %391, %c0_146] : memref<4x64x128xf32, #tpu.memory_space<vmem>>, vector<1x8x128xf32>
    %393 = vector.shape_cast %392 : vector<1x8x128xf32> to vector<8x128xf32>
    %394 = vector.shape_cast %388 : vector<8x128xf32> to vector<1x8x128xf32>
    tpu.vector_store %arg13[%390, %391, %c0_146], %394 {strides = array<i32>} : memref<4x64x128xf32, #tpu.memory_space<vmem>>, vector<1x8x128xf32>,
    %c8_i32_147 = arith.constant 8 : i32
    %c0_148 = arith.constant 0 : index
    %c0_149 = arith.constant 0 : index
    %c0_150 = arith.constant 0 : index
    %c0_151 = arith.constant 0 : index
    %395 = vector.load %arg10[%c0_148, %c0_149, %c0_150, %c0_151] : memref<1x1x8x128xf32, #tpu.memory_space<vmem>>, vector<1x1x8x128xf32>
    %396 = vector.shape_cast %395 : vector<1x1x8x128xf32> to vector<8x128xf32>
    %397 = vector.shape_cast %388 : vector<8x128xf32> to vector<1x1x8x128xf32>
    tpu.vector_store %arg10[%c0_148, %c0_149, %c0_150, %c0_151], %397 {strides = array<i32>} : memref<1x1x8x128xf32, #tpu.memory_space<vmem>>, vector<1x1x8x128xf32>,
    %c0_152 = arith.constant 0 : index
    %c0_153 = arith.constant 0 : index
    %c0_154 = arith.constant 0 : index
    %c0_155 = arith.constant 0 : index
    %398 = vector.load %arg11[%c0_152, %c0_153, %c0_154, %c0_155] : memref<1x1x8x128xf32, #tpu.memory_space<vmem>>, vector<1x1x8x128xf32>
    %399 = vector.shape_cast %398 : vector<1x1x8x128xf32> to vector<8x128xf32>
    %400 = vector.shape_cast %386 : vector<8x128xf32> to vector<1x1x8x128xf32>
    tpu.vector_store %arg11[%c0_152, %c0_153, %c0_154, %c0_155], %400 {strides = array<i32>} : memref<1x1x8x128xf32, #tpu.memory_space<vmem>>, vector<1x1x8x128xf32>,
    %c27_i32 = arith.constant 27 : i32
    %401 = arith.cmpi eq, %arg0, %c27_i32 : i32
    %c1_i32_156 = arith.constant 1 : i32
    %402 = arith.cmpi eq, %arg1, %c1_i32_156 : i32
    %403 = arith.andi %401, %402 : i1
    %404 = arith.extui %403 : i1 to i32
    %c0_i32_157 = arith.constant 0 : i32
    %405 = arith.cmpi ne, %404, %c0_i32_157 : i32
    scf.if %405 {
      %406 = arith.index_cast %27 : i32 to index
      %c56 = arith.constant 56 : index
      %c0_158 = arith.constant 0 : index
      %407 = vector.load %arg13[%406, %c56, %c0_158] : memref<4x64x128xf32, #tpu.memory_space<vmem>>, vector<1x8x128xf32>
      %408 = vector.shape_cast %407 : vector<1x8x128xf32> to vector<8x128xf32>
      %c1_i32_159 = arith.constant 1 : i32
      %409 = arith.addi %27, %c1_i32_159 : i32
      %410 = arith.index_cast %409 : i32 to index
      %c56_160 = arith.constant 56 : index
      %c0_161 = arith.constant 0 : index
      %411 = vector.load %arg13[%410, %c56_160, %c0_161] : memref<4x64x128xf32, #tpu.memory_space<vmem>>, vector<1x8x128xf32>
      %412 = vector.shape_cast %411 : vector<1x8x128xf32> to vector<8x128xf32>
      %c0_162 = arith.constant 0 : index
      %c0_163 = arith.constant 0 : index
      %413 = vector.load %arg8[%c0_162, %c0_163] : memref<256x10xf32, #tpu.memory_space<vmem>>, vector<128x10xf32>
      %cst_164 = arith.constant dense<0.000000e+00> : vector<8x10xf32>
      %414 = tpu.matmul %408, %413, %cst_164 {dimension_numbers = #tpu.dot_dimension_numbers<[1], [0], [0], [1], [0, 0, 1, 1], [], []>} : vector<8x128xf32>, vector<128x10xf32>, vector<8x10xf32> -> vector<8x10xf32>
      %c128_165 = arith.constant 128 : index
      %c0_166 = arith.constant 0 : index
      %415 = vector.load %arg8[%c128_165, %c0_166] : memref<256x10xf32, #tpu.memory_space<vmem>>, vector<128x10xf32>
      %cst_167 = arith.constant dense<0.000000e+00> : vector<8x10xf32>
      %416 = tpu.matmul %412, %415, %cst_167 {dimension_numbers = #tpu.dot_dimension_numbers<[1], [0], [0], [1], [0, 0, 1, 1], [], []>} : vector<8x128xf32>, vector<128x10xf32>, vector<8x10xf32> -> vector<8x10xf32>
      %417 = arith.addf %414, %416 : vector<8x10xf32>
      %c0_168 = arith.constant 0 : index
      %c0_169 = arith.constant 0 : index
      %418 = vector.load %arg9[%c0_168, %c0_169] : memref<1x10xf32, #tpu.memory_space<vmem>>, vector<1x10xf32>
      %419 = vector.broadcast %418 : vector<1x10xf32> to vector<8x10xf32>
      %420 = arith.addf %417, %419 : vector<8x10xf32>
      %cst_170 = arith.constant dense<0xFF800000> : vector<8xf32>
      %421 = vector.multi_reduction <maximumf>, %420, %cst_170 [1] : vector<8x10xf32> to vector<8xf32>
      %422 = vector.shape_cast %421 : vector<8xf32> to vector<8x1xf32>
      %423 = vector.broadcast %422 : vector<8x1xf32> to vector<8x10xf32>
      %424 = arith.subf %420, %423 : vector<8x10xf32>
      %425 = math.exp %424 : vector<8x10xf32>
      %cst_171 = arith.constant dense<0.000000e+00> : vector<8xf32>
      %426 = vector.multi_reduction <add>, %425, %cst_171 [1] : vector<8x10xf32> to vector<8xf32>
      %427 = vector.shape_cast %426 : vector<8xf32> to vector<8x1xf32>
      %428 = math.log %427 : vector<8x1xf32>
      %429 = arith.addf %422, %428 : vector<8x1xf32>
      %430 = vector.broadcast %429 : vector<8x1xf32> to vector<8x10xf32>
      %431 = arith.subf %420, %430 : vector<8x10xf32>
      %c0_172 = arith.constant 0 : index
      %c0_173 = arith.constant 0 : index
      %432 = vector.load %arg12[%c0_172, %c0_173] : memref<8x10xf32, #tpu.memory_space<vmem>>, vector<8x10xf32>
      tpu.vector_store %arg12[%c0_172, %c0_173], %431 {strides = array<i32>} : memref<8x10xf32, #tpu.memory_space<vmem>>, vector<8x10xf32>,
    } else {
    }
    return
  }
  func.func @transform_0(%arg0: i32, %arg1: i32) -> (i32, i32) {
    %c0_i32 = arith.constant 0 : i32
    %c0_i32_0 = arith.constant 0 : i32
    %c0_i32_1 = arith.constant 0 : i32
    return %c0_i32, %c0_i32_0 : i32, i32
  }
  func.func @transform_1(%arg0: i32, %arg1: i32) -> (i32, i32, i32, i32) {
    %c0_i32 = arith.constant 0 : i32
    %c0_i32_0 = arith.constant 0 : i32
    %c0_i32_1 = arith.constant 0 : i32
    return %arg0, %arg1, %c0_i32, %c0_i32_0 : i32, i32, i32, i32
  }
  func.func @transform_2(%arg0: i32, %arg1: i32) -> (i32, i32, i32, i32) {
    %c0_i32 = arith.constant 0 : i32
    %c0_i32_0 = arith.constant 0 : i32
    %c0_i32_1 = arith.constant 0 : i32
    return %arg0, %arg1, %c0_i32, %c0_i32_0 : i32, i32, i32, i32
  }
  func.func @transform_3(%arg0: i32, %arg1: i32) -> (i32, i32, i32, i32) {
    %c0_i32 = arith.constant 0 : i32
    %c0_i32_0 = arith.constant 0 : i32
    %c0_i32_1 = arith.constant 0 : i32
    return %arg0, %arg1, %c0_i32, %c0_i32_0 : i32, i32, i32, i32
  }
  func.func @transform_4(%arg0: i32, %arg1: i32) -> (i32, i32, i32, i32) {
    %c0_i32 = arith.constant 0 : i32
    %c0_i32_0 = arith.constant 0 : i32
    %c0_i32_1 = arith.constant 0 : i32
    return %arg0, %arg1, %c0_i32, %c0_i32_0 : i32, i32, i32, i32
  }
  func.func @transform_5(%arg0: i32, %arg1: i32) -> (i32, i32, i32, i32) {
    %c0_i32 = arith.constant 0 : i32
    %c0_i32_0 = arith.constant 0 : i32
    %c0_i32_1 = arith.constant 0 : i32
    return %arg0, %arg1, %c0_i32, %c0_i32_0 : i32, i32, i32, i32
  }
  func.func @transform_6(%arg0: i32, %arg1: i32) -> (i32, i32) {
    %c0_i32 = arith.constant 0 : i32
    %c0_i32_0 = arith.constant 0 : i32
    %c0_i32_1 = arith.constant 0 : i32
    return %c0_i32, %c0_i32_0 : i32, i32
  }
  func.func @transform_7(%arg0: i32, %arg1: i32) -> (i32, i32) {
    %c0_i32 = arith.constant 0 : i32
    %c0_i32_0 = arith.constant 0 : i32
    %c0_i32_1 = arith.constant 0 : i32
    return %c0_i32, %c0_i32_0 : i32, i32
  }
  func.func @transform_8(%arg0: i32, %arg1: i32) -> (i32, i32, i32, i32) {
    %c0_i32 = arith.constant 0 : i32
    %c0_i32_0 = arith.constant 0 : i32
    %c0_i32_1 = arith.constant 0 : i32
    return %arg0, %arg1, %c0_i32, %c0_i32_0 : i32, i32, i32, i32
  }
  func.func @transform_9(%arg0: i32, %arg1: i32) -> (i32, i32, i32, i32) {
    %c0_i32 = arith.constant 0 : i32
    %c0_i32_0 = arith.constant 0 : i32
    %c0_i32_1 = arith.constant 0 : i32
    return %arg0, %arg1, %c0_i32, %c0_i32_0 : i32, i32, i32, i32
  }
  func.func @transform_10(%arg0: i32, %arg1: i32) -> (i32, i32) {
    %c0_i32 = arith.constant 0 : i32
    %c0_i32_0 = arith.constant 0 : i32
    %c0_i32_1 = arith.constant 0 : i32
    return %c0_i32, %c0_i32_0 : i32, i32
  }
}

</mosaic_0001>

<llo_original>
// kernel: net_forward.1
$region0: #{net_forward.1}
  #allocation0 [shape = 'u32[]', space=smem, size = 0x4, offset = 0x4, fixed_abs, tag = 'smem constant byte address 0x4 - core index']
  #allocation1 [shape = 'u32[144,128]{1,0:T(1,128)}', space=vmem, size = 0x12000, scoped, tag = 'internal scratch']
  #allocation2 [shape = 'f32[4,64,128]{2,1,0:T(8,128)}', space=vmem, size = 0x20000, scoped, tag = 'scratch operand']
  #allocation3 [shape = 'f32[64,512]{1,0:T(8,128)}', space=vmem, size = 0x20000, scoped, tag = 'scratch operand']
  %s0 = inlined_call_operand.vmem [shape: f32[64,128], index: 0, kind: input, shape index: {}]
  %s1 = inlined_call_operand.hbm [shape: f32[28,2,256,512], index: 1, kind: input, shape index: {}]
  %s2 = inlined_call_operand.hbm [shape: f32[28,2,128,512], index: 2, kind: input, shape index: {}]
  %s3 = inlined_call_operand.hbm [shape: f32[28,2,1,512], index: 3, kind: input, shape index: {}]
  %s4 = inlined_call_operand.hbm [shape: f32[28,2,8,128], index: 4, kind: input, shape index: {}]
  %s5 = inlined_call_operand.hbm [shape: f32[28,2,8,128], index: 5, kind: input, shape index: {}]
  %s6 = inlined_call_operand.vmem [shape: f32[256,10], index: 6, kind: input, shape index: {}]
  %s7 = inlined_call_operand.hbm [shape: f32[1,10], index: 7, kind: input, shape index: {}]
  %s8 = inlined_call_operand.hbm [shape: f32[28,2,8,128], index: 8, kind: output, shape index: {0}]
  %s9 = inlined_call_operand.hbm [shape: f32[28,2,8,128], index: 9, kind: output, shape index: {1}]
  %s10 = inlined_call_operand.hbm [shape: f32[8,10], index: 10, kind: output, shape index: {2}]
  %11 = xla_tuple %s8, %s9, %s10
  %s12 = sld [smem:[#allocation0]]
  $region113: #{net_forward.1} parent=0
    _
  %s14 = ssub.s32 1, %s12
  %s15 = scalar_select 0, %s14, %s12
  $region1: #{net_forward.1} parent=0
    #allocation4 [shape = 'u8[1048576]{0}', space=vmem, size = 0x100000, scoped, tag = 'input window, operand 1']
    #allocation5 [shape = 's32[2]{0}', space=sflag, size = 0x8, scoped, tag = 'scoped memory for net_forward.1']
    #allocation6 [shape = 's32[2]{0}', space=sflag, size = 0x8, scoped, tag = 'scoped memory for net_forward.1']
    #allocation7 [shape = 'u8[524288]{0}', space=vmem, size = 0x80000, scoped, tag = 'input window, operand 2']
    #allocation8 [shape = 's32[2]{0}', space=sflag, size = 0x8, scoped, tag = 'scoped memory for net_forward.1']
    #allocation9 [shape = 'u8[4096]{0}', space=vmem, size = 0x1000, scoped, tag = 'input window, operand 3']
    #allocation10 [shape = 'u8[8192]{0}', space=vmem, size = 0x2000, scoped, tag = 'input window, operand 4']
    #allocation11 [shape = 's32[2]{0}', space=sflag, size = 0x8, scoped, tag = 'scoped memory for net_forward.1']
    #allocation12 [shape = 'u8[8192]{0}', space=vmem, size = 0x2000, scoped, tag = 'input window, operand 5']
    #allocation13 [shape = 'u8[512]{0}', space=vmem, size = 0x400, scoped, tag = 'input window, operand 7, single buffered']
    #allocation14 [shape = 's32[1]{0}', space=sflag, size = 0x4, scoped, tag = 'scoped memory for net_forward.1']
    #allocation15 [shape = 'u8[8192]{0}', space=vmem, size = 0x2000, scoped, tag = 'output window, operand 0']
    #allocation16 [shape = 'u8[8192]{0}', space=vmem, size = 0x2000, scoped, tag = 'output window, operand 1']
    #allocation17 [shape = 's32[2]{0}', space=sflag, size = 0x8, scoped, tag = 'scoped memory for net_forward.1']
    #allocation18 [shape = 'u8[4096]{0}', space=vmem, size = 0x1000, scoped, tag = 'output window, operand 2, single buffered']
    %16 = vsyncpa [#allocation5], 0
    %s17 = scalar_lea.sflag [#allocation5], 1
    %18 = vsyncpa %s17, 0
    %19 = vsyncpa [#allocation8], 0
    %s20 = scalar_lea.sflag [#allocation8], 1
    %21 = vsyncpa %s20, 0
    %22 = vsyncpa [#allocation11], 0
    %s23 = scalar_lea.sflag [#allocation11], 1
    %24 = vsyncpa %s23, 0
    %25 = vsyncpa [#allocation14], 0
    %26 = vsyncpa [#allocation6], 0
    %s27 = scalar_lea.sflag [#allocation6], 1
    %28 = vsyncpa %s27, 0
    %29 = vsyncpa [#allocation17], 0
    %s30 = scalar_lea.sflag [#allocation17], 1
    %31 = vsyncpa %s30, 0
    loop: start=0, step=1, limit=58
    $region2: #{net_forward.1} parent=1 // loop_pre_header
      _
    $region3: #{net_forward.1} parent=1 // loop_header
      %s33 = sphi 0, %s37
      %p34 = scmp.ge.s32.totalorder %s33, 58
      %s40 = sphi 0, %s52
      %s41 = sphi 0, %s48
      %s42 = sphi 0, %s40
      %s43 = sphi 0, %s41
      %s44 = sphi 0, %s42
      %s45 = sphi 0, %s43
      %s53 = sphi 0, %s53
      %s55 = sphi 0, %s53
      %s56 = sphi 0, %s55
      %s70 = sphi 0, %s56
      %s78 = sphi 0, %s80
      %s81 = sphi 0, %s78
      %s82 = sphi 0, %s81
      %s98 = sphi 0, %s82
      %s106 = sphi 0, %s108
      %s109 = sphi 0, %s106
      %s110 = sphi 0, %s109
      %s126 = sphi 0, %s110
      %s134 = sphi 0, %s136
      %s137 = sphi 0, %s134
      %s138 = sphi 0, %s137
      %s154 = sphi 0, %s138
      %s162 = sphi 0, %s164
      %s165 = sphi 0, %s162
      %s166 = sphi 0, %s165
      %s182 = sphi 0, %s166
      %s190 = sphi 0, %s192
      %s193 = sphi 0, %s190
      %s194 = sphi 0, %s193
      %s210 = sphi 0, %s194
      %s214 = sphi 0, %s214
      %s216 = sphi 0, %s214
      %s217 = sphi 0, %s216
      %s231 = sphi 0, %s217
      %s235 = sphi 0, %s235
      %s237 = sphi 0, %s235
      %s238 = sphi 0, %s237
      %s252 = sphi 0, %s238
      %s260 = sphi 0, %s262
      %s263 = sphi 0, %s260
      %s264 = sphi 0, %s263
      %s280 = sphi 0, %s264
      %s288 = sphi 0, %s290
      %s291 = sphi 0, %s288
      %s292 = sphi 0, %s291
      %s308 = sphi 0, %s292
      %s312 = sphi 0, %s312
      %s314 = sphi 0, %s312
      %s315 = sphi 0, %s314
      %s329 = sphi 0, %s315
    $region4: #{net_forward.1} parent=1 // loop_header_branch
      %36 = sbr.rel (%p34) target = $region8
    $region5: #{net_forward.1} parent=1 // loop_body
      %s38 = ssub.s32 %s33, 1
      %s39 = ssub.s32 %s33, 2
      %s46 = sadd.s32 1, %s41
      %p47 = scmp.ge.s32.totalorder %s46, 2
      %s48 = scalar_select %p47, 0, %s46
      %s49 = sadd.s32 1, %s40
      %s50 = scalar_select %p47, %s49, %s40
      %p51 = scmp.ge.s32.totalorder %s50, 28
      %s52 = scalar_select %p51, 0, %s50
      %s54 = sadd.s32 %s53, 1
      %p57 = scmp.eq.s32.totalorder %s33, 55
      %p58 = scmp.ne.s32.totalorder %s53, %s55
      %p59 = scmp.eq.s32.totalorder %s33, 0
      %p60 = por %p58, %p59
      %p61 = scmp.ne.s32.totalorder %s53, %s55
      %p62 = scmp.eq.s32.totalorder %s38, 55
      %p63 = por %p61, %p62
      %p64 = scmp.ne.s32.totalorder %s55, %s56
      %p65 = scmp.eq.s32.totalorder %s38, 0
      %p66 = por %p64, %p65
      %p67 = scmp.ne.s32.totalorder %s55, %s56
      %p68 = scmp.eq.s32.totalorder %s39, 55
      %p69 = por %p67, %p68
      %p71 = scmp.ne.s32.totalorder %s56, %s70
      %p72 = scmp.eq.s32.totalorder %s39, 0
      %p73 = por %p71, %p72
      %s74 = ssub.s32 %s40, %s52
      %s75 = ssub.s32 %s41, %s48
      %s76 = sor.u32 %s74, %s75
      %p77 = scmp.eq.s32.totalorder %s76, 0
      %s79 = sadd.s32 %s78, 1
      %s80 = scalar_select %p77, %s78, %s79
      %p83 = pneg %p77
      %p84 = scmp.eq.s32.totalorder %s33, 55
      %p85 = por %p83, %p84
      %p86 = scmp.ne.s32.totalorder %s78, %s81
      %p87 = scmp.eq.s32.totalorder %s33, 0
      %p88 = por %p86, %p87
      %p89 = scmp.ne.s32.totalorder %s78, %s81
      %p90 = scmp.eq.s32.totalorder %s38, 55
      %p91 = por %p89, %p90
      %p92 = scmp.ne.s32.totalorder %s81, %s82
      %p93 = scmp.eq.s32.totalorder %s38, 0
      %p94 = por %p92, %p93
      %p95 = scmp.ne.s32.totalorder %s81, %s82
      %p96 = scmp.eq.s32.totalorder %s39, 55
      %p97 = por %p95, %p96
      %p99 = scmp.ne.s32.totalorder %s82, %s98
      %p100 = scmp.eq.s32.totalorder %s39, 0
      %p101 = por %p99, %p100
      %s102 = ssub.s32 %s40, %s52
      %s103 = ssub.s32 %s41, %s48
      %s104 = sor.u32 %s102, %s103
      %p105 = scmp.eq.s32.totalorder %s104, 0
      %s107 = sadd.s32 %s106, 1
      %s108 = scalar_select %p105, %s106, %s107
      %p111 = pneg %p105
      %p112 = scmp.eq.s32.totalorder %s33, 55
      %p113 = por %p111, %p112
      %p114 = scmp.ne.s32.totalorder %s106, %s109
      %p115 = scmp.eq.s32.totalorder %s33, 0
      %p116 = por %p114, %p115
      %p117 = scmp.ne.s32.totalorder %s106, %s109
      %p118 = scmp.eq.s32.totalorder %s38, 55
      %p119 = por %p117, %p118
      %p120 = scmp.ne.s32.totalorder %s109, %s110
      %p121 = scmp.eq.s32.totalorder %s38, 0
      %p122 = por %p120, %p121
      %p123 = scmp.ne.s32.totalorder %s109, %s110
      %p124 = scmp.eq.s32.totalorder %s39, 55
      %p125 = por %p123, %p124
      %p127 = scmp.ne.s32.totalorder %s110, %s126
      %p128 = scmp.eq.s32.totalorder %s39, 0
      %p129 = por %p127, %p128
      %s130 = ssub.s32 %s40, %s52
      %s131 = ssub.s32 %s41, %s48
      %s132 = sor.u32 %s130, %s131
      %p133 = scmp.eq.s32.totalorder %s132, 0
      %s135 = sadd.s32 %s134, 1
      %s136 = scalar_select %p133, %s134, %s135
      %p139 = pneg %p133
      %p140 = scmp.eq.s32.totalorder %s33, 55
      %p141 = por %p139, %p140
      %p142 = scmp.ne.s32.totalorder %s134, %s137
      %p143 = scmp.eq.s32.totalorder %s33, 0
      %p144 = por %p142, %p143
      %p145 = scmp.ne.s32.totalorder %s134, %s137
      %p146 = scmp.eq.s32.totalorder %s38, 55
      %p147 = por %p145, %p146
      %p148 = scmp.ne.s32.totalorder %s137, %s138
      %p149 = scmp.eq.s32.totalorder %s38, 0
      %p150 = por %p148, %p149
      %p151 = scmp.ne.s32.totalorder %s137, %s138
      %p152 = scmp.eq.s32.totalorder %s39, 55
      %p153 = por %p151, %p152
      %p155 = scmp.ne.s32.totalorder %s138, %s154
      %p156 = scmp.eq.s32.totalorder %s39, 0
      %p157 = por %p155, %p156
      %s158 = ssub.s32 %s40, %s52
      %s159 = ssub.s32 %s41, %s48
      %s160 = sor.u32 %s158, %s159
      %p161 = scmp.eq.s32.totalorder %s160, 0
      %s163 = sadd.s32 %s162, 1
      %s164 = scalar_select %p161, %s162, %s163
      %p167 = pneg %p161
      %p168 = scmp.eq.s32.totalorder %s33, 55
      %p169 = por %p167, %p168
      %p170 = scmp.ne.s32.totalorder %s162, %s165
      %p171 = scmp.eq.s32.totalorder %s33, 0
      %p172 = por %p170, %p171
      %p173 = scmp.ne.s32.totalorder %s162, %s165
      %p174 = scmp.eq.s32.totalorder %s38, 55
      %p175 = por %p173, %p174
      %p176 = scmp.ne.s32.totalorder %s165, %s166
      %p177 = scmp.eq.s32.totalorder %s38, 0
      %p178 = por %p176, %p177
      %p179 = scmp.ne.s32.totalorder %s165, %s166
      %p180 = scmp.eq.s32.totalorder %s39, 55
      %p181 = por %p179, %p180
      %p183 = scmp.ne.s32.totalorder %s166, %s182
      %p184 = scmp.eq.s32.totalorder %s39, 0
      %p185 = por %p183, %p184
      %s186 = ssub.s32 %s40, %s52
      %s187 = ssub.s32 %s41, %s48
      %s188 = sor.u32 %s186, %s187
      %p189 = scmp.eq.s32.totalorder %s188, 0
      %s191 = sadd.s32 %s190, 1
      %s192 = scalar_select %p189, %s190, %s191
      %p195 = pneg %p189
      %p196 = scmp.eq.s32.totalorder %s33, 55
      %p197 = por %p195, %p196
      %p198 = scmp.ne.s32.totalorder %s190, %s193
      %p199 = scmp.eq.s32.totalorder %s33, 0
      %p200 = por %p198, %p199
      %p201 = scmp.ne.s32.totalorder %s190, %s193
      %p202 = scmp.eq.s32.totalorder %s38, 55
      %p203 = por %p201, %p202
      %p204 = scmp.ne.s32.totalorder %s193, %s194
      %p205 = scmp.eq.s32.totalorder %s38, 0
      %p206 = por %p204, %p205
      %p207 = scmp.ne.s32.totalorder %s193, %s194
      %p208 = scmp.eq.s32.totalorder %s39, 55
      %p209 = por %p207, %p208
      %p211 = scmp.ne.s32.totalorder %s194, %s210
      %p212 = scmp.eq.s32.totalorder %s39, 0
      %p213 = por %p211, %p212
      %s215 = sadd.s32 %s214, 1
      %p218 = scmp.eq.s32.totalorder %s33, 55
      %p219 = scmp.ne.s32.totalorder %s214, %s216
      %p220 = scmp.eq.s32.totalorder %s33, 0
      %p221 = por %p219, %p220
      %p222 = scmp.ne.s32.totalorder %s214, %s216
      %p223 = scmp.eq.s32.totalorder %s38, 55
      %p224 = por %p222, %p223
      %p225 = scmp.ne.s32.totalorder %s216, %s217
      %p226 = scmp.eq.s32.totalorder %s38, 0
      %p227 = por %p225, %p226
      %p228 = scmp.ne.s32.totalorder %s216, %s217
      %p229 = scmp.eq.s32.totalorder %s39, 55
      %p230 = por %p228, %p229
      %p232 = scmp.ne.s32.totalorder %s217, %s231
      %p233 = scmp.eq.s32.totalorder %s39, 0
      %p234 = por %p232, %p233
      %s236 = sadd.s32 %s235, 1
      %p239 = scmp.eq.s32.totalorder %s33, 55
      %p240 = scmp.ne.s32.totalorder %s235, %s237
      %p241 = scmp.eq.s32.totalorder %s33, 0
      %p242 = por %p240, %p241
      %p243 = scmp.ne.s32.totalorder %s235, %s237
      %p244 = scmp.eq.s32.totalorder %s38, 55
      %p245 = por %p243, %p244
      %p246 = scmp.ne.s32.totalorder %s237, %s238
      %p247 = scmp.eq.s32.totalorder %s38, 0
      %p248 = por %p246, %p247
      %p249 = scmp.ne.s32.totalorder %s237, %s238
      %p250 = scmp.eq.s32.totalorder %s39, 55
      %p251 = por %p249, %p250
      %p253 = scmp.ne.s32.totalorder %s238, %s252
      %p254 = scmp.eq.s32.totalorder %s39, 0
      %p255 = por %p253, %p254
      %s256 = ssub.s32 %s40, %s52
      %s257 = ssub.s32 %s41, %s48
      %s258 = sor.u32 %s256, %s257
      %p259 = scmp.eq.s32.totalorder %s258, 0
      %s261 = sadd.s32 %s260, 1
      %s262 = scalar_select %p259, %s260, %s261
      %p265 = pneg %p259
      %p266 = scmp.eq.s32.totalorder %s33, 55
      %p267 = por %p265, %p266
      %p268 = scmp.ne.s32.totalorder %s260, %s263
      %p269 = scmp.eq.s32.totalorder %s33, 0
      %p270 = por %p268, %p269
      %p271 = scmp.ne.s32.totalorder %s260, %s263
      %p272 = scmp.eq.s32.totalorder %s38, 55
      %p273 = por %p271, %p272
      %p274 = scmp.ne.s32.totalorder %s263, %s264
      %p275 = scmp.eq.s32.totalorder %s38, 0
      %p276 = por %p274, %p275
      %p277 = scmp.ne.s32.totalorder %s263, %s264
      %p278 = scmp.eq.s32.totalorder %s39, 55
      %p279 = por %p277, %p278
      %p281 = scmp.ne.s32.totalorder %s264, %s280
      %p282 = scmp.eq.s32.totalorder %s39, 0
      %p283 = por %p281, %p282
      %s284 = ssub.s32 %s40, %s52
      %s285 = ssub.s32 %s41, %s48
      %s286 = sor.u32 %s284, %s285
      %p287 = scmp.eq.s32.totalorder %s286, 0
      %s289 = sadd.s32 %s288, 1
      %s290 = scalar_select %p287, %s288, %s289
      %p293 = pneg %p287
      %p294 = scmp.eq.s32.totalorder %s33, 55
      %p295 = por %p293, %p294
      %p296 = scmp.ne.s32.totalorder %s288, %s291
      %p297 = scmp.eq.s32.totalorder %s33, 0
      %p298 = por %p296, %p297
      %p299 = scmp.ne.s32.totalorder %s288, %s291
      %p300 = scmp.eq.s32.totalorder %s38, 55
      %p301 = por %p299, %p300
      %p302 = scmp.ne.s32.totalorder %s291, %s292
      %p303 = scmp.eq.s32.totalorder %s38, 0
      %p304 = por %p302, %p303
      %p305 = scmp.ne.s32.totalorder %s291, %s292
      %p306 = scmp.eq.s32.totalorder %s39, 55
      %p307 = por %p305, %p306
      %p309 = scmp.ne.s32.totalorder %s292, %s308
      %p310 = scmp.eq.s32.totalorder %s39, 0
      %p311 = por %p309, %p310
      %s313 = sadd.s32 %s312, 1
      %p316 = scmp.eq.s32.totalorder %s33, 55
      %p317 = scmp.ne.s32.totalorder %s312, %s314
      %p318 = scmp.eq.s32.totalorder %s33, 0
      %p319 = por %p317, %p318
      %p320 = scmp.ne.s32.totalorder %s312, %s314
      %p321 = scmp.eq.s32.totalorder %s38, 55
      %p322 = por %p320, %p321
      %p323 = scmp.ne.s32.totalorder %s314, %s315
      %p324 = scmp.eq.s32.totalorder %s38, 0
      %p325 = por %p323, %p324
      %p326 = scmp.ne.s32.totalorder %s314, %s315
      %p327 = scmp.eq.s32.totalorder %s39, 55
      %p328 = por %p326, %p327
      %p330 = scmp.ne.s32.totalorder %s315, %s329
      %p331 = scmp.eq.s32.totalorder %s39, 0
      %p332 = por %p330, %p331
      %p333 = scmp.le.s32.totalorder 1, %s33
      %p334 = scmp.lt.s32.totalorder %s33, 57
      %p335 = pnand %p333, %p334
      %p336 = pneg %p335
      // Predicated region
      $region9: #{net_forward.1} parent=5 // pred_check
        _
      $region10: #{net_forward.1} parent=5 // pred_check_branch
        %338 = sbr.rel (%p335) target = $region12
      $region11: #{net_forward.1} parent=5 // pred_region
        %s339 = ssub.s32 %s33, 1
        // Predicated region
        $region13: #{net_forward.1} parent=11 // pred_check
          %p340 = pneg %p66
        $region14: #{net_forward.1} parent=11 // pred_check_branch
          %342 = sbr.rel (%p340) target = $region16
        $region15: #{net_forward.1} parent=11 // pred_region
          _
        $region16: #{net_forward.1} parent=11 // pred_fallthru
          _
        // Predicated region
        $region17: #{net_forward.1} parent=11 // pred_check
          %p343 = pneg %p227
        $region18: #{net_forward.1} parent=11 // pred_check_branch
          %345 = sbr.rel (%p343) target = $region20
        $region19: #{net_forward.1} parent=11 // pred_region
          _
        $region20: #{net_forward.1} parent=11 // pred_fallthru
          _
        // Predicated region
        $region21: #{net_forward.1} parent=11 // pred_check
          %p346 = pneg %p248
        $region22: #{net_forward.1} parent=11 // pred_check_branch
          %348 = sbr.rel (%p346) target = $region24
        $region23: #{net_forward.1} parent=11 // pred_region
          %s350 = ssub.s32 16, 16
          %351 = vsyncadd [#allocation14], %s350
          %s353 = sshll.u32 [#allocation13], 4
          %s354 = int_to_ptr.vmem [resolvable:$true] %s353
          %356 = dma.hbm_to_vmem [thread:$0]  %s7, 16, %s354, [#allocation14]
        $region24: #{net_forward.1} parent=11 // pred_fallthru
          _
      $region12: #{net_forward.1} parent=5 // pred_fallthru
        _
      %p357 = scmp.lt.s32.totalorder %s33, 56
      // Predicated region
      $region25: #{net_forward.1} parent=5 // pred_check
        %p358 = pneg %p357
      $region26: #{net_forward.1} parent=5 // pred_check_branch
        %360 = sbr.rel (%p358) target = $region28
      $region27: #{net_forward.1} parent=5 // pred_region
        // Predicated region
        $region29: #{net_forward.1} parent=27 // pred_check
          %p361 = pneg %p88
        $region30: #{net_forward.1} parent=27 // pred_check_branch
          %363 = sbr.rel (%p361) target = $region32
        $region31: #{net_forward.1} parent=27 // pred_region
          %s364 = sand.u32 %s78, 1
          %s365 = scalar_lea.sflag [#allocation5], %s364
          %s366 = sand.u32 %s78, 1
          %s367 = smul.addr %s366, 1024
          %s368 = scalar_lea.vmem [#allocation4], %s367
          %s370 = ssub.s32 16384, 16384
          %371 = vsyncadd %s365, %s370
          %s372 = smul.addr %s41, 128
          %s373 = smul.addr %s40, 256
          %s374 = sadd.s32 %s372, %s373
          %s375 = smul.addr %s374, 128
          %s376 = scalar_lea.hbm %s1, %s375
          %s377 = sshll.u32 %s368, 4
          %s378 = int_to_ptr.vmem [resolvable:$true] %s377
          %383 = dma.hbm_to_vmem [thread:$0]  %s376, 16384, %s378, %s365, 512, 512, 32
        $region32: #{net_forward.1} parent=27 // pred_fallthru
          _
        // Predicated region
        $region33: #{net_forward.1} parent=27 // pred_check
          %p384 = pneg %p116
        $region34: #{net_forward.1} parent=27 // pred_check_branch
          %386 = sbr.rel (%p384) target = $region36
        $region35: #{net_forward.1} parent=27 // pred_region
          %s387 = sand.u32 %s33, 1
          %s388 = scalar_lea.sflag [#allocation8], %s387
          %s389 = sand.u32 %s106, 1
          %s390 = smul.addr %s389, 512
          %s391 = scalar_lea.vmem [#allocation7], %s390
          %s393 = ssub.s32 8192, 8192
          %394 = vsyncadd %s388, %s393
          %s395 = smul.addr %s41, 64
          %s396 = smul.addr %s40, 128
          %s397 = sadd.s32 %s395, %s396
          %s398 = smul.addr %s397, 128
          %s399 = scalar_lea.hbm %s2, %s398
          %s400 = sshll.u32 %s391, 4
          %s401 = int_to_ptr.vmem [resolvable:$true] %s400
          %406 = dma.hbm_to_vmem [thread:$0]  %s399, 8192, %s401, %s388, 512, 512, 32
        $region36: #{net_forward.1} parent=27 // pred_fallthru
          _
        // Predicated region
        $region37: #{net_forward.1} parent=27 // pred_check
          %p407 = pneg %p144
        $region38: #{net_forward.1} parent=27 // pred_check_branch
          %409 = sbr.rel (%p407) target = $region40
        $region39: #{net_forward.1} parent=27 // pred_region
          %s410 = sand.u32 %s33, 1
          %s411 = scalar_lea.sflag [#allocation8], %s410
          %s412 = sand.u32 %s134, 1
          %s413 = smul.addr %s412, 4
          %s414 = scalar_lea.vmem [#allocation9], %s413
          %s416 = ssub.s32 64, 64
          %417 = vsyncadd %s411, %s416
          %s418 = smul.addr %s41, 4
          %s419 = smul.addr %s40, 8
          %s420 = sadd.s32 %s418, %s419
          %s421 = smul.addr %s420, 16
          %s422 = scalar_lea.hbm %s3, %s421
          %s424 = sshll.u32 %s414, 4
          %s425 = int_to_ptr.vmem [resolvable:$true] %s424
          %427 = dma.hbm_to_vmem [thread:$0]  %s422, 64, %s425, %s411
        $region40: #{net_forward.1} parent=27 // pred_fallthru
          _
        // Predicated region
        $region41: #{net_forward.1} parent=27 // pred_check
          %p428 = pneg %p172
        $region42: #{net_forward.1} parent=27 // pred_check_branch
          %430 = sbr.rel (%p428) target = $region44
        $region43: #{net_forward.1} parent=27 // pred_region
          %s431 = sand.u32 %s33, 1
          %s432 = scalar_lea.sflag [#allocation11], %s431
          %s433 = sand.u32 %s162, 1
          %s434 = smul.addr %s433, 8
          %s435 = scalar_lea.vmem [#allocation10], %s434
          %s437 = ssub.s32 128, 128
          %438 = vsyncadd %s432, %s437
          %s439 = smul.addr %s40, 2
          %s440 = sadd.s32 %s41, %s439
          %s441 = smul.addr %s440, 128
          %s442 = scalar_lea.hbm %s4, %s441
          %s444 = sshll.u32 %s435, 4
          %s445 = int_to_ptr.vmem [resolvable:$true] %s444
          %447 = dma.hbm_to_vmem [thread:$0]  %s442, 128, %s445, %s432
        $region44: #{net_forward.1} parent=27 // pred_fallthru
          _
        // Predicated region
        $region45: #{net_forward.1} parent=27 // pred_check
          %p448 = pneg %p200
        $region46: #{net_forward.1} parent=27 // pred_check_branch
          %450 = sbr.rel (%p448) target = $region48
        $region47: #{net_forward.1} parent=27 // pred_region
          %s451 = sand.u32 %s33, 1
          %s452 = scalar_lea.sflag [#allocation11], %s451
          %s453 = sand.u32 %s190, 1
          %s454 = smul.addr %s453, 8
          %s455 = scalar_lea.vmem [#allocation12], %s454
          %s457 = ssub.s32 128, 128
          %458 = vsyncadd %s452, %s457
          %s459 = smul.addr %s40, 2
          %s460 = sadd.s32 %s41, %s459
          %s461 = smul.addr %s460, 128
          %s462 = scalar_lea.hbm %s5, %s461
          %s464 = sshll.u32 %s455, 4
          %s465 = int_to_ptr.vmem [resolvable:$true] %s464
          %467 = dma.hbm_to_vmem [thread:$0]  %s462, 128, %s465, %s452
        $region48: #{net_forward.1} parent=27 // pred_fallthru
          _
      $region28: #{net_forward.1} parent=5 // pred_fallthru
        _
      %p468 = scmp.le.s32.totalorder 1, %s33
      %p469 = scmp.lt.s32.totalorder %s33, 57
      %p470 = pnand %p468, %p469
      %p471 = pneg %p470
      // Predicated region
      $region49: #{net_forward.1} parent=5 // pred_check
        _
      $region50: #{net_forward.1} parent=5 // pred_check_branch
        %473 = sbr.rel (%p470) target = $region52
      $region51: #{net_forward.1} parent=5 // pred_region
        %s474 = ssub.s32 %s33, 1
        %s475 = sand.u32 %s81, 1
        %s476 = scalar_lea.sflag [#allocation5], %s475
        %s477 = sand.u32 %s81, 1
        %s478 = smul.addr %s477, 1024
        %s479 = scalar_lea.vmem [#allocation4], %s478
        // Predicated region
        $region53: #{net_forward.1} parent=51 // pred_check
          %p480 = pneg %p94
        $region54: #{net_forward.1} parent=51 // pred_check_branch
          %482 = sbr.rel (%p480) target = $region56
        $region55: #{net_forward.1} parent=51 // pred_region
          %483 = dma.done %s476, 16384
        $region56: #{net_forward.1} parent=51 // pred_fallthru
          _
        %s484 = sand.u32 %s38, 1
        %s485 = scalar_lea.sflag [#allocation8], %s484
        %s486 = sand.u32 %s109, 1
        %s487 = smul.addr %s486, 512
        %s488 = scalar_lea.vmem [#allocation7], %s487
        // Predicated region
        $region57: #{net_forward.1} parent=51 // pred_check
          %p489 = pneg %p122
        $region58: #{net_forward.1} parent=51 // pred_check_branch
          %491 = sbr.rel (%p489) target = $region60
        $region59: #{net_forward.1} parent=51 // pred_region
          %492 = dma.done %s485, 8192
        $region60: #{net_forward.1} parent=51 // pred_fallthru
          _
        %s493 = sand.u32 %s38, 1
        %s494 = scalar_lea.sflag [#allocation8], %s493
        %s495 = sand.u32 %s137, 1
        %s496 = smul.addr %s495, 4
        %s497 = scalar_lea.vmem [#allocation9], %s496
        // Predicated region
        $region61: #{net_forward.1} parent=51 // pred_check
          %p498 = pneg %p150
        $region62: #{net_forward.1} parent=51 // pred_check_branch
          %500 = sbr.rel (%p498) target = $region64
        $region63: #{net_forward.1} parent=51 // pred_region
          %501 = dma.done %s494, 64
        $region64: #{net_forward.1} parent=51 // pred_fallthru
          _
        %s502 = sand.u32 %s38, 1
        %s503 = scalar_lea.sflag [#allocation11], %s502
        %s504 = sand.u32 %s165, 1
        %s505 = smul.addr %s504, 8
        %s506 = scalar_lea.vmem [#allocation10], %s505
        // Predicated region
        $region65: #{net_forward.1} parent=51 // pred_check
          %p507 = pneg %p178
        $region66: #{net_forward.1} parent=51 // pred_check_branch
          %509 = sbr.rel (%p507) target = $region68
        $region67: #{net_forward.1} parent=51 // pred_region
          %510 = dma.done %s503, 128
        $region68: #{net_forward.1} parent=51 // pred_fallthru
          _
        %s511 = sand.u32 %s38, 1
        %s512 = scalar_lea.sflag [#allocation11], %s511
        %s513 = sand.u32 %s193, 1
        %s514 = smul.addr %s513, 8
        %s515 = scalar_lea.vmem [#allocation12], %s514
        // Predicated region
        $region69: #{net_forward.1} parent=51 // pred_check
          %p516 = pneg %p206
        $region70: #{net_forward.1} parent=51 // pred_check_branch
          %518 = sbr.rel (%p516) target = $region72
        $region71: #{net_forward.1} parent=51 // pred_region
          %519 = dma.done %s512, 128
        $region72: #{net_forward.1} parent=51 // pred_fallthru
          _
        // Predicated region
        $region73: #{net_forward.1} parent=51 // pred_check
          %p520 = pneg %p248
        $region74: #{net_forward.1} parent=51 // pred_check_branch
          %522 = sbr.rel (%p520) target = $region76
        $region75: #{net_forward.1} parent=51 // pred_region
          %523 = dma.done [#allocation14], 16
        $region76: #{net_forward.1} parent=51 // pred_fallthru
          _
        %p524 = pneg %p66
        %p525 = pneg %p63
        %s526 = sand.u32 %s81, 1
        %s527 = scalar_lea.sflag [#allocation5], %s526
        %s528 = sand.u32 %s81, 1
        %s529 = smul.addr %s528, 1024
        %s530 = scalar_lea.vmem [#allocation4], %s529
        %p531 = pneg %p94
        %p532 = pneg %p91
        %s533 = sand.u32 %s38, 1
        %s534 = scalar_lea.sflag [#allocation8], %s533
        %s535 = sand.u32 %s109, 1
        %s536 = smul.addr %s535, 512
        %s537 = scalar_lea.vmem [#allocation7], %s536
        %p538 = pneg %p122
        %p539 = pneg %p119
        %s540 = sand.u32 %s38, 1
        %s541 = scalar_lea.sflag [#allocation8], %s540
        %s542 = sand.u32 %s137, 1
        %s543 = smul.addr %s542, 4
        %s544 = scalar_lea.vmem [#allocation9], %s543
        %p545 = pneg %p150
        %p546 = pneg %p147
        %s547 = sand.u32 %s38, 1
        %s548 = scalar_lea.sflag [#allocation11], %s547
        %s549 = sand.u32 %s165, 1
        %s550 = smul.addr %s549, 8
        %s551 = scalar_lea.vmem [#allocation10], %s550
        %p552 = pneg %p178
        %p553 = pneg %p175
        %s554 = sand.u32 %s38, 1
        %s555 = scalar_lea.sflag [#allocation11], %s554
        %s556 = sand.u32 %s193, 1
        %s557 = smul.addr %s556, 8
        %s558 = scalar_lea.vmem [#allocation12], %s557
        %p559 = pneg %p206
        %p560 = pneg %p203
        %p561 = pneg %p227
        %p562 = pneg %p224
        %p563 = pneg %p248
        %p564 = pneg %p245
        %p565 = pneg %p276
        %p566 = pneg %p273
        %s567 = sand.u32 %s263, 1
        %s568 = scalar_lea.sflag [#allocation6], %s567
        %s569 = sand.u32 %s263, 1
        %s570 = smul.addr %s569, 8
        %s571 = scalar_lea.vmem [#allocation15], %s570
        %p572 = pneg %p304
        %p573 = pneg %p301
        %s574 = sand.u32 %s38, 1
        %s575 = scalar_lea.sflag [#allocation17], %s574
        %s576 = sand.u32 %s291, 1
        %s577 = smul.addr %s576, 8
        %s578 = scalar_lea.vmem [#allocation16], %s577
        %p579 = pneg %p325
        %p580 = pneg %p322
        %p581 = scmp.eq.s32.totalorder %s42, 0
        %p582 = scmp.eq.s32.totalorder %s43, 0
        %p583 = pnand %p581, %p582
        %p584 = pneg %p583
        // Predicated region
        $region77: #{net_forward.1} parent=51 // pred_check
          _
        $region78: #{net_forward.1} parent=51 // pred_check_branch
          %586 = sbr.rel (%p583) target = $region80
        $region79: #{net_forward.1} parent=51 // pred_region
          %v587 = vld [vmem:[%s0] sm:$0xff]
          %v588 = vld [vmem:[%s0 + $0x8] sm:$0xff]
          %v589 = vld [vmem:[%s0 + $0x10] sm:$0xff]
          %v590 = vld [vmem:[%s0 + $0x18] sm:$0xff]
          %v591 = vld [vmem:[%s0 + $0x20] sm:$0xff]
          %v592 = vld [vmem:[%s0 + $0x28] sm:$0xff]
          %v593 = vld [vmem:[%s0 + $0x30] sm:$0xff]
          %v594 = vld [vmem:[%s0 + $0x38] sm:$0xff]
          %s595 = scalar_lea.vmem [#allocation2], 128
          %596 = vst [vmem:[%s595] sm:$0xff] %v587
          %597 = vst [vmem:[%s595 + $0x8] sm:$0xff] %v588
          %598 = vst [vmem:[%s595 + $0x10] sm:$0xff] %v589
          %599 = vst [vmem:[%s595 + $0x18] sm:$0xff] %v590
          %600 = vst [vmem:[%s595 + $0x20] sm:$0xff] %v591
          %601 = vst [vmem:[%s595 + $0x28] sm:$0xff] %v592
          %602 = vst [vmem:[%s595 + $0x30] sm:$0xff] %v593
          %603 = vst [vmem:[%s595 + $0x38] sm:$0xff] %v594
          %s604 = scalar_lea.vmem [#allocation2], 192
          %605 = vst [vmem:[%s604] sm:$0xff] 0.0
          %606 = vst [vmem:[%s604 + $0x8] sm:$0xff] 0.0
          %607 = vst [vmem:[%s604 + $0x10] sm:$0xff] 0.0
          %608 = vst [vmem:[%s604 + $0x18] sm:$0xff] 0.0
          %609 = vst [vmem:[%s604 + $0x20] sm:$0xff] 0.0
          %610 = vst [vmem:[%s604 + $0x28] sm:$0xff] 0.0
          %611 = vst [vmem:[%s604 + $0x30] sm:$0xff] 0.0
          %612 = vst [vmem:[%s604 + $0x38] sm:$0xff] 0.0
        $region80: #{net_forward.1} parent=51 // pred_fallthru
          _
        %s613 = sadd.s32 %s42, 1
        %p614 = scmp.lt.s32.totalorder %s613, 0
        %s615 = ssub.s32 0, %s613
        %s616 = scalar_select %p614, %s615, %s613
        %s617 = sand.u32 %s616, 1
        %s618 = ssub.s32 0, %s617
        %s619 = scalar_select %p614, %s618, %s617
        %p620 = scmp.ne.s32.totalorder %s619, 0
        %p621 = scmp.lt.s32.totalorder %s619, 0
        %p622 = pnand %p621, %p620
        %p623 = pneg %p622
        %s624 = sadd.s32 %s619, 2
        %s625 = scalar_select %p623, %s624, %s619
        %s626 = smul.u32 %s625, 2
        %p627 = scmp.lt.s32.totalorder %s42, 0
        %s628 = ssub.s32 0, %s42
        %s629 = scalar_select %p627, %s628, %s42
        %s630 = sand.u32 %s629, 1
        %s631 = ssub.s32 0, %s630
        %s632 = scalar_select %p627, %s631, %s630
        %p633 = scmp.ne.s32.totalorder %s632, 0
        %p634 = scmp.lt.s32.totalorder %s632, 0
        %p635 = pnand %p634, %p633
        %p636 = pneg %p635
        %s637 = sadd.s32 %s632, 2
        %s638 = scalar_select %p636, %s637, %s632
        %s639 = smul.u32 %s638, 2
        %s640 = smul.u32 %s626, 64
        %s641 = scalar_lea.vmem [#allocation2], %s640
        %v642 = vld [vmem:[%s641] sm:$0xff]
        %v643 = vld [vmem:[%s641 + $0x8] sm:$0xff]
        %v644 = vld [vmem:[%s641 + $0x10] sm:$0xff]
        %v645 = vld [vmem:[%s641 + $0x18] sm:$0xff]
        %v646 = vld [vmem:[%s641 + $0x20] sm:$0xff]
        %v647 = vld [vmem:[%s641 + $0x28] sm:$0xff]
        %v648 = vld [vmem:[%s641 + $0x30] sm:$0xff]
        %v649 = vld [vmem:[%s641 + $0x38] sm:$0xff]
        %v650 = vld [vmem:[%s479] sm:$0xff]
        %v651 = vld [vmem:[%s479 + $0x8] sm:$0xff]
        %v652 = vld [vmem:[%s479 + $0x10] sm:$0xff]
        %v653 = vld [vmem:[%s479 + $0x18] sm:$0xff]
        %v654 = vld [vmem:[%s479 + $0x20] sm:$0xff]
        %v655 = vld [vmem:[%s479 + $0x28] sm:$0xff]
        %v656 = vld [vmem:[%s479 + $0x30] sm:$0xff]
        %v657 = vld [vmem:[%s479 + $0x38] sm:$0xff]
        %v658 = vld [vmem:[%s479 + $0x40] sm:$0xff]
        %v659 = vld [vmem:[%s479 + $0x48] sm:$0xff]
        %v660 = vld [vmem:[%s479 + $0x50] sm:$0xff]
        %v661 = vld [vmem:[%s479 + $0x58] sm:$0xff]
        %v662 = vld [vmem:[%s479 + $0x60] sm:$0xff]
        %v663 = vld [vmem:[%s479 + $0x68] sm:$0xff]
        %v664 = vld [vmem:[%s479 + $0x70] sm:$0xff]
        %v665 = vld [vmem:[%s479 + $0x78] sm:$0xff]
        %v666 = vld [vmem:[%s479 + $0x80] sm:$0xff]
        %v667 = vld [vmem:[%s479 + $0x88] sm:$0xff]
        %v668 = vld [vmem:[%s479 + $0x90] sm:$0xff]
        %v669 = vld [vmem:[%s479 + $0x98] sm:$0xff]
        %v670 = vld [vmem:[%s479 + $0xa0] sm:$0xff]
        %v671 = vld [vmem:[%s479 + $0xa8] sm:$0xff]
        %v672 = vld [vmem:[%s479 + $0xb0] sm:$0xff]
        %v673 = vld [vmem:[%s479 + $0xb8] sm:$0xff]
        %v674 = vld [vmem:[%s479 + $0xc0] sm:$0xff]
        %v675 = vld [vmem:[%s479 + $0xc8] sm:$0xff]
        %v676 = vld [vmem:[%s479 + $0xd0] sm:$0xff]
        %v677 = vld [vmem:[%s479 + $0xd8] sm:$0xff]
        %v678 = vld [vmem:[%s479 + $0xe0] sm:$0xff]
        %v679 = vld [vmem:[%s479 + $0xe8] sm:$0xff]
        %v680 = vld [vmem:[%s479 + $0xf0] sm:$0xff]
        %v681 = vld [vmem:[%s479 + $0xf8] sm:$0xff]
        %v682 = vld [vmem:[%s479 + $0x100] sm:$0xff]
        %v683 = vld [vmem:[%s479 + $0x108] sm:$0xff]
        %v684 = vld [vmem:[%s479 + $0x110] sm:$0xff]
        %v685 = vld [vmem:[%s479 + $0x118] sm:$0xff]
        %v686 = vld [vmem:[%s479 + $0x120] sm:$0xff]
        %v687 = vld [vmem:[%s479 + $0x128] sm:$0xff]
        %v688 = vld [vmem:[%s479 + $0x130] sm:$0xff]
        %v689 = vld [vmem:[%s479 + $0x138] sm:$0xff]
        %v690 = vld [vmem:[%s479 + $0x140] sm:$0xff]
        %v691 = vld [vmem:[%s479 + $0x148] sm:$0xff]
        %v692 = vld [vmem:[%s479 + $0x150] sm:$0xff]
        %v693 = vld [vmem:[%s479 + $0x158] sm:$0xff]
        %v694 = vld [vmem:[%s479 + $0x160] sm:$0xff]
        %v695 = vld [vmem:[%s479 + $0x168] sm:$0xff]
        %v696 = vld [vmem:[%s479 + $0x170] sm:$0xff]
        %v697 = vld [vmem:[%s479 + $0x178] sm:$0xff]
        %v698 = vld [vmem:[%s479 + $0x180] sm:$0xff]
        %v699 = vld [vmem:[%s479 + $0x188] sm:$0xff]
        %v700 = vld [vmem:[%s479 + $0x190] sm:$0xff]
        %v701 = vld [vmem:[%s479 + $0x198] sm:$0xff]
        %v702 = vld [vmem:[%s479 + $0x1a0] sm:$0xff]
        %v703 = vld [vmem:[%s479 + $0x1a8] sm:$0xff]
        %v704 = vld [vmem:[%s479 + $0x1b0] sm:$0xff]
        %v705 = vld [vmem:[%s479 + $0x1b8] sm:$0xff]
        %v706 = vld [vmem:[%s479 + $0x1c0] sm:$0xff]
        %v707 = vld [vmem:[%s479 + $0x1c8] sm:$0xff]
        %v708 = vld [vmem:[%s479 + $0x1d0] sm:$0xff]
        %v709 = vld [vmem:[%s479 + $0x1d8] sm:$0xff]
        %v710 = vld [vmem:[%s479 + $0x1e0] sm:$0xff]
        %v711 = vld [vmem:[%s479 + $0x1e8] sm:$0xff]
        %v712 = vld [vmem:[%s479 + $0x1f0] sm:$0xff]
        %v713 = vld [vmem:[%s479 + $0x1f8] sm:$0xff]
        %s714 = sadd.s32 %s626, 1
        %s715 = smul.u32 %s714, 64
        %s716 = scalar_lea.vmem [#allocation2], %s715
        %v717 = vld [vmem:[%s716] sm:$0xff]
        %v718 = vld [vmem:[%s716 + $0x8] sm:$0xff]
        %v719 = vld [vmem:[%s716 + $0x10] sm:$0xff]
        %v720 = vld [vmem:[%s716 + $0x18] sm:$0xff]
        %v721 = vld [vmem:[%s716 + $0x20] sm:$0xff]
        %v722 = vld [vmem:[%s716 + $0x28] sm:$0xff]
        %v723 = vld [vmem:[%s716 + $0x30] sm:$0xff]
        %v724 = vld [vmem:[%s716 + $0x38] sm:$0xff]
        %v725 = vld [vmem:[%s479 + $0x200] sm:$0xff]
        %v726 = vld [vmem:[%s479 + $0x208] sm:$0xff]
        %v727 = vld [vmem:[%s479 + $0x210] sm:$0xff]
        %v728 = vld [vmem:[%s479 + $0x218] sm:$0xff]
        %v729 = vld [vmem:[%s479 + $0x220] sm:$0xff]
        %v730 = vld [vmem:[%s479 + $0x228] sm:$0xff]
        %v731 = vld [vmem:[%s479 + $0x230] sm:$0xff]
        %v732 = vld [vmem:[%s479 + $0x238] sm:$0xff]
        %v733 = vld [vmem:[%s479 + $0x240] sm:$0xff]
        %v734 = vld [vmem:[%s479 + $0x248] sm:$0xff]
        %v735 = vld [vmem:[%s479 + $0x250] sm:$0xff]
        %v736 = vld [vmem:[%s479 + $0x258] sm:$0xff]
        %v737 = vld [vmem:[%s479 + $0x260] sm:$0xff]
        %v738 = vld [vmem:[%s479 + $0x268] sm:$0xff]
        %v739 = vld [vmem:[%s479 + $0x270] sm:$0xff]
        %v740 = vld [vmem:[%s479 + $0x278] sm:$0xff]
        %v741 = vld [vmem:[%s479 + $0x280] sm:$0xff]
        %v742 = vld [vmem:[%s479 + $0x288] sm:$0xff]
        %v743 = vld [vmem:[%s479 + $0x290] sm:$0xff]
        %v744 = vld [vmem:[%s479 + $0x298] sm:$0xff]
        %v745 = vld [vmem:[%s479 + $0x2a0] sm:$0xff]
        %v746 = vld [vmem:[%s479 + $0x2a8] sm:$0xff]
        %v747 = vld [vmem:[%s479 + $0x2b0] sm:$0xff]
        %v748 = vld [vmem:[%s479 + $0x2b8] sm:$0xff]
        %v749 = vld [vmem:[%s479 + $0x2c0] sm:$0xff]
        %v750 = vld [vmem:[%s479 + $0x2c8] sm:$0xff]
        %v751 = vld [vmem:[%s479 + $0x2d0] sm:$0xff]
        %v752 = vld [vmem:[%s479 + $0x2d8] sm:$0xff]
        %v753 = vld [vmem:[%s479 + $0x2e0] sm:$0xff]
        %v754 = vld [vmem:[%s479 + $0x2e8] sm:$0xff]
        %v755 = vld [vmem:[%s479 + $0x2f0] sm:$0xff]
        %v756 = vld [vmem:[%s479 + $0x2f8] sm:$0xff]
        %v757 = vld [vmem:[%s479 + $0x300] sm:$0xff]
        %v758 = vld [vmem:[%s479 + $0x308] sm:$0xff]
        %v759 = vld [vmem:[%s479 + $0x310] sm:$0xff]
        %v760 = vld [vmem:[%s479 + $0x318] sm:$0xff]
        %v761 = vld [vmem:[%s479 + $0x320] sm:$0xff]
        %v762 = vld [vmem:[%s479 + $0x328] sm:$0xff]
        %v763 = vld [vmem:[%s479 + $0x330] sm:$0xff]
        %v764 = vld [vmem:[%s479 + $0x338] sm:$0xff]
        %v765 = vld [vmem:[%s479 + $0x340] sm:$0xff]
        %v766 = vld [vmem:[%s479 + $0x348] sm:$0xff]
        %v767 = vld [vmem:[%s479 + $0x350] sm:$0xff]
        %v768 = vld [vmem:[%s479 + $0x358] sm:$0xff]
        %v769 = vld [vmem:[%s479 + $0x360] sm:$0xff]
        %v770 = vld [vmem:[%s479 + $0x368] sm:$0xff]
        %v771 = vld [vmem:[%s479 + $0x370] sm:$0xff]
        %v772 = vld [vmem:[%s479 + $0x378] sm:$0xff]
        %v773 = vld [vmem:[%s479 + $0x380] sm:$0xff]
        %v774 = vld [vmem:[%s479 + $0x388] sm:$0xff]
        %v775 = vld [vmem:[%s479 + $0x390] sm:$0xff]
        %v776 = vld [vmem:[%s479 + $0x398] sm:$0xff]
        %v777 = vld [vmem:[%s479 + $0x3a0] sm:$0xff]
        %v778 = vld [vmem:[%s479 + $0x3a8] sm:$0xff]
        %v779 = vld [vmem:[%s479 + $0x3b0] sm:$0xff]
        %v780 = vld [vmem:[%s479 + $0x3b8] sm:$0xff]
        %v781 = vld [vmem:[%s479 + $0x3c0] sm:$0xff]
        %v782 = vld [vmem:[%s479 + $0x3c8] sm:$0xff]
        %v783 = vld [vmem:[%s479 + $0x3d0] sm:$0xff]
        %v784 = vld [vmem:[%s479 + $0x3d8] sm:$0xff]
        %v785 = vld [vmem:[%s479 + $0x3e0] sm:$0xff]
        %v786 = vld [vmem:[%s479 + $0x3e8] sm:$0xff]
        %v787 = vld [vmem:[%s479 + $0x3f0] sm:$0xff]
        %v788 = vld [vmem:[%s479 + $0x3f8] sm:$0xff]
        %789 = vmatprep.subr.mxu0 %v726
        %790 = vmatpush1.msra.mxu0 %v725
        %791 = vmatprep.subr.mxu0 %v730
        %792 = vmatpush1.msra.mxu0 %v729
        %793 = vmatprep.subr.mxu0 %v734
        %794 = vmatpush1.msra.mxu0 %v733
        %795 = vmatprep.subr.mxu0 %v738
        %796 = vmatpush1.msra.mxu0 %v737
        %797 = vmatprep.subr.mxu0 %v742
        %798 = vmatpush1.msra.mxu0 %v741
        %799 = vmatprep.subr.mxu0 %v746
        %800 = vmatpush1.msra.mxu0 %v745
        %801 = vmatprep.subr.mxu0 %v750
        %802 = vmatpush1.msra.mxu0 %v749
        %803 = vmatprep.subr.mxu0 %v754
        %804 = vmatpush1.msra.mxu0 %v753
        %805 = vmatprep.subr.mxu0 %v758
        %806 = vmatpush1.msra.mxu0 %v757
        %807 = vmatprep.subr.mxu0 %v762
        %808 = vmatpush1.msra.mxu0 %v761
        %809 = vmatprep.subr.mxu0 %v766
        %810 = vmatpush1.msra.mxu0 %v765
        %811 = vmatprep.subr.mxu0 %v770
        %812 = vmatpush1.msra.mxu0 %v769
        %813 = vmatprep.subr.mxu0 %v774
        %814 = vmatpush1.msra.mxu0 %v773
        %815 = vmatprep.subr.mxu0 %v778
        %816 = vmatpush1.msra.mxu0 %v777
        %817 = vmatprep.subr.mxu0 %v782
        %818 = vmatpush1.msra.mxu0 %v781
        %819 = vmatprep.subr.mxu0 %v786
        %820 = vmatpush1.msra.mxu0 %v785
        %821 = vmatprep.subr.mxu0 0.0
        %822 = vmatpush1.msra.mxu0 0.0
        %823 = vmatprep.subr.mxu0 0.0
        %824 = vmatpush1.msra.mxu0 0.0
        %825 = vmatprep.subr.mxu0 0.0
        %826 = vmatpush1.msra.mxu0 0.0
        %827 = vmatprep.subr.mxu0 0.0
        %828 = vmatpush1.msra.mxu0 0.0
        %829 = vmatprep.subr.mxu0 0.0
        %830 = vmatpush1.msra.mxu0 0.0
        %831 = vmatprep.subr.mxu0 0.0
        %832 = vmatpush1.msra.mxu0 0.0
        %833 = vmatprep.subr.mxu0 0.0
        %834 = vmatpush1.msra.mxu0 0.0
        %835 = vmatprep.subr.mxu0 0.0
        %836 = vmatpush1.msra.mxu0 0.0
        %837 = vmatprep.subr.mxu0 0.0
        %838 = vmatpush1.msra.mxu0 0.0
        %839 = vmatprep.subr.mxu0 0.0
        %840 = vmatpush1.msra.mxu0 0.0
        %841 = vmatprep.subr.mxu0 0.0
        %842 = vmatpush1.msra.mxu0 0.0
        %843 = vmatprep.subr.mxu0 0.0
        %844 = vmatpush1.msra.mxu0 0.0
        %845 = vmatprep.subr.mxu0 0.0
        %846 = vmatpush1.msra.mxu0 0.0
        %847 = vmatprep.subr.mxu0 0.0
        %848 = vmatpush1.msra.mxu0 0.0
        %849 = vmatprep.subr.mxu0 0.0
        %850 = vmatpush1.msra.mxu0 0.0
        %851 = vmatprep.subr.mxu0 0.0
        %852 = vmatpush1.msra.mxu0 0.0
        %853 = vmatprep.mubr.f32.mxu0 0.0
        %854 = vmatmul.mubr.f32.gmra.mrb[0].mxu0 %v717
        %v855 = vpop.f32.mrb[0].mxu0
        %v856 = vadd.f32 0.0, %v855
        %v857 = vpop.f32.mrb[0].mxu0
        %v858 = vadd.f32 0.0, %v857
        %859 = vmatprep.mubr.f32.mxu0 0.0
        %860 = vmatmul.mubr.f32.gmra.mrb[0].mxu0 %v718
        %v861 = vpop.f32.mrb[0].mxu0
        %v862 = vadd.f32 0.0, %v861
        %v863 = vpop.f32.mrb[0].mxu0
        %v864 = vadd.f32 0.0, %v863
        %865 = vmatprep.mubr.f32.mxu0 0.0
        %866 = vmatmul.mubr.f32.gmra.mrb[0].mxu0 %v719
        %v867 = vpop.f32.mrb[0].mxu0
        %v868 = vadd.f32 0.0, %v867
        %v869 = vpop.f32.mrb[0].mxu0
        %v870 = vadd.f32 0.0, %v869
        %871 = vmatprep.mubr.f32.mxu0 0.0
        %872 = vmatmul.mubr.f32.gmra.mrb[0].mxu0 %v720
        %v873 = vpop.f32.mrb[0].mxu0
        %v874 = vadd.f32 0.0, %v873
        %v875 = vpop.f32.mrb[0].mxu0
        %v876 = vadd.f32 0.0, %v875
        %877 = vmatprep.mubr.f32.mxu0 0.0
        %878 = vmatmul.mubr.f32.gmra.mrb[0].mxu0 %v721
        %v879 = vpop.f32.mrb[0].mxu0
        %v880 = vadd.f32 0.0, %v879
        %v881 = vpop.f32.mrb[0].mxu0
        %v882 = vadd.f32 0.0, %v881
        %883 = vmatprep.mubr.f32.mxu0 0.0
        %884 = vmatmul.mubr.f32.gmra.mrb[0].mxu0 %v722
        %v885 = vpop.f32.mrb[0].mxu0
        %v886 = vadd.f32 0.0, %v885
        %v887 = vpop.f32.mrb[0].mxu0
        %v888 = vadd.f32 0.0, %v887
        %889 = vmatprep.mubr.f32.mxu0 0.0
        %890 = vmatmul.mubr.f32.gmra.mrb[0].mxu0 %v723
        %v891 = vpop.f32.mrb[0].mxu0
        %v892 = vadd.f32 0.0, %v891
        %v893 = vpop.f32.mrb[0].mxu0
        %v894 = vadd.f32 0.0, %v893
        %895 = vmatprep.mubr.f32.mxu0 0.0
        %896 = vmatmul.mubr.f32.gmra.mrb[0].mxu0 %v724
        %v897 = vpop.f32.mrb[0].mxu0
        %v898 = vadd.f32 0.0, %v897
        %v899 = vpop.f32.mrb[0].mxu0
        %v900 = vadd.f32 0.0, %v899
        %901 = vdwg.mxu0
        %902 = vmatprep.subr.mxu0 %v728
        %903 = vmatpush1.msra.mxu0 %v727
        %904 = vmatprep.subr.mxu0 %v732
        %905 = vmatpush1.msra.mxu0 %v731
        %906 = vmatprep.subr.mxu0 %v736
        %907 = vmatpush1.msra.mxu0 %v735
        %908 = vmatprep.subr.mxu0 %v740
        %909 = vmatpush1.msra.mxu0 %v739
        %910 = vmatprep.subr.mxu0 %v744
        %911 = vmatpush1.msra.mxu0 %v743
        %912 = vmatprep.subr.mxu0 %v748
        %913 = vmatpush1.msra.mxu0 %v747
        %914 = vmatprep.subr.mxu0 %v752
        %915 = vmatpush1.msra.mxu0 %v751
        %916 = vmatprep.subr.mxu0 %v756
        %917 = vmatpush1.msra.mxu0 %v755
        %918 = vmatprep.subr.mxu0 %v760
        %919 = vmatpush1.msra.mxu0 %v759
        %920 = vmatprep.subr.mxu0 %v764
        %921 = vmatpush1.msra.mxu0 %v763
        %922 = vmatprep.subr.mxu0 %v768
        %923 = vmatpush1.msra.mxu0 %v767
        %924 = vmatprep.subr.mxu0 %v772
        %925 = vmatpush1.msra.mxu0 %v771
        %926 = vmatprep.subr.mxu0 %v776
        %927 = vmatpush1.msra.mxu0 %v775
        %928 = vmatprep.subr.mxu0 %v780
        %929 = vmatpush1.msra.mxu0 %v779
        %930 = vmatprep.subr.mxu0 %v784
        %931 = vmatpush1.msra.mxu0 %v783
        %932 = vmatprep.subr.mxu0 %v788
        %933 = vmatpush1.msra.mxu0 %v787
        %934 = vmatprep.subr.mxu0 0.0
        %935 = vmatpush1.msra.mxu0 0.0
        %936 = vmatprep.subr.mxu0 0.0
        %937 = vmatpush1.msra.mxu0 0.0
        %938 = vmatprep.subr.mxu0 0.0
        %939 = vmatpush1.msra.mxu0 0.0
        %940 = vmatprep.subr.mxu0 0.0
        %941 = vmatpush1.msra.mxu0 0.0
        %942 = vmatprep.subr.mxu0 0.0
        %943 = vmatpush1.msra.mxu0 0.0
        %944 = vmatprep.subr.mxu0 0.0
        %945 = vmatpush1.msra.mxu0 0.0
        %946 = vmatprep.subr.mxu0 0.0
        %947 = vmatpush1.msra.mxu0 0.0
        %948 = vmatprep.subr.mxu0 0.0
        %949 = vmatpush1.msra.mxu0 0.0
        %950 = vmatprep.subr.mxu0 0.0
        %951 = vmatpush1.msra.mxu0 0.0
        %952 = vmatprep.subr.mxu0 0.0
        %953 = vmatpush1.msra.mxu0 0.0
        %954 = vmatprep.subr.mxu0 0.0
        %955 = vmatpush1.msra.mxu0 0.0
        %956 = vmatprep.subr.mxu0 0.0
        %957 = vmatpush1.msra.mxu0 0.0
        %958 = vmatprep.subr.mxu0 0.0
        %959 = vmatpush1.msra.mxu0 0.0
        %960 = vmatprep.subr.mxu0 0.0
        %961 = vmatpush1.msra.mxu0 0.0
        %962 = vmatprep.subr.mxu0 0.0
        %963 = vmatpush1.msra.mxu0 0.0
        %964 = vmatprep.subr.mxu0 0.0
        %965 = vmatpush1.msra.mxu0 0.0
        %966 = vmatprep.mubr.f32.mxu0 0.0
        %967 = vmatmul.mubr.f32.gmra.mrb[0].mxu0 %v717
        %v968 = vpop.f32.mrb[0].mxu0
        %v969 = vadd.f32 0.0, %v968
        %v970 = vpop.f32.mrb[0].mxu0
        %v971 = vadd.f32 0.0, %v970
        %972 = vmatprep.mubr.f32.mxu0 0.0
        %973 = vmatmul.mubr.f32.gmra.mrb[0].mxu0 %v718
        %v974 = vpop.f32.mrb[0].mxu0
        %v975 = vadd.f32 0.0, %v974
        %v976 = vpop.f32.mrb[0].mxu0
        %v977 = vadd.f32 0.0, %v976
        %978 = vmatprep.mubr.f32.mxu0 0.0
        %979 = vmatmul.mubr.f32.gmra.mrb[0].mxu0 %v719
        %v980 = vpop.f32.mrb[0].mxu0
        %v981 = vadd.f32 0.0, %v980
        %v982 = vpop.f32.mrb[0].mxu0
        %v983 = vadd.f32 0.0, %v982
        %984 = vmatprep.mubr.f32.mxu0 0.0
        %985 = vmatmul.mubr.f32.gmra.mrb[0].mxu0 %v720
        %v986 = vpop.f32.mrb[0].mxu0
        %v987 = vadd.f32 0.0, %v986
        %v988 = vpop.f32.mrb[0].mxu0
        %v989 = vadd.f32 0.0, %v988
        %990 = vmatprep.mubr.f32.mxu0 0.0
        %991 = vmatmul.mubr.f32.gmra.mrb[0].mxu0 %v721
        %v992 = vpop.f32.mrb[0].mxu0
        %v993 = vadd.f32 0.0, %v992
        %v994 = vpop.f32.mrb[0].mxu0
        %v995 = vadd.f32 0.0, %v994
        %996 = vmatprep.mubr.f32.mxu0 0.0
        %997 = vmatmul.mubr.f32.gmra.mrb[0].mxu0 %v722
        %v998 = vpop.f32.mrb[0].mxu0
        %v999 = vadd.f32 0.0, %v998
        %v1000 = vpop.f32.mrb[0].mxu0
        %v1001 = vadd.f32 0.0, %v1000
        %1002 = vmatprep.mubr.f32.mxu0 0.0
        %1003 = vmatmul.mubr.f32.gmra.mrb[0].mxu0 %v723
        %v1004 = vpop.f32.mrb[0].mxu0
        %v1005 = vadd.f32 0.0, %v1004
        %v1006 = vpop.f32.mrb[0].mxu0
        %v1007 = vadd.f32 0.0, %v1006
        %1008 = vmatprep.mubr.f32.mxu0 0.0
        %1009 = vmatmul.mubr.f32.gmra.mrb[0].mxu0 %v724
        %v1010 = vpop.f32.mrb[0].mxu0
        %v1011 = vadd.f32 0.0, %v1010
        %v1012 = vpop.f32.mrb[0].mxu0
        %v1013 = vadd.f32 0.0, %v1012
        %1014 = vdwg.mxu0
        %1015 = vmatprep.subr.mxu0 %v651
        %1016 = vmatpush1.msra.mxu0 %v650
        %1017 = vmatprep.subr.mxu0 %v655
        %1018 = vmatpush1.msra.mxu0 %v654
        %1019 = vmatprep.subr.mxu0 %v659
        %1020 = vmatpush1.msra.mxu0 %v658
        %1021 = vmatprep.subr.mxu0 %v663
        %1022 = vmatpush1.msra.mxu0 %v662
        %1023 = vmatprep.subr.mxu0 %v667
        %1024 = vmatpush1.msra.mxu0 %v666
        %1025 = vmatprep.subr.mxu0 %v671
        %1026 = vmatpush1.msra.mxu0 %v670
        %1027 = vmatprep.subr.mxu0 %v675
        %1028 = vmatpush1.msra.mxu0 %v674
        %1029 = vmatprep.subr.mxu0 %v679
        %1030 = vmatpush1.msra.mxu0 %v678
        %1031 = vmatprep.subr.mxu0 %v683
        %1032 = vmatpush1.msra.mxu0 %v682
        %1033 = vmatprep.subr.mxu0 %v687
        %1034 = vmatpush1.msra.mxu0 %v686
        %1035 = vmatprep.subr.mxu0 %v691
        %1036 = vmatpush1.msra.mxu0 %v690
        %1037 = vmatprep.subr.mxu0 %v695
        %1038 = vmatpush1.msra.mxu0 %v694
        %1039 = vmatprep.subr.mxu0 %v699
        %1040 = vmatpush1.msra.mxu0 %v698
        %1041 = vmatprep.subr.mxu0 %v703
        %1042 = vmatpush1.msra.mxu0 %v702
        %1043 = vmatprep.subr.mxu0 %v707
        %1044 = vmatpush1.msra.mxu0 %v706
        %1045 = vmatprep.subr.mxu0 %v711
        %1046 = vmatpush1.msra.mxu0 %v710
        %1047 = vmatprep.subr.mxu0 0.0
        %1048 = vmatpush1.msra.mxu0 0.0
        %1049 = vmatprep.subr.mxu0 0.0
        %1050 = vmatpush1.msra.mxu0 0.0
        %1051 = vmatprep.subr.mxu0 0.0
        %1052 = vmatpush1.msra.mxu0 0.0
        %1053 = vmatprep.subr.mxu0 0.0
        %1054 = vmatpush1.msra.mxu0 0.0
        %1055 = vmatprep.subr.mxu0 0.0
        %1056 = vmatpush1.msra.mxu0 0.0
        %1057 = vmatprep.subr.mxu0 0.0
        %1058 = vmatpush1.msra.mxu0 0.0
        %1059 = vmatprep.subr.mxu0 0.0
        %1060 = vmatpush1.msra.mxu0 0.0
        %1061 = vmatprep.subr.mxu0 0.0
        %1062 = vmatpush1.msra.mxu0 0.0
        %1063 = vmatprep.subr.mxu0 0.0
        %1064 = vmatpush1.msra.mxu0 0.0
        %1065 = vmatprep.subr.mxu0 0.0
        %1066 = vmatpush1.msra.mxu0 0.0
        %1067 = vmatprep.subr.mxu0 0.0
        %1068 = vmatpush1.msra.mxu0 0.0
        %1069 = vmatprep.subr.mxu0 0.0
        %1070 = vmatpush1.msra.mxu0 0.0
        %1071 = vmatprep.subr.mxu0 0.0
        %1072 = vmatpush1.msra.mxu0 0.0
        %1073 = vmatprep.subr.mxu0 0.0
        %1074 = vmatpush1.msra.mxu0 0.0
        %1075 = vmatprep.subr.mxu0 0.0
        %1076 = vmatpush1.msra.mxu0 0.0
        %1077 = vmatprep.subr.mxu0 0.0
        %1078 = vmatpush1.msra.mxu0 0.0
        %1079 = vmatprep.mubr.f32.mxu0 0.0
        %1080 = vmatmul.mubr.f32.gmra.mrb[0].mxu0 %v642
        %v1081 = vpop.f32.mrb[0].mxu0
        %v1082 = vadd.f32 %v856, %v1081
        %v1083 = vpop.f32.mrb[0].mxu0
        %v1084 = vadd.f32 %v858, %v1083
        %1085 = vmatprep.mubr.f32.mxu0 0.0
        %1086 = vmatmul.mubr.f32.gmra.mrb[0].mxu0 %v643
        %v1087 = vpop.f32.mrb[0].mxu0
        %v1088 = vadd.f32 %v862, %v1087
        %v1089 = vpop.f32.mrb[0].mxu0
        %v1090 = vadd.f32 %v864, %v1089
        %1091 = vmatprep.mubr.f32.mxu0 0.0
        %1092 = vmatmul.mubr.f32.gmra.mrb[0].mxu0 %v644
        %v1093 = vpop.f32.mrb[0].mxu0
        %v1094 = vadd.f32 %v868, %v1093
        %v1095 = vpop.f32.mrb[0].mxu0
        %v1096 = vadd.f32 %v870, %v1095
        %1097 = vmatprep.mubr.f32.mxu0 0.0
        %1098 = vmatmul.mubr.f32.gmra.mrb[0].mxu0 %v645
        %v1099 = vpop.f32.mrb[0].mxu0
        %v1100 = vadd.f32 %v874, %v1099
        %v1101 = vpop.f32.mrb[0].mxu0
        %v1102 = vadd.f32 %v876, %v1101
        %1103 = vmatprep.mubr.f32.mxu0 0.0
        %1104 = vmatmul.mubr.f32.gmra.mrb[0].mxu0 %v646
        %v1105 = vpop.f32.mrb[0].mxu0
        %v1106 = vadd.f32 %v880, %v1105
        %v1107 = vpop.f32.mrb[0].mxu0
        %v1108 = vadd.f32 %v882, %v1107
        %1109 = vmatprep.mubr.f32.mxu0 0.0
        %1110 = vmatmul.mubr.f32.gmra.mrb[0].mxu0 %v647
        %v1111 = vpop.f32.mrb[0].mxu0
        %v1112 = vadd.f32 %v886, %v1111
        %v1113 = vpop.f32.mrb[0].mxu0
        %v1114 = vadd.f32 %v888, %v1113
        %1115 = vmatprep.mubr.f32.mxu0 0.0
        %1116 = vmatmul.mubr.f32.gmra.mrb[0].mxu0 %v648
        %v1117 = vpop.f32.mrb[0].mxu0
        %v1118 = vadd.f32 %v892, %v1117
        %v1119 = vpop.f32.mrb[0].mxu0
        %v1120 = vadd.f32 %v894, %v1119
        %1121 = vmatprep.mubr.f32.mxu0 0.0
        %1122 = vmatmul.mubr.f32.gmra.mrb[0].mxu0 %v649
        %v1123 = vpop.f32.mrb[0].mxu0
        %v1124 = vadd.f32 %v898, %v1123
        %v1125 = vpop.f32.mrb[0].mxu0
        %v1126 = vadd.f32 %v900, %v1125
        %1127 = vdwg.mxu0
        %1128 = vmatprep.subr.mxu0 %v653
        %1129 = vmatpush1.msra.mxu0 %v652
        %1130 = vmatprep.subr.mxu0 %v657
        %1131 = vmatpush1.msra.mxu0 %v656
        %1132 = vmatprep.subr.mxu0 %v661
        %1133 = vmatpush1.msra.mxu0 %v660
        %1134 = vmatprep.subr.mxu0 %v665
        %1135 = vmatpush1.msra.mxu0 %v664
        %1136 = vmatprep.subr.mxu0 %v669
        %1137 = vmatpush1.msra.mxu0 %v668
        %1138 = vmatprep.subr.mxu0 %v673
        %1139 = vmatpush1.msra.mxu0 %v672
        %1140 = vmatprep.subr.mxu0 %v677
        %1141 = vmatpush1.msra.mxu0 %v676
        %1142 = vmatprep.subr.mxu0 %v681
        %1143 = vmatpush1.msra.mxu0 %v680
        %1144 = vmatprep.subr.mxu0 %v685
        %1145 = vmatpush1.msra.mxu0 %v684
        %1146 = vmatprep.subr.mxu0 %v689
        %1147 = vmatpush1.msra.mxu0 %v688
        %1148 = vmatprep.subr.mxu0 %v693
        %1149 = vmatpush1.msra.mxu0 %v692
        %1150 = vmatprep.subr.mxu0 %v697
        %1151 = vmatpush1.msra.mxu0 %v696
        %1152 = vmatprep.subr.mxu0 %v701
        %1153 = vmatpush1.msra.mxu0 %v700
        %1154 = vmatprep.subr.mxu0 %v705
        %1155 = vmatpush1.msra.mxu0 %v704
        %1156 = vmatprep.subr.mxu0 %v709
        %1157 = vmatpush1.msra.mxu0 %v708
        %1158 = vmatprep.subr.mxu0 %v713
        %1159 = vmatpush1.msra.mxu0 %v712
        %1160 = vmatprep.subr.mxu0 0.0
        %1161 = vmatpush1.msra.mxu0 0.0
        %1162 = vmatprep.subr.mxu0 0.0
        %1163 = vmatpush1.msra.mxu0 0.0
        %1164 = vmatprep.subr.mxu0 0.0
        %1165 = vmatpush1.msra.mxu0 0.0
        %1166 = vmatprep.subr.mxu0 0.0
        %1167 = vmatpush1.msra.mxu0 0.0
        %1168 = vmatprep.subr.mxu0 0.0
        %1169 = vmatpush1.msra.mxu0 0.0
        %1170 = vmatprep.subr.mxu0 0.0
        %1171 = vmatpush1.msra.mxu0 0.0
        %1172 = vmatprep.subr.mxu0 0.0
        %1173 = vmatpush1.msra.mxu0 0.0
        %1174 = vmatprep.subr.mxu0 0.0
        %1175 = vmatpush1.msra.mxu0 0.0
        %1176 = vmatprep.subr.mxu0 0.0
        %1177 = vmatpush1.msra.mxu0 0.0
        %1178 = vmatprep.subr.mxu0 0.0
        %1179 = vmatpush1.msra.mxu0 0.0
        %1180 = vmatprep.subr.mxu0 0.0
        %1181 = vmatpush1.msra.mxu0 0.0
        %1182 = vmatprep.subr.mxu0 0.0
        %1183 = vmatpush1.msra.mxu0 0.0
        %1184 = vmatprep.subr.mxu0 0.0
        %1185 = vmatpush1.msra.mxu0 0.0
        %1186 = vmatprep.subr.mxu0 0.0
        %1187 = vmatpush1.msra.mxu0 0.0
        %1188 = vmatprep.subr.mxu0 0.0
        %1189 = vmatpush1.msra.mxu0 0.0
        %1190 = vmatprep.subr.mxu0 0.0
        %1191 = vmatpush1.msra.mxu0 0.0
        %1192 = vmatprep.mubr.f32.mxu0 0.0
        %1193 = vmatmul.mubr.f32.gmra.mrb[0].mxu0 %v642
        %v1194 = vpop.f32.mrb[0].mxu0
        %v1195 = vadd.f32 %v969, %v1194
        %v1196 = vpop.f32.mrb[0].mxu0
        %v1197 = vadd.f32 %v971, %v1196
        %1198 = vmatprep.mubr.f32.mxu0 0.0
        %1199 = vmatmul.mubr.f32.gmra.mrb[0].mxu0 %v643
        %v1200 = vpop.f32.mrb[0].mxu0
        %v1201 = vadd.f32 %v975, %v1200
        %v1202 = vpop.f32.mrb[0].mxu0
        %v1203 = vadd.f32 %v977, %v1202
        %1204 = vmatprep.mubr.f32.mxu0 0.0
        %1205 = vmatmul.mubr.f32.gmra.mrb[0].mxu0 %v644
        %v1206 = vpop.f32.mrb[0].mxu0
        %v1207 = vadd.f32 %v981, %v1206
        %v1208 = vpop.f32.mrb[0].mxu0
        %v1209 = vadd.f32 %v983, %v1208
        %1210 = vmatprep.mubr.f32.mxu0 0.0
        %1211 = vmatmul.mubr.f32.gmra.mrb[0].mxu0 %v645
        %v1212 = vpop.f32.mrb[0].mxu0
        %v1213 = vadd.f32 %v987, %v1212
        %v1214 = vpop.f32.mrb[0].mxu0
        %v1215 = vadd.f32 %v989, %v1214
        %1216 = vmatprep.mubr.f32.mxu0 0.0
        %1217 = vmatmul.mubr.f32.gmra.mrb[0].mxu0 %v646
        %v1218 = vpop.f32.mrb[0].mxu0
        %v1219 = vadd.f32 %v993, %v1218
        %v1220 = vpop.f32.mrb[0].mxu0
        %v1221 = vadd.f32 %v995, %v1220
        %1222 = vmatprep.mubr.f32.mxu0 0.0
        %1223 = vmatmul.mubr.f32.gmra.mrb[0].mxu0 %v647
        %v1224 = vpop.f32.mrb[0].mxu0
        %v1225 = vadd.f32 %v999, %v1224
        %v1226 = vpop.f32.mrb[0].mxu0
        %v1227 = vadd.f32 %v1001, %v1226
        %1228 = vmatprep.mubr.f32.mxu0 0.0
        %1229 = vmatmul.mubr.f32.gmra.mrb[0].mxu0 %v648
        %v1230 = vpop.f32.mrb[0].mxu0
        %v1231 = vadd.f32 %v1005, %v1230
        %v1232 = vpop.f32.mrb[0].mxu0
        %v1233 = vadd.f32 %v1007, %v1232
        %1234 = vmatprep.mubr.f32.mxu0 0.0
        %1235 = vmatmul.mubr.f32.gmra.mrb[0].mxu0 %v649
        %v1236 = vpop.f32.mrb[0].mxu0
        %v1237 = vadd.f32 %v1011, %v1236
        %v1238 = vpop.f32.mrb[0].mxu0
        %v1239 = vadd.f32 %v1013, %v1238
        %1240 = vdwg.mxu0
        %v1241 = vld [vmem:[%s497] sm:$0xf]
        %v1243 = vlaneseq
        %v1244 = vshrl.u32 %v1243, 7
        %v1245 = vsub.s32 0, %v1244
        %v1246 = vrot.slane %v1241, %v1245
        %v1247 = vlaneseq
        %v1248 = vshrl.u32 %v1247, 7
        %v1249 = vsub.s32 1, %v1248
        %v1250 = vrot.slane %v1241, %v1249
        %v1251 = vlaneseq
        %v1252 = vshrl.u32 %v1251, 7
        %v1253 = vsub.s32 2, %v1252
        %v1254 = vrot.slane %v1241, %v1253
        %v1255 = vlaneseq
        %v1256 = vshrl.u32 %v1255, 7
        %v1257 = vsub.s32 3, %v1256
        %v1258 = vrot.slane %v1241, %v1257
        %v1263 = vadd.f32 %v1082, %v1246
        %v1264 = vadd.f32 %v1084, %v1250
        %v1265 = vadd.f32 %v1195, %v1254
        %v1266 = vadd.f32 %v1197, %v1258
        %v1267 = vadd.f32 %v1088, %v1246
        %v1268 = vadd.f32 %v1090, %v1250
        %v1269 = vadd.f32 %v1201, %v1254
        %v1270 = vadd.f32 %v1203, %v1258
        %v1271 = vadd.f32 %v1094, %v1246
        %v1272 = vadd.f32 %v1096, %v1250
        %v1273 = vadd.f32 %v1207, %v1254
        %v1274 = vadd.f32 %v1209, %v1258
        %v1275 = vadd.f32 %v1100, %v1246
        %v1276 = vadd.f32 %v1102, %v1250
        %v1277 = vadd.f32 %v1213, %v1254
        %v1278 = vadd.f32 %v1215, %v1258
        %v1279 = vadd.f32 %v1106, %v1246
        %v1280 = vadd.f32 %v1108, %v1250
        %v1281 = vadd.f32 %v1219, %v1254
        %v1282 = vadd.f32 %v1221, %v1258
        %v1283 = vadd.f32 %v1112, %v1246
        %v1284 = vadd.f32 %v1114, %v1250
        %v1285 = vadd.f32 %v1225, %v1254
        %v1286 = vadd.f32 %v1227, %v1258
        %v1287 = vadd.f32 %v1118, %v1246
        %v1288 = vadd.f32 %v1120, %v1250
        %v1289 = vadd.f32 %v1231, %v1254
        %v1290 = vadd.f32 %v1233, %v1258
        %v1291 = vadd.f32 %v1124, %v1246
        %v1292 = vadd.f32 %v1126, %v1250
        %v1293 = vadd.f32 %v1237, %v1254
        %v1294 = vadd.f32 %v1239, %v1258
        %1295 = vst [vmem:[#allocation3] sm:$0xff] %v1263
        %1296 = vst [vmem:[#allocation3 + $0x8] sm:$0xff] %v1264
        %1297 = vst [vmem:[#allocation3 + $0x10] sm:$0xff] %v1265
        %1298 = vst [vmem:[#allocation3 + $0x18] sm:$0xff] %v1266
        %1299 = vst [vmem:[#allocation3 + $0x20] sm:$0xff] %v1267
        %1300 = vst [vmem:[#allocation3 + $0x28] sm:$0xff] %v1268
        %1301 = vst [vmem:[#allocation3 + $0x30] sm:$0xff] %v1269
        %1302 = vst [vmem:[#allocation3 + $0x38] sm:$0xff] %v1270
        %1303 = vst [vmem:[#allocation3 + $0x40] sm:$0xff] %v1271
        %1304 = vst [vmem:[#allocation3 + $0x48] sm:$0xff] %v1272
        %1305 = vst [vmem:[#allocation3 + $0x50] sm:$0xff] %v1273
        %1306 = vst [vmem:[#allocation3 + $0x58] sm:$0xff] %v1274
        %1307 = vst [vmem:[#allocation3 + $0x60] sm:$0xff] %v1275
        %1308 = vst [vmem:[#allocation3 + $0x68] sm:$0xff] %v1276
        %1309 = vst [vmem:[#allocation3 + $0x70] sm:$0xff] %v1277
        %1310 = vst [vmem:[#allocation3 + $0x78] sm:$0xff] %v1278
        %1311 = vst [vmem:[#allocation3 + $0x80] sm:$0xff] %v1279
        %1312 = vst [vmem:[#allocation3 + $0x88] sm:$0xff] %v1280
        %1313 = vst [vmem:[#allocation3 + $0x90] sm:$0xff] %v1281
        %1314 = vst [vmem:[#allocation3 + $0x98] sm:$0xff] %v1282
        %1315 = vst [vmem:[#allocation3 + $0xa0] sm:$0xff] %v1283
        %1316 = vst [vmem:[#allocation3 + $0xa8] sm:$0xff] %v1284
        %1317 = vst [vmem:[#allocation3 + $0xb0] sm:$0xff] %v1285
        %1318 = vst [vmem:[#allocation3 + $0xb8] sm:$0xff] %v1286
        %1319 = vst [vmem:[#allocation3 + $0xc0] sm:$0xff] %v1287
        %1320 = vst [vmem:[#allocation3 + $0xc8] sm:$0xff] %v1288
        %1321 = vst [vmem:[#allocation3 + $0xd0] sm:$0xff] %v1289
        %1322 = vst [vmem:[#allocation3 + $0xd8] sm:$0xff] %v1290
        %1323 = vst [vmem:[#allocation3 + $0xe0] sm:$0xff] %v1291
        %1324 = vst [vmem:[#allocation3 + $0xe8] sm:$0xff] %v1292
        %1325 = vst [vmem:[#allocation3 + $0xf0] sm:$0xff] %v1293
        %1326 = vst [vmem:[#allocation3 + $0xf8] sm:$0xff] %v1294
        %v1327 = vld [vmem:[%s506] sm:$0xff]
        %v1328 = vld [vmem:[%s515] sm:$0xff]
        %s1329 = smul.u32 %s43, 56
        %s1330 = sshra.s32 %s1329, 3
        %s1331 = sand.u32 %s1329, 7
        %s1332 = smul.u32 %s1330, 4
        %s1333 = smul.addr %s1332, 8
        %s1334 = scalar_lea.vmem [#allocation3], %s1333
        %v1335 = vld [vmem:[%s1334] sm:$0xff]
        %v1336 = vld [vmem:[%s1334 + $0x8] sm:$0xff]
        %v1337 = vld [vmem:[%s1334 + $0x10] sm:$0xff]
        %v1338 = vld [vmem:[%s1334 + $0x18] sm:$0xff]
        %v1339 = vld [vmem:[%s488] sm:$0xff]
        %v1340 = vld [vmem:[%s488 + $0x8] sm:$0xff]
        %v1341 = vld [vmem:[%s488 + $0x10] sm:$0xff]
        %v1342 = vld [vmem:[%s488 + $0x18] sm:$0xff]
        %v1343 = vld [vmem:[%s488 + $0x20] sm:$0xff]
        %v1344 = vld [vmem:[%s488 + $0x28] sm:$0xff]
        %v1345 = vld [vmem:[%s488 + $0x30] sm:$0xff]
        %v1346 = vld [vmem:[%s488 + $0x38] sm:$0xff]
        %v1347 = vld [vmem:[%s488 + $0x40] sm:$0xff]
        %v1348 = vld [vmem:[%s488 + $0x48] sm:$0xff]
        %v1349 = vld [vmem:[%s488 + $0x50] sm:$0xff]
        %v1350 = vld [vmem:[%s488 + $0x58] sm:$0xff]
        %v1351 = vld [vmem:[%s488 + $0x60] sm:$0xff]
        %v1352 = vld [vmem:[%s488 + $0x68] sm:$0xff]
        %v1353 = vld [vmem:[%s488 + $0x70] sm:$0xff]
        %v1354 = vld [vmem:[%s488 + $0x78] sm:$0xff]
        %v1355 = vld [vmem:[%s488 + $0x80] sm:$0xff]
        %v1356 = vld [vmem:[%s488 + $0x88] sm:$0xff]
        %v1357 = vld [vmem:[%s488 + $0x90] sm:$0xff]
        %v1358 = vld [vmem:[%s488 + $0x98] sm:$0xff]
        %v1359 = vld [vmem:[%s488 + $0xa0] sm:$0xff]
        %v1360 = vld [vmem:[%s488 + $0xa8] sm:$0xff]
        %v1361 = vld [vmem:[%s488 + $0xb0] sm:$0xff]
        %v1362 = vld [vmem:[%s488 + $0xb8] sm:$0xff]
        %v1363 = vld [vmem:[%s488 + $0xc0] sm:$0xff]
        %v1364 = vld [vmem:[%s488 + $0xc8] sm:$0xff]
        %v1365 = vld [vmem:[%s488 + $0xd0] sm:$0xff]
        %v1366 = vld [vmem:[%s488 + $0xd8] sm:$0xff]
        %v1367 = vld [vmem:[%s488 + $0xe0] sm:$0xff]
        %v1368 = vld [vmem:[%s488 + $0xe8] sm:$0xff]
        %v1369 = vld [vmem:[%s488 + $0xf0] sm:$0xff]
        %v1370 = vld [vmem:[%s488 + $0xf8] sm:$0xff]
        %v1371 = vld [vmem:[%s488 + $0x100] sm:$0xff]
        %v1372 = vld [vmem:[%s488 + $0x108] sm:$0xff]
        %v1373 = vld [vmem:[%s488 + $0x110] sm:$0xff]
        %v1374 = vld [vmem:[%s488 + $0x118] sm:$0xff]
        %v1375 = vld [vmem:[%s488 + $0x120] sm:$0xff]
        %v1376 = vld [vmem:[%s488 + $0x128] sm:$0xff]
        %v1377 = vld [vmem:[%s488 + $0x130] sm:$0xff]
        %v1378 = vld [vmem:[%s488 + $0x138] sm:$0xff]
        %v1379 = vld [vmem:[%s488 + $0x140] sm:$0xff]
        %v1380 = vld [vmem:[%s488 + $0x148] sm:$0xff]
        %v1381 = vld [vmem:[%s488 + $0x150] sm:$0xff]
        %v1382 = vld [vmem:[%s488 + $0x158] sm:$0xff]
        %v1383 = vld [vmem:[%s488 + $0x160] sm:$0xff]
        %v1384 = vld [vmem:[%s488 + $0x168] sm:$0xff]
        %v1385 = vld [vmem:[%s488 + $0x170] sm:$0xff]
        %v1386 = vld [vmem:[%s488 + $0x178] sm:$0xff]
        %v1387 = vld [vmem:[%s488 + $0x180] sm:$0xff]
        %v1388 = vld [vmem:[%s488 + $0x188] sm:$0xff]
        %v1389 = vld [vmem:[%s488 + $0x190] sm:$0xff]
        %v1390 = vld [vmem:[%s488 + $0x198] sm:$0xff]
        %v1391 = vld [vmem:[%s488 + $0x1a0] sm:$0xff]
        %v1392 = vld [vmem:[%s488 + $0x1a8] sm:$0xff]
        %v1393 = vld [vmem:[%s488 + $0x1b0] sm:$0xff]
        %v1394 = vld [vmem:[%s488 + $0x1b8] sm:$0xff]
        %v1395 = vld [vmem:[%s488 + $0x1c0] sm:$0xff]
        %v1396 = vld [vmem:[%s488 + $0x1c8] sm:$0xff]
        %v1397 = vld [vmem:[%s488 + $0x1d0] sm:$0xff]
        %v1398 = vld [vmem:[%s488 + $0x1d8] sm:$0xff]
        %v1399 = vld [vmem:[%s488 + $0x1e0] sm:$0xff]
        %v1400 = vld [vmem:[%s488 + $0x1e8] sm:$0xff]
        %v1401 = vld [vmem:[%s488 + $0x1f0] sm:$0xff]
        %v1402 = vld [vmem:[%s488 + $0x1f8] sm:$0xff]
        %1403 = vmatprep.subr.mxu0 %v1340
        %1404 = vmatpush1.msra.mxu0 %v1339
        %1405 = vmatprep.subr.mxu0 %v1344
        %1406 = vmatpush1.msra.mxu0 %v1343
        %1407 = vmatprep.subr.mxu0 %v1348
        %1408 = vmatpush1.msra.mxu0 %v1347
        %1409 = vmatprep.subr.mxu0 %v1352
        %1410 = vmatpush1.msra.mxu0 %v1351
        %1411 = vmatprep.subr.mxu0 %v1356
        %1412 = vmatpush1.msra.mxu0 %v1355
        %1413 = vmatprep.subr.mxu0 %v1360
        %1414 = vmatpush1.msra.mxu0 %v1359
        %1415 = vmatprep.subr.mxu0 %v1364
        %1416 = vmatpush1.msra.mxu0 %v1363
        %1417 = vmatprep.subr.mxu0 %v1368
        %1418 = vmatpush1.msra.mxu0 %v1367
        %1419 = vmatprep.subr.mxu0 %v1372
        %1420 = vmatpush1.msra.mxu0 %v1371
        %1421 = vmatprep.subr.mxu0 %v1376
        %1422 = vmatpush1.msra.mxu0 %v1375
        %1423 = vmatprep.subr.mxu0 %v1380
        %1424 = vmatpush1.msra.mxu0 %v1379
        %1425 = vmatprep.subr.mxu0 %v1384
        %1426 = vmatpush1.msra.mxu0 %v1383
        %1427 = vmatprep.subr.mxu0 %v1388
        %1428 = vmatpush1.msra.mxu0 %v1387
        %1429 = vmatprep.subr.mxu0 %v1392
        %1430 = vmatpush1.msra.mxu0 %v1391
        %1431 = vmatprep.subr.mxu0 %v1396
        %1432 = vmatpush1.msra.mxu0 %v1395
        %1433 = vmatprep.subr.mxu0 %v1400
        %1434 = vmatpush1.msra.mxu0 %v1399
        %1435 = vmatprep.subr.mxu0 0.0
        %1436 = vmatpush1.msra.mxu0 0.0
        %1437 = vmatprep.subr.mxu0 0.0
        %1438 = vmatpush1.msra.mxu0 0.0
        %1439 = vmatprep.subr.mxu0 0.0
        %1440 = vmatpush1.msra.mxu0 0.0
        %1441 = vmatprep.subr.mxu0 0.0
        %1442 = vmatpush1.msra.mxu0 0.0
        %1443 = vmatprep.subr.mxu0 0.0
        %1444 = vmatpush1.msra.mxu0 0.0
        %1445 = vmatprep.subr.mxu0 0.0
        %1446 = vmatpush1.msra.mxu0 0.0
        %1447 = vmatprep.subr.mxu0 0.0
        %1448 = vmatpush1.msra.mxu0 0.0
        %1449 = vmatprep.subr.mxu0 0.0
        %1450 = vmatpush1.msra.mxu0 0.0
        %1451 = vmatprep.subr.mxu0 0.0
        %1452 = vmatpush1.msra.mxu0 0.0
        %1453 = vmatprep.subr.mxu0 0.0
        %1454 = vmatpush1.msra.mxu0 0.0
        %1455 = vmatprep.subr.mxu0 0.0
        %1456 = vmatpush1.msra.mxu0 0.0
        %1457 = vmatprep.subr.mxu0 0.0
        %1458 = vmatpush1.msra.mxu0 0.0
        %1459 = vmatprep.subr.mxu0 0.0
        %1460 = vmatpush1.msra.mxu0 0.0
        %1461 = vmatprep.subr.mxu0 0.0
        %1462 = vmatpush1.msra.mxu0 0.0
        %1463 = vmatprep.subr.mxu0 0.0
        %1464 = vmatpush1.msra.mxu0 0.0
        %1465 = vmatprep.subr.mxu0 0.0
        %1466 = vmatpush1.msra.mxu0 0.0
        %1467 = vmatprep.mubr.f32.mxu0 0.0
        %1468 = vmatmul.mubr.f32.gmra.mrb[0].mxu0 %v1327
        %v1469 = vpop.f32.mrb[0].mxu0
        %v1470 = vadd.f32 0.0, %v1469
        %v1471 = vpop.f32.mrb[0].mxu0
        %v1472 = vadd.f32 0.0, %v1471
        %1473 = vdwg.mxu0
        %1474 = vmatprep.subr.mxu0 %v1342
        %1475 = vmatpush1.msra.mxu0 %v1341
        %1476 = vmatprep.subr.mxu0 %v1346
        %1477 = vmatpush1.msra.mxu0 %v1345
        %1478 = vmatprep.subr.mxu0 %v1350
        %1479 = vmatpush1.msra.mxu0 %v1349
        %1480 = vmatprep.subr.mxu0 %v1354
        %1481 = vmatpush1.msra.mxu0 %v1353
        %1482 = vmatprep.subr.mxu0 %v1358
        %1483 = vmatpush1.msra.mxu0 %v1357
        %1484 = vmatprep.subr.mxu0 %v1362
        %1485 = vmatpush1.msra.mxu0 %v1361
        %1486 = vmatprep.subr.mxu0 %v1366
        %1487 = vmatpush1.msra.mxu0 %v1365
        %1488 = vmatprep.subr.mxu0 %v1370
        %1489 = vmatpush1.msra.mxu0 %v1369
        %1490 = vmatprep.subr.mxu0 %v1374
        %1491 = vmatpush1.msra.mxu0 %v1373
        %1492 = vmatprep.subr.mxu0 %v1378
        %1493 = vmatpush1.msra.mxu0 %v1377
        %1494 = vmatprep.subr.mxu0 %v1382
        %1495 = vmatpush1.msra.mxu0 %v1381
        %1496 = vmatprep.subr.mxu0 %v1386
        %1497 = vmatpush1.msra.mxu0 %v1385
        %1498 = vmatprep.subr.mxu0 %v1390
        %1499 = vmatpush1.msra.mxu0 %v1389
        %1500 = vmatprep.subr.mxu0 %v1394
        %1501 = vmatpush1.msra.mxu0 %v1393
        %1502 = vmatprep.subr.mxu0 %v1398
        %1503 = vmatpush1.msra.mxu0 %v1397
        %1504 = vmatprep.subr.mxu0 %v1402
        %1505 = vmatpush1.msra.mxu0 %v1401
        %1506 = vmatprep.subr.mxu0 0.0
        %1507 = vmatpush1.msra.mxu0 0.0
        %1508 = vmatprep.subr.mxu0 0.0
        %1509 = vmatpush1.msra.mxu0 0.0
        %1510 = vmatprep.subr.mxu0 0.0
        %1511 = vmatpush1.msra.mxu0 0.0
        %1512 = vmatprep.subr.mxu0 0.0
        %1513 = vmatpush1.msra.mxu0 0.0
        %1514 = vmatprep.subr.mxu0 0.0
        %1515 = vmatpush1.msra.mxu0 0.0
        %1516 = vmatprep.subr.mxu0 0.0
        %1517 = vmatpush1.msra.mxu0 0.0
        %1518 = vmatprep.subr.mxu0 0.0
        %1519 = vmatpush1.msra.mxu0 0.0
        %1520 = vmatprep.subr.mxu0 0.0
        %1521 = vmatpush1.msra.mxu0 0.0
        %1522 = vmatprep.subr.mxu0 0.0
        %1523 = vmatpush1.msra.mxu0 0.0
        %1524 = vmatprep.subr.mxu0 0.0
        %1525 = vmatpush1.msra.mxu0 0.0
        %1526 = vmatprep.subr.mxu0 0.0
        %1527 = vmatpush1.msra.mxu0 0.0
        %1528 = vmatprep.subr.mxu0 0.0
        %1529 = vmatpush1.msra.mxu0 0.0
        %1530 = vmatprep.subr.mxu0 0.0
        %1531 = vmatpush1.msra.mxu0 0.0
        %1532 = vmatprep.subr.mxu0 0.0
        %1533 = vmatpush1.msra.mxu0 0.0
        %1534 = vmatprep.subr.mxu0 0.0
        %1535 = vmatpush1.msra.mxu0 0.0
        %1536 = vmatprep.subr.mxu0 0.0
        %1537 = vmatpush1.msra.mxu0 0.0
        %1538 = vmatprep.mubr.f32.mxu0 0.0
        %1539 = vmatmul.mubr.f32.gmra.mrb[0].mxu0 %v1327
        %v1540 = vpop.f32.mrb[0].mxu0
        %v1541 = vadd.f32 0.0, %v1540
        %v1542 = vpop.f32.mrb[0].mxu0
        %v1543 = vadd.f32 0.0, %v1542
        %1544 = vdwg.mxu0
        %v1545 = vadd.f32 %v1335, %v1470
        %v1546 = vadd.f32 %v1336, %v1472
        %v1547 = vadd.f32 %v1337, %v1541
        %v1548 = vadd.f32 %v1338, %v1543
        %v1549 = vxor.u32 %v1545, 2147483648
        %v1550 = vmul.f32 %v1549, 1.442695
        %v1551 = vpow.pop %v1550
        %v1552 = vadd.f32 %v1551, 1.0
        %v1553 = vrcp.pop %v1552
        %v1554 = vmul.f32 1.0, %v1553
        %v1555 = vxor.u32 %v1546, 2147483648
        %v1556 = vmul.f32 %v1555, 1.442695
        %v1557 = vpow.pop %v1556
        %v1558 = vadd.f32 %v1557, 1.0
        %v1559 = vrcp.pop %v1558
        %v1560 = vmul.f32 1.0, %v1559
        %v1561 = vtanh.pop %v1547
        %v1562 = vxor.u32 %v1548, 2147483648
        %v1563 = vmul.f32 %v1562, 1.442695
        %v1564 = vpow.pop %v1563
        %v1565 = vadd.f32 %v1564, 1.0
        %v1566 = vrcp.pop %v1565
        %v1567 = vmul.f32 1.0, %v1566
        %v1568 = vmul.f32 %v1560, %v1328
        %v1569 = vmul.f32 %v1554, %v1561
        %v1570 = vadd.f32 %v1568, %v1569
        %v1571 = vtanh.pop %v1570
        %v1572 = vmul.f32 %v1567, %v1571
        %s1573 = sadd.s32 %s639, %s43
        %s1574 = smul.u32 %s1573, 64
        %s1575 = sadd.s32 %s1329, %s1574
        %s1576 = scalar_lea.vmem [#allocation2], %s1575
        %1577 = vst [vmem:[%s1576] sm:$0xff] %v1572
        %s1578 = smul.u32 %s43, 5
        %s1579 = sadd.s32 %s1578, 1
        %s1580 = smul.u32 %s1579, 8
        %s1581 = sshra.s32 %s1580, 3
        %s1582 = sand.u32 %s1580, 7
        %s1583 = smul.u32 %s1581, 4
        %s1584 = smul.addr %s1583, 8
        %s1585 = scalar_lea.vmem [#allocation3], %s1584
        %v1586 = vld [vmem:[%s1585] sm:$0xff]
        %v1587 = vld [vmem:[%s1585 + $0x8] sm:$0xff]
        %v1588 = vld [vmem:[%s1585 + $0x10] sm:$0xff]
        %v1589 = vld [vmem:[%s1585 + $0x18] sm:$0xff]
        %v1590 = vld [vmem:[%s488] sm:$0xff]
        %v1591 = vld [vmem:[%s488 + $0x8] sm:$0xff]
        %v1592 = vld [vmem:[%s488 + $0x10] sm:$0xff]
        %v1593 = vld [vmem:[%s488 + $0x18] sm:$0xff]
        %v1594 = vld [vmem:[%s488 + $0x20] sm:$0xff]
        %v1595 = vld [vmem:[%s488 + $0x28] sm:$0xff]
        %v1596 = vld [vmem:[%s488 + $0x30] sm:$0xff]
        %v1597 = vld [vmem:[%s488 + $0x38] sm:$0xff]
        %v1598 = vld [vmem:[%s488 + $0x40] sm:$0xff]
        %v1599 = vld [vmem:[%s488 + $0x48] sm:$0xff]
        %v1600 = vld [vmem:[%s488 + $0x50] sm:$0xff]
        %v1601 = vld [vmem:[%s488 + $0x58] sm:$0xff]
        %v1602 = vld [vmem:[%s488 + $0x60] sm:$0xff]
        %v1603 = vld [vmem:[%s488 + $0x68] sm:$0xff]
        %v1604 = vld [vmem:[%s488 + $0x70] sm:$0xff]
        %v1605 = vld [vmem:[%s488 + $0x78] sm:$0xff]
        %v1606 = vld [vmem:[%s488 + $0x80] sm:$0xff]
        %v1607 = vld [vmem:[%s488 + $0x88] sm:$0xff]
        %v1608 = vld [vmem:[%s488 + $0x90] sm:$0xff]
        %v1609 = vld [vmem:[%s488 + $0x98] sm:$0xff]
        %v1610 = vld [vmem:[%s488 + $0xa0] sm:$0xff]
        %v1611 = vld [vmem:[%s488 + $0xa8] sm:$0xff]
        %v1612 = vld [vmem:[%s488 + $0xb0] sm:$0xff]
        %v1613 = vld [vmem:[%s488 + $0xb8] sm:$0xff]
        %v1614 = vld [vmem:[%s488 + $0xc0] sm:$0xff]
        %v1615 = vld [vmem:[%s488 + $0xc8] sm:$0xff]
        %v1616 = vld [vmem:[%s488 + $0xd0] sm:$0xff]
        %v1617 = vld [vmem:[%s488 + $0xd8] sm:$0xff]
        %v1618 = vld [vmem:[%s488 + $0xe0] sm:$0xff]
        %v1619 = vld [vmem:[%s488 + $0xe8] sm:$0xff]
        %v1620 = vld [vmem:[%s488 + $0xf0] sm:$0xff]
        %v1621 = vld [vmem:[%s488 + $0xf8] sm:$0xff]
        %v1622 = vld [vmem:[%s488 + $0x100] sm:$0xff]
        %v1623 = vld [vmem:[%s488 + $0x108] sm:$0xff]
        %v1624 = vld [vmem:[%s488 + $0x110] sm:$0xff]
        %v1625 = vld [vmem:[%s488 + $0x118] sm:$0xff]
        %v1626 = vld [vmem:[%s488 + $0x120] sm:$0xff]
        %v1627 = vld [vmem:[%s488 + $0x128] sm:$0xff]
        %v1628 = vld [vmem:[%s488 + $0x130] sm:$0xff]
        %v1629 = vld [vmem:[%s488 + $0x138] sm:$0xff]
        %v1630 = vld [vmem:[%s488 + $0x140] sm:$0xff]
        %v1631 = vld [vmem:[%s488 + $0x148] sm:$0xff]
        %v1632 = vld [vmem:[%s488 + $0x150] sm:$0xff]
        %v1633 = vld [vmem:[%s488 + $0x158] sm:$0xff]
        %v1634 = vld [vmem:[%s488 + $0x160] sm:$0xff]
        %v1635 = vld [vmem:[%s488 + $0x168] sm:$0xff]
        %v1636 = vld [vmem:[%s488 + $0x170] sm:$0xff]
        %v1637 = vld [vmem:[%s488 + $0x178] sm:$0xff]
        %v1638 = vld [vmem:[%s488 + $0x180] sm:$0xff]
        %v1639 = vld [vmem:[%s488 + $0x188] sm:$0xff]
        %v1640 = vld [vmem:[%s488 + $0x190] sm:$0xff]
        %v1641 = vld [vmem:[%s488 + $0x198] sm:$0xff]
        %v1642 = vld [vmem:[%s488 + $0x1a0] sm:$0xff]
        %v1643 = vld [vmem:[%s488 + $0x1a8] sm:$0xff]
        %v1644 = vld [vmem:[%s488 + $0x1b0] sm:$0xff]
        %v1645 = vld [vmem:[%s488 + $0x1b8] sm:$0xff]
        %v1646 = vld [vmem:[%s488 + $0x1c0] sm:$0xff]
        %v1647 = vld [vmem:[%s488 + $0x1c8] sm:$0xff]
        %v1648 = vld [vmem:[%s488 + $0x1d0] sm:$0xff]
        %v1649 = vld [vmem:[%s488 + $0x1d8] sm:$0xff]
        %v1650 = vld [vmem:[%s488 + $0x1e0] sm:$0xff]
        %v1651 = vld [vmem:[%s488 + $0x1e8] sm:$0xff]
        %v1652 = vld [vmem:[%s488 + $0x1f0] sm:$0xff]
        %v1653 = vld [vmem:[%s488 + $0x1f8] sm:$0xff]
        %1654 = vmatprep.subr.mxu0 %v1591
        %1655 = vmatpush1.msra.mxu0 %v1590
        %1656 = vmatprep.subr.mxu0 %v1595
        %1657 = vmatpush1.msra.mxu0 %v1594
        %1658 = vmatprep.subr.mxu0 %v1599
        %1659 = vmatpush1.msra.mxu0 %v1598
        %1660 = vmatprep.subr.mxu0 %v1603
        %1661 = vmatpush1.msra.mxu0 %v1602
        %1662 = vmatprep.subr.mxu0 %v1607
        %1663 = vmatpush1.msra.mxu0 %v1606
        %1664 = vmatprep.subr.mxu0 %v1611
        %1665 = vmatpush1.msra.mxu0 %v1610
        %1666 = vmatprep.subr.mxu0 %v1615
        %1667 = vmatpush1.msra.mxu0 %v1614
        %1668 = vmatprep.subr.mxu0 %v1619
        %1669 = vmatpush1.msra.mxu0 %v1618
        %1670 = vmatprep.subr.mxu0 %v1623
        %1671 = vmatpush1.msra.mxu0 %v1622
        %1672 = vmatprep.subr.mxu0 %v1627
        %1673 = vmatpush1.msra.mxu0 %v1626
        %1674 = vmatprep.subr.mxu0 %v1631
        %1675 = vmatpush1.msra.mxu0 %v1630
        %1676 = vmatprep.subr.mxu0 %v1635
        %1677 = vmatpush1.msra.mxu0 %v1634
        %1678 = vmatprep.subr.mxu0 %v1639
        %1679 = vmatpush1.msra.mxu0 %v1638
        %1680 = vmatprep.subr.mxu0 %v1643
        %1681 = vmatpush1.msra.mxu0 %v1642
        %1682 = vmatprep.subr.mxu0 %v1647
        %1683 = vmatpush1.msra.mxu0 %v1646
        %1684 = vmatprep.subr.mxu0 %v1651
        %1685 = vmatpush1.msra.mxu0 %v1650
        %1686 = vmatprep.subr.mxu0 0.0
        %1687 = vmatpush1.msra.mxu0 0.0
        %1688 = vmatprep.subr.mxu0 0.0
        %1689 = vmatpush1.msra.mxu0 0.0
        %1690 = vmatprep.subr.mxu0 0.0
        %1691 = vmatpush1.msra.mxu0 0.0
        %1692 = vmatprep.subr.mxu0 0.0
        %1693 = vmatpush1.msra.mxu0 0.0
        %1694 = vmatprep.subr.mxu0 0.0
        %1695 = vmatpush1.msra.mxu0 0.0
        %1696 = vmatprep.subr.mxu0 0.0
        %1697 = vmatpush1.msra.mxu0 0.0
        %1698 = vmatprep.subr.mxu0 0.0
        %1699 = vmatpush1.msra.mxu0 0.0
        %1700 = vmatprep.subr.mxu0 0.0
        %1701 = vmatpush1.msra.mxu0 0.0
        %1702 = vmatprep.subr.mxu0 0.0
        %1703 = vmatpush1.msra.mxu0 0.0
        %1704 = vmatprep.subr.mxu0 0.0
        %1705 = vmatpush1.msra.mxu0 0.0
        %1706 = vmatprep.subr.mxu0 0.0
        %1707 = vmatpush1.msra.mxu0 0.0
        %1708 = vmatprep.subr.mxu0 0.0
        %1709 = vmatpush1.msra.mxu0 0.0
        %1710 = vmatprep.subr.mxu0 0.0
        %1711 = vmatpush1.msra.mxu0 0.0
        %1712 = vmatprep.subr.mxu0 0.0
        %1713 = vmatpush1.msra.mxu0 0.0
        %1714 = vmatprep.subr.mxu0 0.0
        %1715 = vmatpush1.msra.mxu0 0.0
        %1716 = vmatprep.subr.mxu0 0.0
        %1717 = vmatpush1.msra.mxu0 0.0
        %1718 = vmatprep.mubr.f32.mxu0 0.0
        %1719 = vmatmul.mubr.f32.gmra.mrb[0].mxu0 %v1572
        %v1720 = vpop.f32.mrb[0].mxu0
        %v1721 = vadd.f32 0.0, %v1720
        %v1722 = vpop.f32.mrb[0].mxu0
        %v1723 = vadd.f32 0.0, %v1722
        %1724 = vdwg.mxu0
        %1725 = vmatprep.subr.mxu0 %v1593
        %1726 = vmatpush1.msra.mxu0 %v1592
        %1727 = vmatprep.subr.mxu0 %v1597
        %1728 = vmatpush1.msra.mxu0 %v1596
        %1729 = vmatprep.subr.mxu0 %v1601
        %1730 = vmatpush1.msra.mxu0 %v1600
        %1731 = vmatprep.subr.mxu0 %v1605
        %1732 = vmatpush1.msra.mxu0 %v1604
        %1733 = vmatprep.subr.mxu0 %v1609
        %1734 = vmatpush1.msra.mxu0 %v1608
        %1735 = vmatprep.subr.mxu0 %v1613
        %1736 = vmatpush1.msra.mxu0 %v1612
        %1737 = vmatprep.subr.mxu0 %v1617
        %1738 = vmatpush1.msra.mxu0 %v1616
        %1739 = vmatprep.subr.mxu0 %v1621
        %1740 = vmatpush1.msra.mxu0 %v1620
        %1741 = vmatprep.subr.mxu0 %v1625
        %1742 = vmatpush1.msra.mxu0 %v1624
        %1743 = vmatprep.subr.mxu0 %v1629
        %1744 = vmatpush1.msra.mxu0 %v1628
        %1745 = vmatprep.subr.mxu0 %v1633
        %1746 = vmatpush1.msra.mxu0 %v1632
        %1747 = vmatprep.subr.mxu0 %v1637
        %1748 = vmatpush1.msra.mxu0 %v1636
        %1749 = vmatprep.subr.mxu0 %v1641
        %1750 = vmatpush1.msra.mxu0 %v1640
        %1751 = vmatprep.subr.mxu0 %v1645
        %1752 = vmatpush1.msra.mxu0 %v1644
        %1753 = vmatprep.subr.mxu0 %v1649
        %1754 = vmatpush1.msra.mxu0 %v1648
        %1755 = vmatprep.subr.mxu0 %v1653
        %1756 = vmatpush1.msra.mxu0 %v1652
        %1757 = vmatprep.subr.mxu0 0.0
        %1758 = vmatpush1.msra.mxu0 0.0
        %1759 = vmatprep.subr.mxu0 0.0
        %1760 = vmatpush1.msra.mxu0 0.0
        %1761 = vmatprep.subr.mxu0 0.0
        %1762 = vmatpush1.msra.mxu0 0.0
        %1763 = vmatprep.subr.mxu0 0.0
        %1764 = vmatpush1.msra.mxu0 0.0
        %1765 = vmatprep.subr.mxu0 0.0
        %1766 = vmatpush1.msra.mxu0 0.0
        %1767 = vmatprep.subr.mxu0 0.0
        %1768 = vmatpush1.msra.mxu0 0.0
        %1769 = vmatprep.subr.mxu0 0.0
        %1770 = vmatpush1.msra.mxu0 0.0
        %1771 = vmatprep.subr.mxu0 0.0
        %1772 = vmatpush1.msra.mxu0 0.0
        %1773 = vmatprep.subr.mxu0 0.0
        %1774 = vmatpush1.msra.mxu0 0.0
        %1775 = vmatprep.subr.mxu0 0.0
        %1776 = vmatpush1.msra.mxu0 0.0
        %1777 = vmatprep.subr.mxu0 0.0
        %1778 = vmatpush1.msra.mxu0 0.0
        %1779 = vmatprep.subr.mxu0 0.0
        %1780 = vmatpush1.msra.mxu0 0.0
        %1781 = vmatprep.subr.mxu0 0.0
        %1782 = vmatpush1.msra.mxu0 0.0
        %1783 = vmatprep.subr.mxu0 0.0
        %1784 = vmatpush1.msra.mxu0 0.0
        %1785 = vmatprep.subr.mxu0 0.0
        %1786 = vmatpush1.msra.mxu0 0.0
        %1787 = vmatprep.subr.mxu0 0.0
        %1788 = vmatpush1.msra.mxu0 0.0
        %1789 = vmatprep.mubr.f32.mxu0 0.0
        %1790 = vmatmul.mubr.f32.gmra.mrb[0].mxu0 %v1572
        %v1791 = vpop.f32.mrb[0].mxu0
        %v1792 = vadd.f32 0.0, %v1791
        %v1793 = vpop.f32.mrb[0].mxu0
        %v1794 = vadd.f32 0.0, %v1793
        %1795 = vdwg.mxu0
        %v1796 = vadd.f32 %v1586, %v1721
        %v1797 = vadd.f32 %v1587, %v1723
        %v1798 = vadd.f32 %v1588, %v1792
        %v1799 = vadd.f32 %v1589, %v1794
        %v1800 = vxor.u32 %v1796, 2147483648
        %v1801 = vmul.f32 %v1800, 1.442695
        %v1802 = vpow.pop %v1801
        %v1803 = vadd.f32 %v1802, 1.0
        %v1804 = vrcp.pop %v1803
        %v1805 = vmul.f32 1.0, %v1804
        %v1806 = vxor.u32 %v1797, 2147483648
        %v1807 = vmul.f32 %v1806, 1.442695
        %v1808 = vpow.pop %v1807
        %v1809 = vadd.f32 %v1808, 1.0
        %v1810 = vrcp.pop %v1809
        %v1811 = vmul.f32 1.0, %v1810
        %v1812 = vtanh.pop %v1798
        %v1813 = vxor.u32 %v1799, 2147483648
        %v1814 = vmul.f32 %v1813, 1.442695
        %v1815 = vpow.pop %v1814
        %v1816 = vadd.f32 %v1815, 1.0
        %v1817 = vrcp.pop %v1816
        %v1818 = vmul.f32 1.0, %v1817
        %v1819 = vmul.f32 %v1811, %v1570
        %v1820 = vmul.f32 %v1805, %v1812
        %v1821 = vadd.f32 %v1819, %v1820
        %v1822 = vtanh.pop %v1821
        %v1823 = vmul.f32 %v1818, %v1822
        %s1824 = sadd.s32 %s1580, %s1574
        %s1825 = scalar_lea.vmem [#allocation2], %s1824
        %1826 = vst [vmem:[%s1825] sm:$0xff] %v1823
        %s1827 = smul.u32 %s43, 3
        %s1828 = sadd.s32 %s1827, 2
        %s1829 = smul.u32 %s1828, 8
        %s1830 = sshra.s32 %s1829, 3
        %s1831 = sand.u32 %s1829, 7
        %s1832 = smul.u32 %s1830, 4
        %s1833 = smul.addr %s1832, 8
        %s1834 = scalar_lea.vmem [#allocation3], %s1833
        %v1835 = vld [vmem:[%s1834] sm:$0xff]
        %v1836 = vld [vmem:[%s1834 + $0x8] sm:$0xff]
        %v1837 = vld [vmem:[%s1834 + $0x10] sm:$0xff]
        %v1838 = vld [vmem:[%s1834 + $0x18] sm:$0xff]
        %v1839 = vld [vmem:[%s488] sm:$0xff]
        %v1840 = vld [vmem:[%s488 + $0x8] sm:$0xff]
        %v1841 = vld [vmem:[%s488 + $0x10] sm:$0xff]
        %v1842 = vld [vmem:[%s488 + $0x18] sm:$0xff]
        %v1843 = vld [vmem:[%s488 + $0x20] sm:$0xff]
        %v1844 = vld [vmem:[%s488 + $0x28] sm:$0xff]
        %v1845 = vld [vmem:[%s488 + $0x30] sm:$0xff]
        %v1846 = vld [vmem:[%s488 + $0x38] sm:$0xff]
        %v1847 = vld [vmem:[%s488 + $0x40] sm:$0xff]
        %v1848 = vld [vmem:[%s488 + $0x48] sm:$0xff]
        %v1849 = vld [vmem:[%s488 + $0x50] sm:$0xff]
        %v1850 = vld [vmem:[%s488 + $0x58] sm:$0xff]
        %v1851 = vld [vmem:[%s488 + $0x60] sm:$0xff]
        %v1852 = vld [vmem:[%s488 + $0x68] sm:$0xff]
        %v1853 = vld [vmem:[%s488 + $0x70] sm:$0xff]
        %v1854 = vld [vmem:[%s488 + $0x78] sm:$0xff]
        %v1855 = vld [vmem:[%s488 + $0x80] sm:$0xff]
        %v1856 = vld [vmem:[%s488 + $0x88] sm:$0xff]
        %v1857 = vld [vmem:[%s488 + $0x90] sm:$0xff]
        %v1858 = vld [vmem:[%s488 + $0x98] sm:$0xff]
        %v1859 = vld [vmem:[%s488 + $0xa0] sm:$0xff]
        %v1860 = vld [vmem:[%s488 + $0xa8] sm:$0xff]
        %v1861 = vld [vmem:[%s488 + $0xb0] sm:$0xff]
        %v1862 = vld [vmem:[%s488 + $0xb8] sm:$0xff]
        %v1863 = vld [vmem:[%s488 + $0xc0] sm:$0xff]
        %v1864 = vld [vmem:[%s488 + $0xc8] sm:$0xff]
        %v1865 = vld [vmem:[%s488 + $0xd0] sm:$0xff]
        %v1866 = vld [vmem:[%s488 + $0xd8] sm:$0xff]
        %v1867 = vld [vmem:[%s488 + $0xe0] sm:$0xff]
        %v1868 = vld [vmem:[%s488 + $0xe8] sm:$0xff]
        %v1869 = vld [vmem:[%s488 + $0xf0] sm:$0xff]
        %v1870 = vld [vmem:[%s488 + $0xf8] sm:$0xff]
        %v1871 = vld [vmem:[%s488 + $0x100] sm:$0xff]
        %v1872 = vld [vmem:[%s488 + $0x108] sm:$0xff]
        %v1873 = vld [vmem:[%s488 + $0x110] sm:$0xff]
        %v1874 = vld [vmem:[%s488 + $0x118] sm:$0xff]
        %v1875 = vld [vmem:[%s488 + $0x120] sm:$0xff]
        %v1876 = vld [vmem:[%s488 + $0x128] sm:$0xff]
        %v1877 = vld [vmem:[%s488 + $0x130] sm:$0xff]
        %v1878 = vld [vmem:[%s488 + $0x138] sm:$0xff]
        %v1879 = vld [vmem:[%s488 + $0x140] sm:$0xff]
        %v1880 = vld [vmem:[%s488 + $0x148] sm:$0xff]
        %v1881 = vld [vmem:[%s488 + $0x150] sm:$0xff]
        %v1882 = vld [vmem:[%s488 + $0x158] sm:$0xff]
        %v1883 = vld [vmem:[%s488 + $0x160] sm:$0xff]
        %v1884 = vld [vmem:[%s488 + $0x168] sm:$0xff]
        %v1885 = vld [vmem:[%s488 + $0x170] sm:$0xff]
        %v1886 = vld [vmem:[%s488 + $0x178] sm:$0xff]
        %v1887 = vld [vmem:[%s488 + $0x180] sm:$0xff]
        %v1888 = vld [vmem:[%s488 + $0x188] sm:$0xff]
        %v1889 = vld [vmem:[%s488 + $0x190] sm:$0xff]
        %v1890 = vld [vmem:[%s488 + $0x198] sm:$0xff]
        %v1891 = vld [vmem:[%s488 + $0x1a0] sm:$0xff]
        %v1892 = vld [vmem:[%s488 + $0x1a8] sm:$0xff]
        %v1893 = vld [vmem:[%s488 + $0x1b0] sm:$0xff]
        %v1894 = vld [vmem:[%s488 + $0x1b8] sm:$0xff]
        %v1895 = vld [vmem:[%s488 + $0x1c0] sm:$0xff]
        %v1896 = vld [vmem:[%s488 + $0x1c8] sm:$0xff]
        %v1897 = vld [vmem:[%s488 + $0x1d0] sm:$0xff]
        %v1898 = vld [vmem:[%s488 + $0x1d8] sm:$0xff]
        %v1899 = vld [vmem:[%s488 + $0x1e0] sm:$0xff]
        %v1900 = vld [vmem:[%s488 + $0x1e8] sm:$0xff]
        %v1901 = vld [vmem:[%s488 + $0x1f0] sm:$0xff]
        %v1902 = vld [vmem:[%s488 + $0x1f8] sm:$0xff]
        %1903 = vmatprep.subr.mxu0 %v1840
        %1904 = vmatpush1.msra.mxu0 %v1839
        %1905 = vmatprep.subr.mxu0 %v1844
        %1906 = vmatpush1.msra.mxu0 %v1843
        %1907 = vmatprep.subr.mxu0 %v1848
        %1908 = vmatpush1.msra.mxu0 %v1847
        %1909 = vmatprep.subr.mxu0 %v1852
        %1910 = vmatpush1.msra.mxu0 %v1851
        %1911 = vmatprep.subr.mxu0 %v1856
        %1912 = vmatpush1.msra.mxu0 %v1855
        %1913 = vmatprep.subr.mxu0 %v1860
        %1914 = vmatpush1.msra.mxu0 %v1859
        %1915 = vmatprep.subr.mxu0 %v1864
        %1916 = vmatpush1.msra.mxu0 %v1863
        %1917 = vmatprep.subr.mxu0 %v1868
        %1918 = vmatpush1.msra.mxu0 %v1867
        %1919 = vmatprep.subr.mxu0 %v1872
        %1920 = vmatpush1.msra.mxu0 %v1871
        %1921 = vmatprep.subr.mxu0 %v1876
        %1922 = vmatpush1.msra.mxu0 %v1875
        %1923 = vmatprep.subr.mxu0 %v1880
        %1924 = vmatpush1.msra.mxu0 %v1879
        %1925 = vmatprep.subr.mxu0 %v1884
        %1926 = vmatpush1.msra.mxu0 %v1883
        %1927 = vmatprep.subr.mxu0 %v1888
        %1928 = vmatpush1.msra.mxu0 %v1887
        %1929 = vmatprep.subr.mxu0 %v1892
        %1930 = vmatpush1.msra.mxu0 %v1891
        %1931 = vmatprep.subr.mxu0 %v1896
        %1932 = vmatpush1.msra.mxu0 %v1895
        %1933 = vmatprep.subr.mxu0 %v1900
        %1934 = vmatpush1.msra.mxu0 %v1899
        %1935 = vmatprep.subr.mxu0 0.0
        %1936 = vmatpush1.msra.mxu0 0.0
        %1937 = vmatprep.subr.mxu0 0.0
        %1938 = vmatpush1.msra.mxu0 0.0
        %1939 = vmatprep.subr.mxu0 0.0
        %1940 = vmatpush1.msra.mxu0 0.0
        %1941 = vmatprep.subr.mxu0 0.0
        %1942 = vmatpush1.msra.mxu0 0.0
        %1943 = vmatprep.subr.mxu0 0.0
        %1944 = vmatpush1.msra.mxu0 0.0
        %1945 = vmatprep.subr.mxu0 0.0
        %1946 = vmatpush1.msra.mxu0 0.0
        %1947 = vmatprep.subr.mxu0 0.0
        %1948 = vmatpush1.msra.mxu0 0.0
        %1949 = vmatprep.subr.mxu0 0.0
        %1950 = vmatpush1.msra.mxu0 0.0
        %1951 = vmatprep.subr.mxu0 0.0
        %1952 = vmatpush1.msra.mxu0 0.0
        %1953 = vmatprep.subr.mxu0 0.0
        %1954 = vmatpush1.msra.mxu0 0.0
        %1955 = vmatprep.subr.mxu0 0.0
        %1956 = vmatpush1.msra.mxu0 0.0
        %1957 = vmatprep.subr.mxu0 0.0
        %1958 = vmatpush1.msra.mxu0 0.0
        %1959 = vmatprep.subr.mxu0 0.0
        %1960 = vmatpush1.msra.mxu0 0.0
        %1961 = vmatprep.subr.mxu0 0.0
        %1962 = vmatpush1.msra.mxu0 0.0
        %1963 = vmatprep.subr.mxu0 0.0
        %1964 = vmatpush1.msra.mxu0 0.0
        %1965 = vmatprep.subr.mxu0 0.0
        %1966 = vmatpush1.msra.mxu0 0.0
        %1967 = vmatprep.mubr.f32.mxu0 0.0
        %1968 = vmatmul.mubr.f32.gmra.mrb[0].mxu0 %v1823
        %v1969 = vpop.f32.mrb[0].mxu0
        %v1970 = vadd.f32 0.0, %v1969
        %v1971 = vpop.f32.mrb[0].mxu0
        %v1972 = vadd.f32 0.0, %v1971
        %1973 = vdwg.mxu0
        %1974 = vmatprep.subr.mxu0 %v1842
        %1975 = vmatpush1.msra.mxu0 %v1841
        %1976 = vmatprep.subr.mxu0 %v1846
        %1977 = vmatpush1.msra.mxu0 %v1845
        %1978 = vmatprep.subr.mxu0 %v1850
        %1979 = vmatpush1.msra.mxu0 %v1849
        %1980 = vmatprep.subr.mxu0 %v1854
        %1981 = vmatpush1.msra.mxu0 %v1853
        %1982 = vmatprep.subr.mxu0 %v1858
        %1983 = vmatpush1.msra.mxu0 %v1857
        %1984 = vmatprep.subr.mxu0 %v1862
        %1985 = vmatpush1.msra.mxu0 %v1861
        %1986 = vmatprep.subr.mxu0 %v1866
        %1987 = vmatpush1.msra.mxu0 %v1865
        %1988 = vmatprep.subr.mxu0 %v1870
        %1989 = vmatpush1.msra.mxu0 %v1869
        %1990 = vmatprep.subr.mxu0 %v1874
        %1991 = vmatpush1.msra.mxu0 %v1873
        %1992 = vmatprep.subr.mxu0 %v1878
        %1993 = vmatpush1.msra.mxu0 %v1877
        %1994 = vmatprep.subr.mxu0 %v1882
        %1995 = vmatpush1.msra.mxu0 %v1881
        %1996 = vmatprep.subr.mxu0 %v1886
        %1997 = vmatpush1.msra.mxu0 %v1885
        %1998 = vmatprep.subr.mxu0 %v1890
        %1999 = vmatpush1.msra.mxu0 %v1889
        %2000 = vmatprep.subr.mxu0 %v1894
        %2001 = vmatpush1.msra.mxu0 %v1893
        %2002 = vmatprep.subr.mxu0 %v1898
        %2003 = vmatpush1.msra.mxu0 %v1897
        %2004 = vmatprep.subr.mxu0 %v1902
        %2005 = vmatpush1.msra.mxu0 %v1901
        %2006 = vmatprep.subr.mxu0 0.0
        %2007 = vmatpush1.msra.mxu0 0.0
        %2008 = vmatprep.subr.mxu0 0.0
        %2009 = vmatpush1.msra.mxu0 0.0
        %2010 = vmatprep.subr.mxu0 0.0
        %2011 = vmatpush1.msra.mxu0 0.0
        %2012 = vmatprep.subr.mxu0 0.0
        %2013 = vmatpush1.msra.mxu0 0.0
        %2014 = vmatprep.subr.mxu0 0.0
        %2015 = vmatpush1.msra.mxu0 0.0
        %2016 = vmatprep.subr.mxu0 0.0
        %2017 = vmatpush1.msra.mxu0 0.0
        %2018 = vmatprep.subr.mxu0 0.0
        %2019 = vmatpush1.msra.mxu0 0.0
        %2020 = vmatprep.subr.mxu0 0.0
        %2021 = vmatpush1.msra.mxu0 0.0
        %2022 = vmatprep.subr.mxu0 0.0
        %2023 = vmatpush1.msra.mxu0 0.0
        %2024 = vmatprep.subr.mxu0 0.0
        %2025 = vmatpush1.msra.mxu0 0.0
        %2026 = vmatprep.subr.mxu0 0.0
        %2027 = vmatpush1.msra.mxu0 0.0
        %2028 = vmatprep.subr.mxu0 0.0
        %2029 = vmatpush1.msra.mxu0 0.0
        %2030 = vmatprep.subr.mxu0 0.0
        %2031 = vmatpush1.msra.mxu0 0.0
        %2032 = vmatprep.subr.mxu0 0.0
        %2033 = vmatpush1.msra.mxu0 0.0
        %2034 = vmatprep.subr.mxu0 0.0
        %2035 = vmatpush1.msra.mxu0 0.0
        %2036 = vmatprep.subr.mxu0 0.0
        %2037 = vmatpush1.msra.mxu0 0.0
        %2038 = vmatprep.mubr.f32.mxu0 0.0
        %2039 = vmatmul.mubr.f32.gmra.mrb[0].mxu0 %v1823
        %v2040 = vpop.f32.mrb[0].mxu0
        %v2041 = vadd.f32 0.0, %v2040
        %v2042 = vpop.f32.mrb[0].mxu0
        %v2043 = vadd.f32 0.0, %v2042
        %2044 = vdwg.mxu0
        %v2045 = vadd.f32 %v1835, %v1970
        %v2046 = vadd.f32 %v1836, %v1972
        %v2047 = vadd.f32 %v1837, %v2041
        %v2048 = vadd.f32 %v1838, %v2043
        %v2049 = vxor.u32 %v2045, 2147483648
        %v2050 = vmul.f32 %v2049, 1.442695
        %v2051 = vpow.pop %v2050
        %v2052 = vadd.f32 %v2051, 1.0
        %v2053 = vrcp.pop %v2052
        %v2054 = vmul.f32 1.0, %v2053
        %v2055 = vxor.u32 %v2046, 2147483648
        %v2056 = vmul.f32 %v2055, 1.442695
        %v2057 = vpow.pop %v2056
        %v2058 = vadd.f32 %v2057, 1.0
        %v2059 = vrcp.pop %v2058
        %v2060 = vmul.f32 1.0, %v2059
        %v2061 = vtanh.pop %v2047
        %v2062 = vxor.u32 %v2048, 2147483648
        %v2063 = vmul.f32 %v2062, 1.442695
        %v2064 = vpow.pop %v2063
        %v2065 = vadd.f32 %v2064, 1.0
        %v2066 = vrcp.pop %v2065
        %v2067 = vmul.f32 1.0, %v2066
        %v2068 = vmul.f32 %v2060, %v1821
        %v2069 = vmul.f32 %v2054, %v2061
        %v2070 = vadd.f32 %v2068, %v2069
        %v2071 = vtanh.pop %v2070
        %v2072 = vmul.f32 %v2067, %v2071
        %s2073 = sadd.s32 %s1829, %s1574
        %s2074 = scalar_lea.vmem [#allocation2], %s2073
        %2075 = vst [vmem:[%s2074] sm:$0xff] %v2072
        %s2076 = sadd.s32 %s43, 3
        %s2077 = smul.u32 %s2076, 8
        %s2078 = sshra.s32 %s2077, 3
        %s2079 = sand.u32 %s2077, 7
        %s2080 = smul.u32 %s2078, 4
        %s2081 = smul.addr %s2080, 8
        %s2082 = scalar_lea.vmem [#allocation3], %s2081
        %v2083 = vld [vmem:[%s2082] sm:$0xff]
        %v2084 = vld [vmem:[%s2082 + $0x8] sm:$0xff]
        %v2085 = vld [vmem:[%s2082 + $0x10] sm:$0xff]
        %v2086 = vld [vmem:[%s2082 + $0x18] sm:$0xff]
        %v2087 = vld [vmem:[%s488] sm:$0xff]
        %v2088 = vld [vmem:[%s488 + $0x8] sm:$0xff]
        %v2089 = vld [vmem:[%s488 + $0x10] sm:$0xff]
        %v2090 = vld [vmem:[%s488 + $0x18] sm:$0xff]
        %v2091 = vld [vmem:[%s488 + $0x20] sm:$0xff]
        %v2092 = vld [vmem:[%s488 + $0x28] sm:$0xff]
        %v2093 = vld [vmem:[%s488 + $0x30] sm:$0xff]
        %v2094 = vld [vmem:[%s488 + $0x38] sm:$0xff]
        %v2095 = vld [vmem:[%s488 + $0x40] sm:$0xff]
        %v2096 = vld [vmem:[%s488 + $0x48] sm:$0xff]
        %v2097 = vld [vmem:[%s488 + $0x50] sm:$0xff]
        %v2098 = vld [vmem:[%s488 + $0x58] sm:$0xff]
        %v2099 = vld [vmem:[%s488 + $0x60] sm:$0xff]
        %v2100 = vld [vmem:[%s488 + $0x68] sm:$0xff]
        %v2101 = vld [vmem:[%s488 + $0x70] sm:$0xff]
        %v2102 = vld [vmem:[%s488 + $0x78] sm:$0xff]
        %v2103 = vld [vmem:[%s488 + $0x80] sm:$0xff]
        %v2104 = vld [vmem:[%s488 + $0x88] sm:$0xff]
        %v2105 = vld [vmem:[%s488 + $0x90] sm:$0xff]
        %v2106 = vld [vmem:[%s488 + $0x98] sm:$0xff]
        %v2107 = vld [vmem:[%s488 + $0xa0] sm:$0xff]
        %v2108 = vld [vmem:[%s488 + $0xa8] sm:$0xff]
        %v2109 = vld [vmem:[%s488 + $0xb0] sm:$0xff]
        %v2110 = vld [vmem:[%s488 + $0xb8] sm:$0xff]
        %v2111 = vld [vmem:[%s488 + $0xc0] sm:$0xff]
        %v2112 = vld [vmem:[%s488 + $0xc8] sm:$0xff]
        %v2113 = vld [vmem:[%s488 + $0xd0] sm:$0xff]
        %v2114 = vld [vmem:[%s488 + $0xd8] sm:$0xff]
        %v2115 = vld [vmem:[%s488 + $0xe0] sm:$0xff]
        %v2116 = vld [vmem:[%s488 + $0xe8] sm:$0xff]
        %v2117 = vld [vmem:[%s488 + $0xf0] sm:$0xff]
        %v2118 = vld [vmem:[%s488 + $0xf8] sm:$0xff]
        %v2119 = vld [vmem:[%s488 + $0x100] sm:$0xff]
        %v2120 = vld [vmem:[%s488 + $0x108] sm:$0xff]
        %v2121 = vld [vmem:[%s488 + $0x110] sm:$0xff]
        %v2122 = vld [vmem:[%s488 + $0x118] sm:$0xff]
        %v2123 = vld [vmem:[%s488 + $0x120] sm:$0xff]
        %v2124 = vld [vmem:[%s488 + $0x128] sm:$0xff]
        %v2125 = vld [vmem:[%s488 + $0x130] sm:$0xff]
        %v2126 = vld [vmem:[%s488 + $0x138] sm:$0xff]
        %v2127 = vld [vmem:[%s488 + $0x140] sm:$0xff]
        %v2128 = vld [vmem:[%s488 + $0x148] sm:$0xff]
        %v2129 = vld [vmem:[%s488 + $0x150] sm:$0xff]
        %v2130 = vld [vmem:[%s488 + $0x158] sm:$0xff]
        %v2131 = vld [vmem:[%s488 + $0x160] sm:$0xff]
        %v2132 = vld [vmem:[%s488 + $0x168] sm:$0xff]
        %v2133 = vld [vmem:[%s488 + $0x170] sm:$0xff]
        %v2134 = vld [vmem:[%s488 + $0x178] sm:$0xff]
        %v2135 = vld [vmem:[%s488 + $0x180] sm:$0xff]
        %v2136 = vld [vmem:[%s488 + $0x188] sm:$0xff]
        %v2137 = vld [vmem:[%s488 + $0x190] sm:$0xff]
        %v2138 = vld [vmem:[%s488 + $0x198] sm:$0xff]
        %v2139 = vld [vmem:[%s488 + $0x1a0] sm:$0xff]
        %v2140 = vld [vmem:[%s488 + $0x1a8] sm:$0xff]
        %v2141 = vld [vmem:[%s488 + $0x1b0] sm:$0xff]
        %v2142 = vld [vmem:[%s488 + $0x1b8] sm:$0xff]
        %v2143 = vld [vmem:[%s488 + $0x1c0] sm:$0xff]
        %v2144 = vld [vmem:[%s488 + $0x1c8] sm:$0xff]
        %v2145 = vld [vmem:[%s488 + $0x1d0] sm:$0xff]
        %v2146 = vld [vmem:[%s488 + $0x1d8] sm:$0xff]
        %v2147 = vld [vmem:[%s488 + $0x1e0] sm:$0xff]
        %v2148 = vld [vmem:[%s488 + $0x1e8] sm:$0xff]
        %v2149 = vld [vmem:[%s488 + $0x1f0] sm:$0xff]
        %v2150 = vld [vmem:[%s488 + $0x1f8] sm:$0xff]
        %2151 = vmatprep.subr.mxu0 %v2088
        %2152 = vmatpush1.msra.mxu0 %v2087
        %2153 = vmatprep.subr.mxu0 %v2092
        %2154 = vmatpush1.msra.mxu0 %v2091
        %2155 = vmatprep.subr.mxu0 %v2096
        %2156 = vmatpush1.msra.mxu0 %v2095
        %2157 = vmatprep.subr.mxu0 %v2100
        %2158 = vmatpush1.msra.mxu0 %v2099
        %2159 = vmatprep.subr.mxu0 %v2104
        %2160 = vmatpush1.msra.mxu0 %v2103
        %2161 = vmatprep.subr.mxu0 %v2108
        %2162 = vmatpush1.msra.mxu0 %v2107
        %2163 = vmatprep.subr.mxu0 %v2112
        %2164 = vmatpush1.msra.mxu0 %v2111
        %2165 = vmatprep.subr.mxu0 %v2116
        %2166 = vmatpush1.msra.mxu0 %v2115
        %2167 = vmatprep.subr.mxu0 %v2120
        %2168 = vmatpush1.msra.mxu0 %v2119
        %2169 = vmatprep.subr.mxu0 %v2124
        %2170 = vmatpush1.msra.mxu0 %v2123
        %2171 = vmatprep.subr.mxu0 %v2128
        %2172 = vmatpush1.msra.mxu0 %v2127
        %2173 = vmatprep.subr.mxu0 %v2132
        %2174 = vmatpush1.msra.mxu0 %v2131
        %2175 = vmatprep.subr.mxu0 %v2136
        %2176 = vmatpush1.msra.mxu0 %v2135
        %2177 = vmatprep.subr.mxu0 %v2140
        %2178 = vmatpush1.msra.mxu0 %v2139
        %2179 = vmatprep.subr.mxu0 %v2144
        %2180 = vmatpush1.msra.mxu0 %v2143
        %2181 = vmatprep.subr.mxu0 %v2148
        %2182 = vmatpush1.msra.mxu0 %v2147
        %2183 = vmatprep.subr.mxu0 0.0
        %2184 = vmatpush1.msra.mxu0 0.0
        %2185 = vmatprep.subr.mxu0 0.0
        %2186 = vmatpush1.msra.mxu0 0.0
        %2187 = vmatprep.subr.mxu0 0.0
        %2188 = vmatpush1.msra.mxu0 0.0
        %2189 = vmatprep.subr.mxu0 0.0
        %2190 = vmatpush1.msra.mxu0 0.0
        %2191 = vmatprep.subr.mxu0 0.0
        %2192 = vmatpush1.msra.mxu0 0.0
        %2193 = vmatprep.subr.mxu0 0.0
        %2194 = vmatpush1.msra.mxu0 0.0
        %2195 = vmatprep.subr.mxu0 0.0
        %2196 = vmatpush1.msra.mxu0 0.0
        %2197 = vmatprep.subr.mxu0 0.0
        %2198 = vmatpush1.msra.mxu0 0.0
        %2199 = vmatprep.subr.mxu0 0.0
        %2200 = vmatpush1.msra.mxu0 0.0
        %2201 = vmatprep.subr.mxu0 0.0
        %2202 = vmatpush1.msra.mxu0 0.0
        %2203 = vmatprep.subr.mxu0 0.0
        %2204 = vmatpush1.msra.mxu0 0.0
        %2205 = vmatprep.subr.mxu0 0.0
        %2206 = vmatpush1.msra.mxu0 0.0
        %2207 = vmatprep.subr.mxu0 0.0
        %2208 = vmatpush1.msra.mxu0 0.0
        %2209 = vmatprep.subr.mxu0 0.0
        %2210 = vmatpush1.msra.mxu0 0.0
        %2211 = vmatprep.subr.mxu0 0.0
        %2212 = vmatpush1.msra.mxu0 0.0
        %2213 = vmatprep.subr.mxu0 0.0
        %2214 = vmatpush1.msra.mxu0 0.0
        %2215 = vmatprep.mubr.f32.mxu0 0.0
        %2216 = vmatmul.mubr.f32.gmra.mrb[0].mxu0 %v2072
        %v2217 = vpop.f32.mrb[0].mxu0
        %v2218 = vadd.f32 0.0, %v2217
        %v2219 = vpop.f32.mrb[0].mxu0
        %v2220 = vadd.f32 0.0, %v2219
        %2221 = vdwg.mxu0
        %2222 = vmatprep.subr.mxu0 %v2090
        %2223 = vmatpush1.msra.mxu0 %v2089
        %2224 = vmatprep.subr.mxu0 %v2094
        %2225 = vmatpush1.msra.mxu0 %v2093
        %2226 = vmatprep.subr.mxu0 %v2098
        %2227 = vmatpush1.msra.mxu0 %v2097
        %2228 = vmatprep.subr.mxu0 %v2102
        %2229 = vmatpush1.msra.mxu0 %v2101
        %2230 = vmatprep.subr.mxu0 %v2106
        %2231 = vmatpush1.msra.mxu0 %v2105
        %2232 = vmatprep.subr.mxu0 %v2110
        %2233 = vmatpush1.msra.mxu0 %v2109
        %2234 = vmatprep.subr.mxu0 %v2114
        %2235 = vmatpush1.msra.mxu0 %v2113
        %2236 = vmatprep.subr.mxu0 %v2118
        %2237 = vmatpush1.msra.mxu0 %v2117
        %2238 = vmatprep.subr.mxu0 %v2122
        %2239 = vmatpush1.msra.mxu0 %v2121
        %2240 = vmatprep.subr.mxu0 %v2126
        %2241 = vmatpush1.msra.mxu0 %v2125
        %2242 = vmatprep.subr.mxu0 %v2130
        %2243 = vmatpush1.msra.mxu0 %v2129
        %2244 = vmatprep.subr.mxu0 %v2134
        %2245 = vmatpush1.msra.mxu0 %v2133
        %2246 = vmatprep.subr.mxu0 %v2138
        %2247 = vmatpush1.msra.mxu0 %v2137
        %2248 = vmatprep.subr.mxu0 %v2142
        %2249 = vmatpush1.msra.mxu0 %v2141
        %2250 = vmatprep.subr.mxu0 %v2146
        %2251 = vmatpush1.msra.mxu0 %v2145
        %2252 = vmatprep.subr.mxu0 %v2150
        %2253 = vmatpush1.msra.mxu0 %v2149
        %2254 = vmatprep.subr.mxu0 0.0
        %2255 = vmatpush1.msra.mxu0 0.0
        %2256 = vmatprep.subr.mxu0 0.0
        %2257 = vmatpush1.msra.mxu0 0.0
        %2258 = vmatprep.subr.mxu0 0.0
        %2259 = vmatpush1.msra.mxu0 0.0
        %2260 = vmatprep.subr.mxu0 0.0
        %2261 = vmatpush1.msra.mxu0 0.0
        %2262 = vmatprep.subr.mxu0 0.0
        %2263 = vmatpush1.msra.mxu0 0.0
        %2264 = vmatprep.subr.mxu0 0.0
        %2265 = vmatpush1.msra.mxu0 0.0
        %2266 = vmatprep.subr.mxu0 0.0
        %2267 = vmatpush1.msra.mxu0 0.0
        %2268 = vmatprep.subr.mxu0 0.0
        %2269 = vmatpush1.msra.mxu0 0.0
        %2270 = vmatprep.subr.mxu0 0.0
        %2271 = vmatpush1.msra.mxu0 0.0
        %2272 = vmatprep.subr.mxu0 0.0
        %2273 = vmatpush1.msra.mxu0 0.0
        %2274 = vmatprep.subr.mxu0 0.0
        %2275 = vmatpush1.msra.mxu0 0.0
        %2276 = vmatprep.subr.mxu0 0.0
        %2277 = vmatpush1.msra.mxu0 0.0
        %2278 = vmatprep.subr.mxu0 0.0
        %2279 = vmatpush1.msra.mxu0 0.0
        %2280 = vmatprep.subr.mxu0 0.0
        %2281 = vmatpush1.msra.mxu0 0.0
        %2282 = vmatprep.subr.mxu0 0.0
        %2283 = vmatpush1.msra.mxu0 0.0
        %2284 = vmatprep.subr.mxu0 0.0
        %2285 = vmatpush1.msra.mxu0 0.0
        %2286 = vmatprep.mubr.f32.mxu0 0.0
        %2287 = vmatmul.mubr.f32.gmra.mrb[0].mxu0 %v2072
        %v2288 = vpop.f32.mrb[0].mxu0
        %v2289 = vadd.f32 0.0, %v2288
        %v2290 = vpop.f32.mrb[0].mxu0
        %v2291 = vadd.f32 0.0, %v2290
        %2292 = vdwg.mxu0
        %v2293 = vadd.f32 %v2083, %v2218
        %v2294 = vadd.f32 %v2084, %v2220
        %v2295 = vadd.f32 %v2085, %v2289
        %v2296 = vadd.f32 %v2086, %v2291
        %v2297 = vxor.u32 %v2293, 2147483648
        %v2298 = vmul.f32 %v2297, 1.442695
        %v2299 = vpow.pop %v2298
        %v2300 = vadd.f32 %v2299, 1.0
        %v2301 = vrcp.pop %v2300
        %v2302 = vmul.f32 1.0, %v2301
        %v2303 = vxor.u32 %v2294, 2147483648
        %v2304 = vmul.f32 %v2303, 1.442695
        %v2305 = vpow.pop %v2304
        %v2306 = vadd.f32 %v2305, 1.0
        %v2307 = vrcp.pop %v2306
        %v2308 = vmul.f32 1.0, %v2307
        %v2309 = vtanh.pop %v2295
        %v2310 = vxor.u32 %v2296, 2147483648
        %v2311 = vmul.f32 %v2310, 1.442695
        %v2312 = vpow.pop %v2311
        %v2313 = vadd.f32 %v2312, 1.0
        %v2314 = vrcp.pop %v2313
        %v2315 = vmul.f32 1.0, %v2314
        %v2316 = vmul.f32 %v2308, %v2070
        %v2317 = vmul.f32 %v2302, %v2309
        %v2318 = vadd.f32 %v2316, %v2317
        %v2319 = vtanh.pop %v2318
        %v2320 = vmul.f32 %v2315, %v2319
        %s2321 = sadd.s32 %s2077, %s1574
        %s2322 = scalar_lea.vmem [#allocation2], %s2321
        %2323 = vst [vmem:[%s2322] sm:$0xff] %v2320
        %s2324 = ssub.s32 4, %s43
        %s2325 = smul.u32 %s2324, 8
        %s2326 = sshra.s32 %s2325, 3
        %s2327 = sand.u32 %s2325, 7
        %s2328 = smul.u32 %s2326, 4
        %s2329 = smul.addr %s2328, 8
        %s2330 = scalar_lea.vmem [#allocation3], %s2329
        %v2331 = vld [vmem:[%s2330] sm:$0xff]
        %v2332 = vld [vmem:[%s2330 + $0x8] sm:$0xff]
        %v2333 = vld [vmem:[%s2330 + $0x10] sm:$0xff]
        %v2334 = vld [vmem:[%s2330 + $0x18] sm:$0xff]
        %v2335 = vld [vmem:[%s488] sm:$0xff]
        %v2336 = vld [vmem:[%s488 + $0x8] sm:$0xff]
        %v2337 = vld [vmem:[%s488 + $0x10] sm:$0xff]
        %v2338 = vld [vmem:[%s488 + $0x18] sm:$0xff]
        %v2339 = vld [vmem:[%s488 + $0x20] sm:$0xff]
        %v2340 = vld [vmem:[%s488 + $0x28] sm:$0xff]
        %v2341 = vld [vmem:[%s488 + $0x30] sm:$0xff]
        %v2342 = vld [vmem:[%s488 + $0x38] sm:$0xff]
        %v2343 = vld [vmem:[%s488 + $0x40] sm:$0xff]
        %v2344 = vld [vmem:[%s488 + $0x48] sm:$0xff]
        %v2345 = vld [vmem:[%s488 + $0x50] sm:$0xff]
        %v2346 = vld [vmem:[%s488 + $0x58] sm:$0xff]
        %v2347 = vld [vmem:[%s488 + $0x60] sm:$0xff]
        %v2348 = vld [vmem:[%s488 + $0x68] sm:$0xff]
        %v2349 = vld [vmem:[%s488 + $0x70] sm:$0xff]
        %v2350 = vld [vmem:[%s488 + $0x78] sm:$0xff]
        %v2351 = vld [vmem:[%s488 + $0x80] sm:$0xff]
        %v2352 = vld [vmem:[%s488 + $0x88] sm:$0xff]
        %v2353 = vld [vmem:[%s488 + $0x90] sm:$0xff]
        %v2354 = vld [vmem:[%s488 + $0x98] sm:$0xff]
        %v2355 = vld [vmem:[%s488 + $0xa0] sm:$0xff]
        %v2356 = vld [vmem:[%s488 + $0xa8] sm:$0xff]
        %v2357 = vld [vmem:[%s488 + $0xb0] sm:$0xff]
        %v2358 = vld [vmem:[%s488 + $0xb8] sm:$0xff]
        %v2359 = vld [vmem:[%s488 + $0xc0] sm:$0xff]
        %v2360 = vld [vmem:[%s488 + $0xc8] sm:$0xff]
        %v2361 = vld [vmem:[%s488 + $0xd0] sm:$0xff]
        %v2362 = vld [vmem:[%s488 + $0xd8] sm:$0xff]
        %v2363 = vld [vmem:[%s488 + $0xe0] sm:$0xff]
        %v2364 = vld [vmem:[%s488 + $0xe8] sm:$0xff]
        %v2365 = vld [vmem:[%s488 + $0xf0] sm:$0xff]
        %v2366 = vld [vmem:[%s488 + $0xf8] sm:$0xff]
        %v2367 = vld [vmem:[%s488 + $0x100] sm:$0xff]
        %v2368 = vld [vmem:[%s488 + $0x108] sm:$0xff]
        %v2369 = vld [vmem:[%s488 + $0x110] sm:$0xff]
        %v2370 = vld [vmem:[%s488 + $0x118] sm:$0xff]
        %v2371 = vld [vmem:[%s488 + $0x120] sm:$0xff]
        %v2372 = vld [vmem:[%s488 + $0x128] sm:$0xff]
        %v2373 = vld [vmem:[%s488 + $0x130] sm:$0xff]
        %v2374 = vld [vmem:[%s488 + $0x138] sm:$0xff]
        %v2375 = vld [vmem:[%s488 + $0x140] sm:$0xff]
        %v2376 = vld [vmem:[%s488 + $0x148] sm:$0xff]
        %v2377 = vld [vmem:[%s488 + $0x150] sm:$0xff]
        %v2378 = vld [vmem:[%s488 + $0x158] sm:$0xff]
        %v2379 = vld [vmem:[%s488 + $0x160] sm:$0xff]
        %v2380 = vld [vmem:[%s488 + $0x168] sm:$0xff]
        %v2381 = vld [vmem:[%s488 + $0x170] sm:$0xff]
        %v2382 = vld [vmem:[%s488 + $0x178] sm:$0xff]
        %v2383 = vld [vmem:[%s488 + $0x180] sm:$0xff]
        %v2384 = vld [vmem:[%s488 + $0x188] sm:$0xff]
        %v2385 = vld [vmem:[%s488 + $0x190] sm:$0xff]
        %v2386 = vld [vmem:[%s488 + $0x198] sm:$0xff]
        %v2387 = vld [vmem:[%s488 + $0x1a0] sm:$0xff]
        %v2388 = vld [vmem:[%s488 + $0x1a8] sm:$0xff]
        %v2389 = vld [vmem:[%s488 + $0x1b0] sm:$0xff]
        %v2390 = vld [vmem:[%s488 + $0x1b8] sm:$0xff]
        %v2391 = vld [vmem:[%s488 + $0x1c0] sm:$0xff]
        %v2392 = vld [vmem:[%s488 + $0x1c8] sm:$0xff]
        %v2393 = vld [vmem:[%s488 + $0x1d0] sm:$0xff]
        %v2394 = vld [vmem:[%s488 + $0x1d8] sm:$0xff]
        %v2395 = vld [vmem:[%s488 + $0x1e0] sm:$0xff]
        %v2396 = vld [vmem:[%s488 + $0x1e8] sm:$0xff]
        %v2397 = vld [vmem:[%s488 + $0x1f0] sm:$0xff]
        %v2398 = vld [vmem:[%s488 + $0x1f8] sm:$0xff]
        %2399 = vmatprep.subr.mxu0 %v2336
        %2400 = vmatpush1.msra.mxu0 %v2335
        %2401 = vmatprep.subr.mxu0 %v2340
        %2402 = vmatpush1.msra.mxu0 %v2339
        %2403 = vmatprep.subr.mxu0 %v2344
        %2404 = vmatpush1.msra.mxu0 %v2343
        %2405 = vmatprep.subr.mxu0 %v2348
        %2406 = vmatpush1.msra.mxu0 %v2347
        %2407 = vmatprep.subr.mxu0 %v2352
        %2408 = vmatpush1.msra.mxu0 %v2351
        %2409 = vmatprep.subr.mxu0 %v2356
        %2410 = vmatpush1.msra.mxu0 %v2355
        %2411 = vmatprep.subr.mxu0 %v2360
        %2412 = vmatpush1.msra.mxu0 %v2359
        %2413 = vmatprep.subr.mxu0 %v2364
        %2414 = vmatpush1.msra.mxu0 %v2363
        %2415 = vmatprep.subr.mxu0 %v2368
        %2416 = vmatpush1.msra.mxu0 %v2367
        %2417 = vmatprep.subr.mxu0 %v2372
        %2418 = vmatpush1.msra.mxu0 %v2371
        %2419 = vmatprep.subr.mxu0 %v2376
        %2420 = vmatpush1.msra.mxu0 %v2375
        %2421 = vmatprep.subr.mxu0 %v2380
        %2422 = vmatpush1.msra.mxu0 %v2379
        %2423 = vmatprep.subr.mxu0 %v2384
        %2424 = vmatpush1.msra.mxu0 %v2383
        %2425 = vmatprep.subr.mxu0 %v2388
        %2426 = vmatpush1.msra.mxu0 %v2387
        %2427 = vmatprep.subr.mxu0 %v2392
        %2428 = vmatpush1.msra.mxu0 %v2391
        %2429 = vmatprep.subr.mxu0 %v2396
        %2430 = vmatpush1.msra.mxu0 %v2395
        %2431 = vmatprep.subr.mxu0 0.0
        %2432 = vmatpush1.msra.mxu0 0.0
        %2433 = vmatprep.subr.mxu0 0.0
        %2434 = vmatpush1.msra.mxu0 0.0
        %2435 = vmatprep.subr.mxu0 0.0
        %2436 = vmatpush1.msra.mxu0 0.0
        %2437 = vmatprep.subr.mxu0 0.0
        %2438 = vmatpush1.msra.mxu0 0.0
        %2439 = vmatprep.subr.mxu0 0.0
        %2440 = vmatpush1.msra.mxu0 0.0
        %2441 = vmatprep.subr.mxu0 0.0
        %2442 = vmatpush1.msra.mxu0 0.0
        %2443 = vmatprep.subr.mxu0 0.0
        %2444 = vmatpush1.msra.mxu0 0.0
        %2445 = vmatprep.subr.mxu0 0.0
        %2446 = vmatpush1.msra.mxu0 0.0
        %2447 = vmatprep.subr.mxu0 0.0
        %2448 = vmatpush1.msra.mxu0 0.0
        %2449 = vmatprep.subr.mxu0 0.0
        %2450 = vmatpush1.msra.mxu0 0.0
        %2451 = vmatprep.subr.mxu0 0.0
        %2452 = vmatpush1.msra.mxu0 0.0
        %2453 = vmatprep.subr.mxu0 0.0
        %2454 = vmatpush1.msra.mxu0 0.0
        %2455 = vmatprep.subr.mxu0 0.0
        %2456 = vmatpush1.msra.mxu0 0.0
        %2457 = vmatprep.subr.mxu0 0.0
        %2458 = vmatpush1.msra.mxu0 0.0
        %2459 = vmatprep.subr.mxu0 0.0
        %2460 = vmatpush1.msra.mxu0 0.0
        %2461 = vmatprep.subr.mxu0 0.0
        %2462 = vmatpush1.msra.mxu0 0.0
        %2463 = vmatprep.mubr.f32.mxu0 0.0
        %2464 = vmatmul.mubr.f32.gmra.mrb[0].mxu0 %v2320
        %v2465 = vpop.f32.mrb[0].mxu0
        %v2466 = vadd.f32 0.0, %v2465
        %v2467 = vpop.f32.mrb[0].mxu0
        %v2468 = vadd.f32 0.0, %v2467
        %2469 = vdwg.mxu0
        %2470 = vmatprep.subr.mxu0 %v2338
        %2471 = vmatpush1.msra.mxu0 %v2337
        %2472 = vmatprep.subr.mxu0 %v2342
        %2473 = vmatpush1.msra.mxu0 %v2341
        %2474 = vmatprep.subr.mxu0 %v2346
        %2475 = vmatpush1.msra.mxu0 %v2345
        %2476 = vmatprep.subr.mxu0 %v2350
        %2477 = vmatpush1.msra.mxu0 %v2349
        %2478 = vmatprep.subr.mxu0 %v2354
        %2479 = vmatpush1.msra.mxu0 %v2353
        %2480 = vmatprep.subr.mxu0 %v2358
        %2481 = vmatpush1.msra.mxu0 %v2357
        %2482 = vmatprep.subr.mxu0 %v2362
        %2483 = vmatpush1.msra.mxu0 %v2361
        %2484 = vmatprep.subr.mxu0 %v2366
        %2485 = vmatpush1.msra.mxu0 %v2365
        %2486 = vmatprep.subr.mxu0 %v2370
        %2487 = vmatpush1.msra.mxu0 %v2369
        %2488 = vmatprep.subr.mxu0 %v2374
        %2489 = vmatpush1.msra.mxu0 %v2373
        %2490 = vmatprep.subr.mxu0 %v2378
        %2491 = vmatpush1.msra.mxu0 %v2377
        %2492 = vmatprep.subr.mxu0 %v2382
        %2493 = vmatpush1.msra.mxu0 %v2381
        %2494 = vmatprep.subr.mxu0 %v2386
        %2495 = vmatpush1.msra.mxu0 %v2385
        %2496 = vmatprep.subr.mxu0 %v2390
        %2497 = vmatpush1.msra.mxu0 %v2389
        %2498 = vmatprep.subr.mxu0 %v2394
        %2499 = vmatpush1.msra.mxu0 %v2393
        %2500 = vmatprep.subr.mxu0 %v2398
        %2501 = vmatpush1.msra.mxu0 %v2397
        %2502 = vmatprep.subr.mxu0 0.0
        %2503 = vmatpush1.msra.mxu0 0.0
        %2504 = vmatprep.subr.mxu0 0.0
        %2505 = vmatpush1.msra.mxu0 0.0
        %2506 = vmatprep.subr.mxu0 0.0
        %2507 = vmatpush1.msra.mxu0 0.0
        %2508 = vmatprep.subr.mxu0 0.0
        %2509 = vmatpush1.msra.mxu0 0.0
        %2510 = vmatprep.subr.mxu0 0.0
        %2511 = vmatpush1.msra.mxu0 0.0
        %2512 = vmatprep.subr.mxu0 0.0
        %2513 = vmatpush1.msra.mxu0 0.0
        %2514 = vmatprep.subr.mxu0 0.0
        %2515 = vmatpush1.msra.mxu0 0.0
        %2516 = vmatprep.subr.mxu0 0.0
        %2517 = vmatpush1.msra.mxu0 0.0
        %2518 = vmatprep.subr.mxu0 0.0
        %2519 = vmatpush1.msra.mxu0 0.0
        %2520 = vmatprep.subr.mxu0 0.0
        %2521 = vmatpush1.msra.mxu0 0.0
        %2522 = vmatprep.subr.mxu0 0.0
        %2523 = vmatpush1.msra.mxu0 0.0
        %2524 = vmatprep.subr.mxu0 0.0
        %2525 = vmatpush1.msra.mxu0 0.0
        %2526 = vmatprep.subr.mxu0 0.0
        %2527 = vmatpush1.msra.mxu0 0.0
        %2528 = vmatprep.subr.mxu0 0.0
        %2529 = vmatpush1.msra.mxu0 0.0
        %2530 = vmatprep.subr.mxu0 0.0
        %2531 = vmatpush1.msra.mxu0 0.0
        %2532 = vmatprep.subr.mxu0 0.0
        %2533 = vmatpush1.msra.mxu0 0.0
        %2534 = vmatprep.mubr.f32.mxu0 0.0
        %2535 = vmatmul.mubr.f32.gmra.mrb[0].mxu0 %v2320
        %v2536 = vpop.f32.mrb[0].mxu0
        %v2537 = vadd.f32 0.0, %v2536
        %v2538 = vpop.f32.mrb[0].mxu0
        %v2539 = vadd.f32 0.0, %v2538
        %2540 = vdwg.mxu0
        %v2541 = vadd.f32 %v2331, %v2466
        %v2542 = vadd.f32 %v2332, %v2468
        %v2543 = vadd.f32 %v2333, %v2537
        %v2544 = vadd.f32 %v2334, %v2539
        %v2545 = vxor.u32 %v2541, 2147483648
        %v2546 = vmul.f32 %v2545, 1.442695
        %v2547 = vpow.pop %v2546
        %v2548 = vadd.f32 %v2547, 1.0
        %v2549 = vrcp.pop %v2548
        %v2550 = vmul.f32 1.0, %v2549
        %v2551 = vxor.u32 %v2542, 2147483648
        %v2552 = vmul.f32 %v2551, 1.442695
        %v2553 = vpow.pop %v2552
        %v2554 = vadd.f32 %v2553, 1.0
        %v2555 = vrcp.pop %v2554
        %v2556 = vmul.f32 1.0, %v2555
        %v2557 = vtanh.pop %v2543
        %v2558 = vxor.u32 %v2544, 2147483648
        %v2559 = vmul.f32 %v2558, 1.442695
        %v2560 = vpow.pop %v2559
        %v2561 = vadd.f32 %v2560, 1.0
        %v2562 = vrcp.pop %v2561
        %v2563 = vmul.f32 1.0, %v2562
        %v2564 = vmul.f32 %v2556, %v2318
        %v2565 = vmul.f32 %v2550, %v2557
        %v2566 = vadd.f32 %v2564, %v2565
        %v2567 = vtanh.pop %v2566
        %v2568 = vmul.f32 %v2563, %v2567
        %s2569 = sadd.s32 %s2325, %s1574
        %s2570 = scalar_lea.vmem [#allocation2], %s2569
        %2571 = vst [vmem:[%s2570] sm:$0xff] %v2568
        %s2572 = smul.u32 %s43, 4294967293
        %s2573 = sadd.s32 %s2572, 5
        %s2574 = smul.u32 %s2573, 8
        %s2575 = sshra.s32 %s2574, 3
        %s2576 = sand.u32 %s2574, 7
        %s2577 = smul.u32 %s2575, 4
        %s2578 = smul.addr %s2577, 8
        %s2579 = scalar_lea.vmem [#allocation3], %s2578
        %v2580 = vld [vmem:[%s2579] sm:$0xff]
        %v2581 = vld [vmem:[%s2579 + $0x8] sm:$0xff]
        %v2582 = vld [vmem:[%s2579 + $0x10] sm:$0xff]
        %v2583 = vld [vmem:[%s2579 + $0x18] sm:$0xff]
        %v2584 = vld [vmem:[%s488] sm:$0xff]
        %v2585 = vld [vmem:[%s488 + $0x8] sm:$0xff]
        %v2586 = vld [vmem:[%s488 + $0x10] sm:$0xff]
        %v2587 = vld [vmem:[%s488 + $0x18] sm:$0xff]
        %v2588 = vld [vmem:[%s488 + $0x20] sm:$0xff]
        %v2589 = vld [vmem:[%s488 + $0x28] sm:$0xff]
        %v2590 = vld [vmem:[%s488 + $0x30] sm:$0xff]
        %v2591 = vld [vmem:[%s488 + $0x38] sm:$0xff]
        %v2592 = vld [vmem:[%s488 + $0x40] sm:$0xff]
        %v2593 = vld [vmem:[%s488 + $0x48] sm:$0xff]
        %v2594 = vld [vmem:[%s488 + $0x50] sm:$0xff]
        %v2595 = vld [vmem:[%s488 + $0x58] sm:$0xff]
        %v2596 = vld [vmem:[%s488 + $0x60] sm:$0xff]
        %v2597 = vld [vmem:[%s488 + $0x68] sm:$0xff]
        %v2598 = vld [vmem:[%s488 + $0x70] sm:$0xff]
        %v2599 = vld [vmem:[%s488 + $0x78] sm:$0xff]
        %v2600 = vld [vmem:[%s488 + $0x80] sm:$0xff]
        %v2601 = vld [vmem:[%s488 + $0x88] sm:$0xff]
        %v2602 = vld [vmem:[%s488 + $0x90] sm:$0xff]
        %v2603 = vld [vmem:[%s488 + $0x98] sm:$0xff]
        %v2604 = vld [vmem:[%s488 + $0xa0] sm:$0xff]
        %v2605 = vld [vmem:[%s488 + $0xa8] sm:$0xff]
        %v2606 = vld [vmem:[%s488 + $0xb0] sm:$0xff]
        %v2607 = vld [vmem:[%s488 + $0xb8] sm:$0xff]
        %v2608 = vld [vmem:[%s488 + $0xc0] sm:$0xff]
        %v2609 = vld [vmem:[%s488 + $0xc8] sm:$0xff]
        %v2610 = vld [vmem:[%s488 + $0xd0] sm:$0xff]
        %v2611 = vld [vmem:[%s488 + $0xd8] sm:$0xff]
        %v2612 = vld [vmem:[%s488 + $0xe0] sm:$0xff]
        %v2613 = vld [vmem:[%s488 + $0xe8] sm:$0xff]
        %v2614 = vld [vmem:[%s488 + $0xf0] sm:$0xff]
        %v2615 = vld [vmem:[%s488 + $0xf8] sm:$0xff]
        %v2616 = vld [vmem:[%s488 + $0x100] sm:$0xff]
        %v2617 = vld [vmem:[%s488 + $0x108] sm:$0xff]
        %v2618 = vld [vmem:[%s488 + $0x110] sm:$0xff]
        %v2619 = vld [vmem:[%s488 + $0x118] sm:$0xff]
        %v2620 = vld [vmem:[%s488 + $0x120] sm:$0xff]
        %v2621 = vld [vmem:[%s488 + $0x128] sm:$0xff]
        %v2622 = vld [vmem:[%s488 + $0x130] sm:$0xff]
        %v2623 = vld [vmem:[%s488 + $0x138] sm:$0xff]
        %v2624 = vld [vmem:[%s488 + $0x140] sm:$0xff]
        %v2625 = vld [vmem:[%s488 + $0x148] sm:$0xff]
        %v2626 = vld [vmem:[%s488 + $0x150] sm:$0xff]
        %v2627 = vld [vmem:[%s488 + $0x158] sm:$0xff]
        %v2628 = vld [vmem:[%s488 + $0x160] sm:$0xff]
        %v2629 = vld [vmem:[%s488 + $0x168] sm:$0xff]
        %v2630 = vld [vmem:[%s488 + $0x170] sm:$0xff]
        %v2631 = vld [vmem:[%s488 + $0x178] sm:$0xff]
        %v2632 = vld [vmem:[%s488 + $0x180] sm:$0xff]
        %v2633 = vld [vmem:[%s488 + $0x188] sm:$0xff]
        %v2634 = vld [vmem:[%s488 + $0x190] sm:$0xff]
        %v2635 = vld [vmem:[%s488 + $0x198] sm:$0xff]
        %v2636 = vld [vmem:[%s488 + $0x1a0] sm:$0xff]
        %v2637 = vld [vmem:[%s488 + $0x1a8] sm:$0xff]
        %v2638 = vld [vmem:[%s488 + $0x1b0] sm:$0xff]
        %v2639 = vld [vmem:[%s488 + $0x1b8] sm:$0xff]
        %v2640 = vld [vmem:[%s488 + $0x1c0] sm:$0xff]
        %v2641 = vld [vmem:[%s488 + $0x1c8] sm:$0xff]
        %v2642 = vld [vmem:[%s488 + $0x1d0] sm:$0xff]
        %v2643 = vld [vmem:[%s488 + $0x1d8] sm:$0xff]
        %v2644 = vld [vmem:[%s488 + $0x1e0] sm:$0xff]
        %v2645 = vld [vmem:[%s488 + $0x1e8] sm:$0xff]
        %v2646 = vld [vmem:[%s488 + $0x1f0] sm:$0xff]
        %v2647 = vld [vmem:[%s488 + $0x1f8] sm:$0xff]
        %2648 = vmatprep.subr.mxu0 %v2585
        %2649 = vmatpush1.msra.mxu0 %v2584
        %2650 = vmatprep.subr.mxu0 %v2589
        %2651 = vmatpush1.msra.mxu0 %v2588
        %2652 = vmatprep.subr.mxu0 %v2593
        %2653 = vmatpush1.msra.mxu0 %v2592
        %2654 = vmatprep.subr.mxu0 %v2597
        %2655 = vmatpush1.msra.mxu0 %v2596
        %2656 = vmatprep.subr.mxu0 %v2601
        %2657 = vmatpush1.msra.mxu0 %v2600
        %2658 = vmatprep.subr.mxu0 %v2605
        %2659 = vmatpush1.msra.mxu0 %v2604
        %2660 = vmatprep.subr.mxu0 %v2609
        %2661 = vmatpush1.msra.mxu0 %v2608
        %2662 = vmatprep.subr.mxu0 %v2613
        %2663 = vmatpush1.msra.mxu0 %v2612
        %2664 = vmatprep.subr.mxu0 %v2617
        %2665 = vmatpush1.msra.mxu0 %v2616
        %2666 = vmatprep.subr.mxu0 %v2621
        %2667 = vmatpush1.msra.mxu0 %v2620
        %2668 = vmatprep.subr.mxu0 %v2625
        %2669 = vmatpush1.msra.mxu0 %v2624
        %2670 = vmatprep.subr.mxu0 %v2629
        %2671 = vmatpush1.msra.mxu0 %v2628
        %2672 = vmatprep.subr.mxu0 %v2633
        %2673 = vmatpush1.msra.mxu0 %v2632
        %2674 = vmatprep.subr.mxu0 %v2637
        %2675 = vmatpush1.msra.mxu0 %v2636
        %2676 = vmatprep.subr.mxu0 %v2641
        %2677 = vmatpush1.msra.mxu0 %v2640
        %2678 = vmatprep.subr.mxu0 %v2645
        %2679 = vmatpush1.msra.mxu0 %v2644
        %2680 = vmatprep.subr.mxu0 0.0
        %2681 = vmatpush1.msra.mxu0 0.0
        %2682 = vmatprep.subr.mxu0 0.0
        %2683 = vmatpush1.msra.mxu0 0.0
        %2684 = vmatprep.subr.mxu0 0.0
        %2685 = vmatpush1.msra.mxu0 0.0
        %2686 = vmatprep.subr.mxu0 0.0
        %2687 = vmatpush1.msra.mxu0 0.0
        %2688 = vmatprep.subr.mxu0 0.0
        %2689 = vmatpush1.msra.mxu0 0.0
        %2690 = vmatprep.subr.mxu0 0.0
        %2691 = vmatpush1.msra.mxu0 0.0
        %2692 = vmatprep.subr.mxu0 0.0
        %2693 = vmatpush1.msra.mxu0 0.0
        %2694 = vmatprep.subr.mxu0 0.0
        %2695 = vmatpush1.msra.mxu0 0.0
        %2696 = vmatprep.subr.mxu0 0.0
        %2697 = vmatpush1.msra.mxu0 0.0
        %2698 = vmatprep.subr.mxu0 0.0
        %2699 = vmatpush1.msra.mxu0 0.0
        %2700 = vmatprep.subr.mxu0 0.0
        %2701 = vmatpush1.msra.mxu0 0.0
        %2702 = vmatprep.subr.mxu0 0.0
        %2703 = vmatpush1.msra.mxu0 0.0
        %2704 = vmatprep.subr.mxu0 0.0
        %2705 = vmatpush1.msra.mxu0 0.0
        %2706 = vmatprep.subr.mxu0 0.0
        %2707 = vmatpush1.msra.mxu0 0.0
        %2708 = vmatprep.subr.mxu0 0.0
        %2709 = vmatpush1.msra.mxu0 0.0
        %2710 = vmatprep.subr.mxu0 0.0
        %2711 = vmatpush1.msra.mxu0 0.0
        %2712 = vmatprep.mubr.f32.mxu0 0.0
        %2713 = vmatmul.mubr.f32.gmra.mrb[0].mxu0 %v2568
        %v2714 = vpop.f32.mrb[0].mxu0
        %v2715 = vadd.f32 0.0, %v2714
        %v2716 = vpop.f32.mrb[0].mxu0
        %v2717 = vadd.f32 0.0, %v2716
        %2718 = vdwg.mxu0
        %2719 = vmatprep.subr.mxu0 %v2587
        %2720 = vmatpush1.msra.mxu0 %v2586
        %2721 = vmatprep.subr.mxu0 %v2591
        %2722 = vmatpush1.msra.mxu0 %v2590
        %2723 = vmatprep.subr.mxu0 %v2595
        %2724 = vmatpush1.msra.mxu0 %v2594
        %2725 = vmatprep.subr.mxu0 %v2599
        %2726 = vmatpush1.msra.mxu0 %v2598
        %2727 = vmatprep.subr.mxu0 %v2603
        %2728 = vmatpush1.msra.mxu0 %v2602
        %2729 = vmatprep.subr.mxu0 %v2607
        %2730 = vmatpush1.msra.mxu0 %v2606
        %2731 = vmatprep.subr.mxu0 %v2611
        %2732 = vmatpush1.msra.mxu0 %v2610
        %2733 = vmatprep.subr.mxu0 %v2615
        %2734 = vmatpush1.msra.mxu0 %v2614
        %2735 = vmatprep.subr.mxu0 %v2619
        %2736 = vmatpush1.msra.mxu0 %v2618
        %2737 = vmatprep.subr.mxu0 %v2623
        %2738 = vmatpush1.msra.mxu0 %v2622
        %2739 = vmatprep.subr.mxu0 %v2627
        %2740 = vmatpush1.msra.mxu0 %v2626
        %2741 = vmatprep.subr.mxu0 %v2631
        %2742 = vmatpush1.msra.mxu0 %v2630
        %2743 = vmatprep.subr.mxu0 %v2635
        %2744 = vmatpush1.msra.mxu0 %v2634
        %2745 = vmatprep.subr.mxu0 %v2639
        %2746 = vmatpush1.msra.mxu0 %v2638
        %2747 = vmatprep.subr.mxu0 %v2643
        %2748 = vmatpush1.msra.mxu0 %v2642
        %2749 = vmatprep.subr.mxu0 %v2647
        %2750 = vmatpush1.msra.mxu0 %v2646
        %2751 = vmatprep.subr.mxu0 0.0
        %2752 = vmatpush1.msra.mxu0 0.0
        %2753 = vmatprep.subr.mxu0 0.0
        %2754 = vmatpush1.msra.mxu0 0.0
        %2755 = vmatprep.subr.mxu0 0.0
        %2756 = vmatpush1.msra.mxu0 0.0
        %2757 = vmatprep.subr.mxu0 0.0
        %2758 = vmatpush1.msra.mxu0 0.0
        %2759 = vmatprep.subr.mxu0 0.0
        %2760 = vmatpush1.msra.mxu0 0.0
        %2761 = vmatprep.subr.mxu0 0.0
        %2762 = vmatpush1.msra.mxu0 0.0
        %2763 = vmatprep.subr.mxu0 0.0
        %2764 = vmatpush1.msra.mxu0 0.0
        %2765 = vmatprep.subr.mxu0 0.0
        %2766 = vmatpush1.msra.mxu0 0.0
        %2767 = vmatprep.subr.mxu0 0.0
        %2768 = vmatpush1.msra.mxu0 0.0
        %2769 = vmatprep.subr.mxu0 0.0
        %2770 = vmatpush1.msra.mxu0 0.0
        %2771 = vmatprep.subr.mxu0 0.0
        %2772 = vmatpush1.msra.mxu0 0.0
        %2773 = vmatprep.subr.mxu0 0.0
        %2774 = vmatpush1.msra.mxu0 0.0
        %2775 = vmatprep.subr.mxu0 0.0
        %2776 = vmatpush1.msra.mxu0 0.0
        %2777 = vmatprep.subr.mxu0 0.0
        %2778 = vmatpush1.msra.mxu0 0.0
        %2779 = vmatprep.subr.mxu0 0.0
        %2780 = vmatpush1.msra.mxu0 0.0
        %2781 = vmatprep.subr.mxu0 0.0
        %2782 = vmatpush1.msra.mxu0 0.0
        %2783 = vmatprep.mubr.f32.mxu0 0.0
        %2784 = vmatmul.mubr.f32.gmra.mrb[0].mxu0 %v2568
        %v2785 = vpop.f32.mrb[0].mxu0
        %v2786 = vadd.f32 0.0, %v2785
        %v2787 = vpop.f32.mrb[0].mxu0
        %v2788 = vadd.f32 0.0, %v2787
        %2789 = vdwg.mxu0
        %v2790 = vadd.f32 %v2580, %v2715
        %v2791 = vadd.f32 %v2581, %v2717
        %v2792 = vadd.f32 %v2582, %v2786
        %v2793 = vadd.f32 %v2583, %v2788
        %v2794 = vxor.u32 %v2790, 2147483648
        %v2795 = vmul.f32 %v2794, 1.442695
        %v2796 = vpow.pop %v2795
        %v2797 = vadd.f32 %v2796, 1.0
        %v2798 = vrcp.pop %v2797
        %v2799 = vmul.f32 1.0, %v2798
        %v2800 = vxor.u32 %v2791, 2147483648
        %v2801 = vmul.f32 %v2800, 1.442695
        %v2802 = vpow.pop %v2801
        %v2803 = vadd.f32 %v2802, 1.0
        %v2804 = vrcp.pop %v2803
        %v2805 = vmul.f32 1.0, %v2804
        %v2806 = vtanh.pop %v2792
        %v2807 = vxor.u32 %v2793, 2147483648
        %v2808 = vmul.f32 %v2807, 1.442695
        %v2809 = vpow.pop %v2808
        %v2810 = vadd.f32 %v2809, 1.0
        %v2811 = vrcp.pop %v2810
        %v2812 = vmul.f32 1.0, %v2811
        %v2813 = vmul.f32 %v2805, %v2566
        %v2814 = vmul.f32 %v2799, %v2806
        %v2815 = vadd.f32 %v2813, %v2814
        %v2816 = vtanh.pop %v2815
        %v2817 = vmul.f32 %v2812, %v2816
        %s2818 = sadd.s32 %s2574, %s1574
        %s2819 = scalar_lea.vmem [#allocation2], %s2818
        %2820 = vst [vmem:[%s2819] sm:$0xff] %v2817
        %s2821 = smul.u32 %s43, 4294967291
        %s2822 = sadd.s32 %s2821, 6
        %s2823 = smul.u32 %s2822, 8
        %s2824 = sshra.s32 %s2823, 3
        %s2825 = sand.u32 %s2823, 7
        %s2826 = smul.u32 %s2824, 4
        %s2827 = smul.addr %s2826, 8
        %s2828 = scalar_lea.vmem [#allocation3], %s2827
        %v2829 = vld [vmem:[%s2828] sm:$0xff]
        %v2830 = vld [vmem:[%s2828 + $0x8] sm:$0xff]
        %v2831 = vld [vmem:[%s2828 + $0x10] sm:$0xff]
        %v2832 = vld [vmem:[%s2828 + $0x18] sm:$0xff]
        %v2833 = vld [vmem:[%s488] sm:$0xff]
        %v2834 = vld [vmem:[%s488 + $0x8] sm:$0xff]
        %v2835 = vld [vmem:[%s488 + $0x10] sm:$0xff]
        %v2836 = vld [vmem:[%s488 + $0x18] sm:$0xff]
        %v2837 = vld [vmem:[%s488 + $0x20] sm:$0xff]
        %v2838 = vld [vmem:[%s488 + $0x28] sm:$0xff]
        %v2839 = vld [vmem:[%s488 + $0x30] sm:$0xff]
        %v2840 = vld [vmem:[%s488 + $0x38] sm:$0xff]
        %v2841 = vld [vmem:[%s488 + $0x40] sm:$0xff]
        %v2842 = vld [vmem:[%s488 + $0x48] sm:$0xff]
        %v2843 = vld [vmem:[%s488 + $0x50] sm:$0xff]
        %v2844 = vld [vmem:[%s488 + $0x58] sm:$0xff]
        %v2845 = vld [vmem:[%s488 + $0x60] sm:$0xff]
        %v2846 = vld [vmem:[%s488 + $0x68] sm:$0xff]
        %v2847 = vld [vmem:[%s488 + $0x70] sm:$0xff]
        %v2848 = vld [vmem:[%s488 + $0x78] sm:$0xff]
        %v2849 = vld [vmem:[%s488 + $0x80] sm:$0xff]
        %v2850 = vld [vmem:[%s488 + $0x88] sm:$0xff]
        %v2851 = vld [vmem:[%s488 + $0x90] sm:$0xff]
        %v2852 = vld [vmem:[%s488 + $0x98] sm:$0xff]
        %v2853 = vld [vmem:[%s488 + $0xa0] sm:$0xff]
        %v2854 = vld [vmem:[%s488 + $0xa8] sm:$0xff]
        %v2855 = vld [vmem:[%s488 + $0xb0] sm:$0xff]
        %v2856 = vld [vmem:[%s488 + $0xb8] sm:$0xff]
        %v2857 = vld [vmem:[%s488 + $0xc0] sm:$0xff]
        %v2858 = vld [vmem:[%s488 + $0xc8] sm:$0xff]
        %v2859 = vld [vmem:[%s488 + $0xd0] sm:$0xff]
        %v2860 = vld [vmem:[%s488 + $0xd8] sm:$0xff]
        %v2861 = vld [vmem:[%s488 + $0xe0] sm:$0xff]
        %v2862 = vld [vmem:[%s488 + $0xe8] sm:$0xff]
        %v2863 = vld [vmem:[%s488 + $0xf0] sm:$0xff]
        %v2864 = vld [vmem:[%s488 + $0xf8] sm:$0xff]
        %v2865 = vld [vmem:[%s488 + $0x100] sm:$0xff]
        %v2866 = vld [vmem:[%s488 + $0x108] sm:$0xff]
        %v2867 = vld [vmem:[%s488 + $0x110] sm:$0xff]
        %v2868 = vld [vmem:[%s488 + $0x118] sm:$0xff]
        %v2869 = vld [vmem:[%s488 + $0x120] sm:$0xff]
        %v2870 = vld [vmem:[%s488 + $0x128] sm:$0xff]
        %v2871 = vld [vmem:[%s488 + $0x130] sm:$0xff]
        %v2872 = vld [vmem:[%s488 + $0x138] sm:$0xff]
        %v2873 = vld [vmem:[%s488 + $0x140] sm:$0xff]
        %v2874 = vld [vmem:[%s488 + $0x148] sm:$0xff]
        %v2875 = vld [vmem:[%s488 + $0x150] sm:$0xff]
        %v2876 = vld [vmem:[%s488 + $0x158] sm:$0xff]
        %v2877 = vld [vmem:[%s488 + $0x160] sm:$0xff]
        %v2878 = vld [vmem:[%s488 + $0x168] sm:$0xff]
        %v2879 = vld [vmem:[%s488 + $0x170] sm:$0xff]
        %v2880 = vld [vmem:[%s488 + $0x178] sm:$0xff]
        %v2881 = vld [vmem:[%s488 + $0x180] sm:$0xff]
        %v2882 = vld [vmem:[%s488 + $0x188] sm:$0xff]
        %v2883 = vld [vmem:[%s488 + $0x190] sm:$0xff]
        %v2884 = vld [vmem:[%s488 + $0x198] sm:$0xff]
        %v2885 = vld [vmem:[%s488 + $0x1a0] sm:$0xff]
        %v2886 = vld [vmem:[%s488 + $0x1a8] sm:$0xff]
        %v2887 = vld [vmem:[%s488 + $0x1b0] sm:$0xff]
        %v2888 = vld [vmem:[%s488 + $0x1b8] sm:$0xff]
        %v2889 = vld [vmem:[%s488 + $0x1c0] sm:$0xff]
        %v2890 = vld [vmem:[%s488 + $0x1c8] sm:$0xff]
        %v2891 = vld [vmem:[%s488 + $0x1d0] sm:$0xff]
        %v2892 = vld [vmem:[%s488 + $0x1d8] sm:$0xff]
        %v2893 = vld [vmem:[%s488 + $0x1e0] sm:$0xff]
        %v2894 = vld [vmem:[%s488 + $0x1e8] sm:$0xff]
        %v2895 = vld [vmem:[%s488 + $0x1f0] sm:$0xff]
        %v2896 = vld [vmem:[%s488 + $0x1f8] sm:$0xff]
        %2897 = vmatprep.subr.mxu0 %v2834
        %2898 = vmatpush1.msra.mxu0 %v2833
        %2899 = vmatprep.subr.mxu0 %v2838
        %2900 = vmatpush1.msra.mxu0 %v2837
        %2901 = vmatprep.subr.mxu0 %v2842
        %2902 = vmatpush1.msra.mxu0 %v2841
        %2903 = vmatprep.subr.mxu0 %v2846
        %2904 = vmatpush1.msra.mxu0 %v2845
        %2905 = vmatprep.subr.mxu0 %v2850
        %2906 = vmatpush1.msra.mxu0 %v2849
        %2907 = vmatprep.subr.mxu0 %v2854
        %2908 = vmatpush1.msra.mxu0 %v2853
        %2909 = vmatprep.subr.mxu0 %v2858
        %2910 = vmatpush1.msra.mxu0 %v2857
        %2911 = vmatprep.subr.mxu0 %v2862
        %2912 = vmatpush1.msra.mxu0 %v2861
        %2913 = vmatprep.subr.mxu0 %v2866
        %2914 = vmatpush1.msra.mxu0 %v2865
        %2915 = vmatprep.subr.mxu0 %v2870
        %2916 = vmatpush1.msra.mxu0 %v2869
        %2917 = vmatprep.subr.mxu0 %v2874
        %2918 = vmatpush1.msra.mxu0 %v2873
        %2919 = vmatprep.subr.mxu0 %v2878
        %2920 = vmatpush1.msra.mxu0 %v2877
        %2921 = vmatprep.subr.mxu0 %v2882
        %2922 = vmatpush1.msra.mxu0 %v2881
        %2923 = vmatprep.subr.mxu0 %v2886
        %2924 = vmatpush1.msra.mxu0 %v2885
        %2925 = vmatprep.subr.mxu0 %v2890
        %2926 = vmatpush1.msra.mxu0 %v2889
        %2927 = vmatprep.subr.mxu0 %v2894
        %2928 = vmatpush1.msra.mxu0 %v2893
        %2929 = vmatprep.subr.mxu0 0.0
        %2930 = vmatpush1.msra.mxu0 0.0
        %2931 = vmatprep.subr.mxu0 0.0
        %2932 = vmatpush1.msra.mxu0 0.0
        %2933 = vmatprep.subr.mxu0 0.0
        %2934 = vmatpush1.msra.mxu0 0.0
        %2935 = vmatprep.subr.mxu0 0.0
        %2936 = vmatpush1.msra.mxu0 0.0
        %2937 = vmatprep.subr.mxu0 0.0
        %2938 = vmatpush1.msra.mxu0 0.0
        %2939 = vmatprep.subr.mxu0 0.0
        %2940 = vmatpush1.msra.mxu0 0.0
        %2941 = vmatprep.subr.mxu0 0.0
        %2942 = vmatpush1.msra.mxu0 0.0
        %2943 = vmatprep.subr.mxu0 0.0
        %2944 = vmatpush1.msra.mxu0 0.0
        %2945 = vmatprep.subr.mxu0 0.0
        %2946 = vmatpush1.msra.mxu0 0.0
        %2947 = vmatprep.subr.mxu0 0.0
        %2948 = vmatpush1.msra.mxu0 0.0
        %2949 = vmatprep.subr.mxu0 0.0
        %2950 = vmatpush1.msra.mxu0 0.0
        %2951 = vmatprep.subr.mxu0 0.0
        %2952 = vmatpush1.msra.mxu0 0.0
        %2953 = vmatprep.subr.mxu0 0.0
        %2954 = vmatpush1.msra.mxu0 0.0
        %2955 = vmatprep.subr.mxu0 0.0
        %2956 = vmatpush1.msra.mxu0 0.0
        %2957 = vmatprep.subr.mxu0 0.0
        %2958 = vmatpush1.msra.mxu0 0.0
        %2959 = vmatprep.subr.mxu0 0.0
        %2960 = vmatpush1.msra.mxu0 0.0
        %2961 = vmatprep.mubr.f32.mxu0 0.0
        %2962 = vmatmul.mubr.f32.gmra.mrb[0].mxu0 %v2817
        %v2963 = vpop.f32.mrb[0].mxu0
        %v2964 = vadd.f32 0.0, %v2963
        %v2965 = vpop.f32.mrb[0].mxu0
        %v2966 = vadd.f32 0.0, %v2965
        %2967 = vdwg.mxu0
        %2968 = vmatprep.subr.mxu0 %v2836
        %2969 = vmatpush1.msra.mxu0 %v2835
        %2970 = vmatprep.subr.mxu0 %v2840
        %2971 = vmatpush1.msra.mxu0 %v2839
        %2972 = vmatprep.subr.mxu0 %v2844
        %2973 = vmatpush1.msra.mxu0 %v2843
        %2974 = vmatprep.subr.mxu0 %v2848
        %2975 = vmatpush1.msra.mxu0 %v2847
        %2976 = vmatprep.subr.mxu0 %v2852
        %2977 = vmatpush1.msra.mxu0 %v2851
        %2978 = vmatprep.subr.mxu0 %v2856
        %2979 = vmatpush1.msra.mxu0 %v2855
        %2980 = vmatprep.subr.mxu0 %v2860
        %2981 = vmatpush1.msra.mxu0 %v2859
        %2982 = vmatprep.subr.mxu0 %v2864
        %2983 = vmatpush1.msra.mxu0 %v2863
        %2984 = vmatprep.subr.mxu0 %v2868
        %2985 = vmatpush1.msra.mxu0 %v2867
        %2986 = vmatprep.subr.mxu0 %v2872
        %2987 = vmatpush1.msra.mxu0 %v2871
        %2988 = vmatprep.subr.mxu0 %v2876
        %2989 = vmatpush1.msra.mxu0 %v2875
        %2990 = vmatprep.subr.mxu0 %v2880
        %2991 = vmatpush1.msra.mxu0 %v2879
        %2992 = vmatprep.subr.mxu0 %v2884
        %2993 = vmatpush1.msra.mxu0 %v2883
        %2994 = vmatprep.subr.mxu0 %v2888
        %2995 = vmatpush1.msra.mxu0 %v2887
        %2996 = vmatprep.subr.mxu0 %v2892
        %2997 = vmatpush1.msra.mxu0 %v2891
        %2998 = vmatprep.subr.mxu0 %v2896
        %2999 = vmatpush1.msra.mxu0 %v2895
        %3000 = vmatprep.subr.mxu0 0.0
        %3001 = vmatpush1.msra.mxu0 0.0
        %3002 = vmatprep.subr.mxu0 0.0
        %3003 = vmatpush1.msra.mxu0 0.0
        %3004 = vmatprep.subr.mxu0 0.0
        %3005 = vmatpush1.msra.mxu0 0.0
        %3006 = vmatprep.subr.mxu0 0.0
        %3007 = vmatpush1.msra.mxu0 0.0
        %3008 = vmatprep.subr.mxu0 0.0
        %3009 = vmatpush1.msra.mxu0 0.0
        %3010 = vmatprep.subr.mxu0 0.0
        %3011 = vmatpush1.msra.mxu0 0.0
        %3012 = vmatprep.subr.mxu0 0.0
        %3013 = vmatpush1.msra.mxu0 0.0
        %3014 = vmatprep.subr.mxu0 0.0
        %3015 = vmatpush1.msra.mxu0 0.0
        %3016 = vmatprep.subr.mxu0 0.0
        %3017 = vmatpush1.msra.mxu0 0.0
        %3018 = vmatprep.subr.mxu0 0.0
        %3019 = vmatpush1.msra.mxu0 0.0
        %3020 = vmatprep.subr.mxu0 0.0
        %3021 = vmatpush1.msra.mxu0 0.0
        %3022 = vmatprep.subr.mxu0 0.0
        %3023 = vmatpush1.msra.mxu0 0.0
        %3024 = vmatprep.subr.mxu0 0.0
        %3025 = vmatpush1.msra.mxu0 0.0
        %3026 = vmatprep.subr.mxu0 0.0
        %3027 = vmatpush1.msra.mxu0 0.0
        %3028 = vmatprep.subr.mxu0 0.0
        %3029 = vmatpush1.msra.mxu0 0.0
        %3030 = vmatprep.subr.mxu0 0.0
        %3031 = vmatpush1.msra.mxu0 0.0
        %3032 = vmatprep.mubr.f32.mxu0 0.0
        %3033 = vmatmul.mubr.f32.gmra.mrb[0].mxu0 %v2817
        %v3034 = vpop.f32.mrb[0].mxu0
        %v3035 = vadd.f32 0.0, %v3034
        %v3036 = vpop.f32.mrb[0].mxu0
        %v3037 = vadd.f32 0.0, %v3036
        %3038 = vdwg.mxu0
        %v3039 = vadd.f32 %v2829, %v2964
        %v3040 = vadd.f32 %v2830, %v2966
        %v3041 = vadd.f32 %v2831, %v3035
        %v3042 = vadd.f32 %v2832, %v3037
        %v3043 = vxor.u32 %v3039, 2147483648
        %v3044 = vmul.f32 %v3043, 1.442695
        %v3045 = vpow.pop %v3044
        %v3046 = vadd.f32 %v3045, 1.0
        %v3047 = vrcp.pop %v3046
        %v3048 = vmul.f32 1.0, %v3047
        %v3049 = vxor.u32 %v3040, 2147483648
        %v3050 = vmul.f32 %v3049, 1.442695
        %v3051 = vpow.pop %v3050
        %v3052 = vadd.f32 %v3051, 1.0
        %v3053 = vrcp.pop %v3052
        %v3054 = vmul.f32 1.0, %v3053
        %v3055 = vtanh.pop %v3041
        %v3056 = vxor.u32 %v3042, 2147483648
        %v3057 = vmul.f32 %v3056, 1.442695
        %v3058 = vpow.pop %v3057
        %v3059 = vadd.f32 %v3058, 1.0
        %v3060 = vrcp.pop %v3059
        %v3061 = vmul.f32 1.0, %v3060
        %v3062 = vmul.f32 %v3054, %v2815
        %v3063 = vmul.f32 %v3048, %v3055
        %v3064 = vadd.f32 %v3062, %v3063
        %v3065 = vtanh.pop %v3064
        %v3066 = vmul.f32 %v3061, %v3065
        %s3067 = sadd.s32 %s2823, %s1574
        %s3068 = scalar_lea.vmem [#allocation2], %s3067
        %3069 = vst [vmem:[%s3068] sm:$0xff] %v3066
        %s3070 = smul.u32 %s43, 4294967289
        %s3071 = sadd.s32 %s3070, 7
        %s3072 = smul.u32 %s3071, 8
        %s3073 = sshra.s32 %s3072, 3
        %s3074 = sand.u32 %s3072, 7
        %s3075 = smul.u32 %s3073, 4
        %s3076 = smul.addr %s3075, 8
        %s3077 = scalar_lea.vmem [#allocation3], %s3076
        %v3078 = vld [vmem:[%s3077] sm:$0xff]
        %v3079 = vld [vmem:[%s3077 + $0x8] sm:$0xff]
        %v3080 = vld [vmem:[%s3077 + $0x10] sm:$0xff]
        %v3081 = vld [vmem:[%s3077 + $0x18] sm:$0xff]
        %v3082 = vld [vmem:[%s488] sm:$0xff]
        %v3083 = vld [vmem:[%s488 + $0x8] sm:$0xff]
        %v3084 = vld [vmem:[%s488 + $0x10] sm:$0xff]
        %v3085 = vld [vmem:[%s488 + $0x18] sm:$0xff]
        %v3086 = vld [vmem:[%s488 + $0x20] sm:$0xff]
        %v3087 = vld [vmem:[%s488 + $0x28] sm:$0xff]
        %v3088 = vld [vmem:[%s488 + $0x30] sm:$0xff]
        %v3089 = vld [vmem:[%s488 + $0x38] sm:$0xff]
        %v3090 = vld [vmem:[%s488 + $0x40] sm:$0xff]
        %v3091 = vld [vmem:[%s488 + $0x48] sm:$0xff]
        %v3092 = vld [vmem:[%s488 + $0x50] sm:$0xff]
        %v3093 = vld [vmem:[%s488 + $0x58] sm:$0xff]
        %v3094 = vld [vmem:[%s488 + $0x60] sm:$0xff]
        %v3095 = vld [vmem:[%s488 + $0x68] sm:$0xff]
        %v3096 = vld [vmem:[%s488 + $0x70] sm:$0xff]
        %v3097 = vld [vmem:[%s488 + $0x78] sm:$0xff]
        %v3098 = vld [vmem:[%s488 + $0x80] sm:$0xff]
        %v3099 = vld [vmem:[%s488 + $0x88] sm:$0xff]
        %v3100 = vld [vmem:[%s488 + $0x90] sm:$0xff]
        %v3101 = vld [vmem:[%s488 + $0x98] sm:$0xff]
        %v3102 = vld [vmem:[%s488 + $0xa0] sm:$0xff]
        %v3103 = vld [vmem:[%s488 + $0xa8] sm:$0xff]
        %v3104 = vld [vmem:[%s488 + $0xb0] sm:$0xff]
        %v3105 = vld [vmem:[%s488 + $0xb8] sm:$0xff]
        %v3106 = vld [vmem:[%s488 + $0xc0] sm:$0xff]
        %v3107 = vld [vmem:[%s488 + $0xc8] sm:$0xff]
        %v3108 = vld [vmem:[%s488 + $0xd0] sm:$0xff]
        %v3109 = vld [vmem:[%s488 + $0xd8] sm:$0xff]
        %v3110 = vld [vmem:[%s488 + $0xe0] sm:$0xff]
        %v3111 = vld [vmem:[%s488 + $0xe8] sm:$0xff]
        %v3112 = vld [vmem:[%s488 + $0xf0] sm:$0xff]
        %v3113 = vld [vmem:[%s488 + $0xf8] sm:$0xff]
        %v3114 = vld [vmem:[%s488 + $0x100] sm:$0xff]
        %v3115 = vld [vmem:[%s488 + $0x108] sm:$0xff]
        %v3116 = vld [vmem:[%s488 + $0x110] sm:$0xff]
        %v3117 = vld [vmem:[%s488 + $0x118] sm:$0xff]
        %v3118 = vld [vmem:[%s488 + $0x120] sm:$0xff]
        %v3119 = vld [vmem:[%s488 + $0x128] sm:$0xff]
        %v3120 = vld [vmem:[%s488 + $0x130] sm:$0xff]
        %v3121 = vld [vmem:[%s488 + $0x138] sm:$0xff]
        %v3122 = vld [vmem:[%s488 + $0x140] sm:$0xff]
        %v3123 = vld [vmem:[%s488 + $0x148] sm:$0xff]
        %v3124 = vld [vmem:[%s488 + $0x150] sm:$0xff]
        %v3125 = vld [vmem:[%s488 + $0x158] sm:$0xff]
        %v3126 = vld [vmem:[%s488 + $0x160] sm:$0xff]
        %v3127 = vld [vmem:[%s488 + $0x168] sm:$0xff]
        %v3128 = vld [vmem:[%s488 + $0x170] sm:$0xff]
        %v3129 = vld [vmem:[%s488 + $0x178] sm:$0xff]
        %v3130 = vld [vmem:[%s488 + $0x180] sm:$0xff]
        %v3131 = vld [vmem:[%s488 + $0x188] sm:$0xff]
        %v3132 = vld [vmem:[%s488 + $0x190] sm:$0xff]
        %v3133 = vld [vmem:[%s488 + $0x198] sm:$0xff]
        %v3134 = vld [vmem:[%s488 + $0x1a0] sm:$0xff]
        %v3135 = vld [vmem:[%s488 + $0x1a8] sm:$0xff]
        %v3136 = vld [vmem:[%s488 + $0x1b0] sm:$0xff]
        %v3137 = vld [vmem:[%s488 + $0x1b8] sm:$0xff]
        %v3138 = vld [vmem:[%s488 + $0x1c0] sm:$0xff]
        %v3139 = vld [vmem:[%s488 + $0x1c8] sm:$0xff]
        %v3140 = vld [vmem:[%s488 + $0x1d0] sm:$0xff]
        %v3141 = vld [vmem:[%s488 + $0x1d8] sm:$0xff]
        %v3142 = vld [vmem:[%s488 + $0x1e0] sm:$0xff]
        %v3143 = vld [vmem:[%s488 + $0x1e8] sm:$0xff]
        %v3144 = vld [vmem:[%s488 + $0x1f0] sm:$0xff]
        %v3145 = vld [vmem:[%s488 + $0x1f8] sm:$0xff]
        %3146 = vmatprep.subr.mxu0 %v3083
        %3147 = vmatpush1.msra.mxu0 %v3082
        %3148 = vmatprep.subr.mxu0 %v3087
        %3149 = vmatpush1.msra.mxu0 %v3086
        %3150 = vmatprep.subr.mxu0 %v3091
        %3151 = vmatpush1.msra.mxu0 %v3090
        %3152 = vmatprep.subr.mxu0 %v3095
        %3153 = vmatpush1.msra.mxu0 %v3094
        %3154 = vmatprep.subr.mxu0 %v3099
        %3155 = vmatpush1.msra.mxu0 %v3098
        %3156 = vmatprep.subr.mxu0 %v3103
        %3157 = vmatpush1.msra.mxu0 %v3102
        %3158 = vmatprep.subr.mxu0 %v3107
        %3159 = vmatpush1.msra.mxu0 %v3106
        %3160 = vmatprep.subr.mxu0 %v3111
        %3161 = vmatpush1.msra.mxu0 %v3110
        %3162 = vmatprep.subr.mxu0 %v3115
        %3163 = vmatpush1.msra.mxu0 %v3114
        %3164 = vmatprep.subr.mxu0 %v3119
        %3165 = vmatpush1.msra.mxu0 %v3118
        %3166 = vmatprep.subr.mxu0 %v3123
        %3167 = vmatpush1.msra.mxu0 %v3122
        %3168 = vmatprep.subr.mxu0 %v3127
        %3169 = vmatpush1.msra.mxu0 %v3126
        %3170 = vmatprep.subr.mxu0 %v3131
        %3171 = vmatpush1.msra.mxu0 %v3130
        %3172 = vmatprep.subr.mxu0 %v3135
        %3173 = vmatpush1.msra.mxu0 %v3134
        %3174 = vmatprep.subr.mxu0 %v3139
        %3175 = vmatpush1.msra.mxu0 %v3138
        %3176 = vmatprep.subr.mxu0 %v3143
        %3177 = vmatpush1.msra.mxu0 %v3142
        %3178 = vmatprep.subr.mxu0 0.0
        %3179 = vmatpush1.msra.mxu0 0.0
        %3180 = vmatprep.subr.mxu0 0.0
        %3181 = vmatpush1.msra.mxu0 0.0
        %3182 = vmatprep.subr.mxu0 0.0
        %3183 = vmatpush1.msra.mxu0 0.0
        %3184 = vmatprep.subr.mxu0 0.0
        %3185 = vmatpush1.msra.mxu0 0.0
        %3186 = vmatprep.subr.mxu0 0.0
        %3187 = vmatpush1.msra.mxu0 0.0
        %3188 = vmatprep.subr.mxu0 0.0
        %3189 = vmatpush1.msra.mxu0 0.0
        %3190 = vmatprep.subr.mxu0 0.0
        %3191 = vmatpush1.msra.mxu0 0.0
        %3192 = vmatprep.subr.mxu0 0.0
        %3193 = vmatpush1.msra.mxu0 0.0
        %3194 = vmatprep.subr.mxu0 0.0
        %3195 = vmatpush1.msra.mxu0 0.0
        %3196 = vmatprep.subr.mxu0 0.0
        %3197 = vmatpush1.msra.mxu0 0.0
        %3198 = vmatprep.subr.mxu0 0.0
        %3199 = vmatpush1.msra.mxu0 0.0
        %3200 = vmatprep.subr.mxu0 0.0
        %3201 = vmatpush1.msra.mxu0 0.0
        %3202 = vmatprep.subr.mxu0 0.0
        %3203 = vmatpush1.msra.mxu0 0.0
        %3204 = vmatprep.subr.mxu0 0.0
        %3205 = vmatpush1.msra.mxu0 0.0
        %3206 = vmatprep.subr.mxu0 0.0
        %3207 = vmatpush1.msra.mxu0 0.0
        %3208 = vmatprep.subr.mxu0 0.0
        %3209 = vmatpush1.msra.mxu0 0.0
        %3210 = vmatprep.mubr.f32.mxu0 0.0
        %3211 = vmatmul.mubr.f32.gmra.mrb[0].mxu0 %v3066
        %v3212 = vpop.f32.mrb[0].mxu0
        %v3213 = vadd.f32 0.0, %v3212
        %v3214 = vpop.f32.mrb[0].mxu0
        %v3215 = vadd.f32 0.0, %v3214
        %3216 = vdwg.mxu0
        %3217 = vmatprep.subr.mxu0 %v3085
        %3218 = vmatpush1.msra.mxu0 %v3084
        %3219 = vmatprep.subr.mxu0 %v3089
        %3220 = vmatpush1.msra.mxu0 %v3088
        %3221 = vmatprep.subr.mxu0 %v3093
        %3222 = vmatpush1.msra.mxu0 %v3092
        %3223 = vmatprep.subr.mxu0 %v3097
        %3224 = vmatpush1.msra.mxu0 %v3096
        %3225 = vmatprep.subr.mxu0 %v3101
        %3226 = vmatpush1.msra.mxu0 %v3100
        %3227 = vmatprep.subr.mxu0 %v3105
        %3228 = vmatpush1.msra.mxu0 %v3104
        %3229 = vmatprep.subr.mxu0 %v3109
        %3230 = vmatpush1.msra.mxu0 %v3108
        %3231 = vmatprep.subr.mxu0 %v3113
        %3232 = vmatpush1.msra.mxu0 %v3112
        %3233 = vmatprep.subr.mxu0 %v3117
        %3234 = vmatpush1.msra.mxu0 %v3116
        %3235 = vmatprep.subr.mxu0 %v3121
        %3236 = vmatpush1.msra.mxu0 %v3120
        %3237 = vmatprep.subr.mxu0 %v3125
        %3238 = vmatpush1.msra.mxu0 %v3124
        %3239 = vmatprep.subr.mxu0 %v3129
        %3240 = vmatpush1.msra.mxu0 %v3128
        %3241 = vmatprep.subr.mxu0 %v3133
        %3242 = vmatpush1.msra.mxu0 %v3132
        %3243 = vmatprep.subr.mxu0 %v3137
        %3244 = vmatpush1.msra.mxu0 %v3136
        %3245 = vmatprep.subr.mxu0 %v3141
        %3246 = vmatpush1.msra.mxu0 %v3140
        %3247 = vmatprep.subr.mxu0 %v3145
        %3248 = vmatpush1.msra.mxu0 %v3144
        %3249 = vmatprep.subr.mxu0 0.0
        %3250 = vmatpush1.msra.mxu0 0.0
        %3251 = vmatprep.subr.mxu0 0.0
        %3252 = vmatpush1.msra.mxu0 0.0
        %3253 = vmatprep.subr.mxu0 0.0
        %3254 = vmatpush1.msra.mxu0 0.0
        %3255 = vmatprep.subr.mxu0 0.0
        %3256 = vmatpush1.msra.mxu0 0.0
        %3257 = vmatprep.subr.mxu0 0.0
        %3258 = vmatpush1.msra.mxu0 0.0
        %3259 = vmatprep.subr.mxu0 0.0
        %3260 = vmatpush1.msra.mxu0 0.0
        %3261 = vmatprep.subr.mxu0 0.0
        %3262 = vmatpush1.msra.mxu0 0.0
        %3263 = vmatprep.subr.mxu0 0.0
        %3264 = vmatpush1.msra.mxu0 0.0
        %3265 = vmatprep.subr.mxu0 0.0
        %3266 = vmatpush1.msra.mxu0 0.0
        %3267 = vmatprep.subr.mxu0 0.0
        %3268 = vmatpush1.msra.mxu0 0.0
        %3269 = vmatprep.subr.mxu0 0.0
        %3270 = vmatpush1.msra.mxu0 0.0
        %3271 = vmatprep.subr.mxu0 0.0
        %3272 = vmatpush1.msra.mxu0 0.0
        %3273 = vmatprep.subr.mxu0 0.0
        %3274 = vmatpush1.msra.mxu0 0.0
        %3275 = vmatprep.subr.mxu0 0.0
        %3276 = vmatpush1.msra.mxu0 0.0
        %3277 = vmatprep.subr.mxu0 0.0
        %3278 = vmatpush1.msra.mxu0 0.0
        %3279 = vmatprep.subr.mxu0 0.0
        %3280 = vmatpush1.msra.mxu0 0.0
        %3281 = vmatprep.mubr.f32.mxu0 0.0
        %3282 = vmatmul.mubr.f32.gmra.mrb[0].mxu0 %v3066
        %v3283 = vpop.f32.mrb[0].mxu0
        %v3284 = vadd.f32 0.0, %v3283
        %v3285 = vpop.f32.mrb[0].mxu0
        %v3286 = vadd.f32 0.0, %v3285
        %3287 = vdwg.mxu0
        %v3288 = vadd.f32 %v3078, %v3213
        %v3289 = vadd.f32 %v3079, %v3215
        %v3290 = vadd.f32 %v3080, %v3284
        %v3291 = vadd.f32 %v3081, %v3286
        %v3292 = vxor.u32 %v3288, 2147483648
        %v3293 = vmul.f32 %v3292, 1.442695
        %v3294 = vpow.pop %v3293
        %v3295 = vadd.f32 %v3294, 1.0
        %v3296 = vrcp.pop %v3295
        %v3297 = vmul.f32 1.0, %v3296
        %v3298 = vxor.u32 %v3289, 2147483648
        %v3299 = vmul.f32 %v3298, 1.442695
        %v3300 = vpow.pop %v3299
        %v3301 = vadd.f32 %v3300, 1.0
        %v3302 = vrcp.pop %v3301
        %v3303 = vmul.f32 1.0, %v3302
        %v3304 = vtanh.pop %v3290
        %v3305 = vxor.u32 %v3291, 2147483648
        %v3306 = vmul.f32 %v3305, 1.442695
        %v3307 = vpow.pop %v3306
        %v3308 = vadd.f32 %v3307, 1.0
        %v3309 = vrcp.pop %v3308
        %v3310 = vmul.f32 1.0, %v3309
        %v3311 = vmul.f32 %v3303, %v3064
        %v3312 = vmul.f32 %v3297, %v3304
        %v3313 = vadd.f32 %v3311, %v3312
        %v3314 = vtanh.pop %v3313
        %v3315 = vmul.f32 %v3310, %v3314
        %s3316 = sadd.s32 %s3072, %s1574
        %s3317 = scalar_lea.vmem [#allocation2], %s3316
        %3318 = vst [vmem:[%s3317] sm:$0xff] %v3315
        %3319 = vst [vmem:[%s571] sm:$0xff] %v3315
        %3320 = vst [vmem:[%s578] sm:$0xff] %v3313
        %p3321 = scmp.eq.s32.totalorder %s42, 27
        %p3322 = scmp.eq.s32.totalorder %s43, 1
        %p3323 = pnand %p3321, %p3322
        %p3324 = pneg %p3323
        // Predicated region
        $region81: #{net_forward.1} parent=51 // pred_check
          _
        $region82: #{net_forward.1} parent=51 // pred_check_branch
          %3326 = sbr.rel (%p3323) target = $region84
        $region83: #{net_forward.1} parent=51 // pred_region
          %s3327 = smul.u32 %s639, 64
          %s3328 = scalar_lea.vmem [#allocation2], %s3327
          %v3329 = vld [vmem:[%s3328 + $0x38] sm:$0xff]
          %s3330 = sadd.s32 %s639, 1
          %s3331 = smul.u32 %s3330, 64
          %s3332 = scalar_lea.vmem [#allocation2], %s3331
          %v3333 = vld [vmem:[%s3332 + $0x38] sm:$0xff]
          %v3334 = vld [vmem:[%s6] sm:$0xff]
          %v3335 = vld [vmem:[%s6 + $0x8] sm:$0xff]
          %v3336 = vld [vmem:[%s6 + $0x10] sm:$0xff]
          %v3337 = vld [vmem:[%s6 + $0x18] sm:$0xff]
          %v3338 = vld [vmem:[%s6 + $0x20] sm:$0xff]
          %v3339 = vld [vmem:[%s6 + $0x28] sm:$0xff]
          %v3340 = vld [vmem:[%s6 + $0x30] sm:$0xff]
          %v3341 = vld [vmem:[%s6 + $0x38] sm:$0xff]
          %v3342 = vld [vmem:[%s6 + $0x40] sm:$0xff]
          %v3343 = vld [vmem:[%s6 + $0x48] sm:$0xff]
          %v3344 = vld [vmem:[%s6 + $0x50] sm:$0xff]
          %v3345 = vld [vmem:[%s6 + $0x58] sm:$0xff]
          %v3346 = vld [vmem:[%s6 + $0x60] sm:$0xff]
          %v3347 = vld [vmem:[%s6 + $0x68] sm:$0xff]
          %v3348 = vld [vmem:[%s6 + $0x70] sm:$0xff]
          %v3349 = vld [vmem:[%s6 + $0x78] sm:$0xff]
          %v3350 = vld [vmem:[%s6 + $0x80] sm:$0xff]
          %v3351 = vld [vmem:[%s6 + $0x88] sm:$0xff]
          %v3352 = vld [vmem:[%s6 + $0x90] sm:$0xff]
          %v3353 = vld [vmem:[%s6 + $0x98] sm:$0xff]
          %v3354 = vld [vmem:[%s6 + $0xa0] sm:$0xff]
          %v3355 = vld [vmem:[%s6 + $0xa8] sm:$0xff]
          %v3356 = vld [vmem:[%s6 + $0xb0] sm:$0xff]
          %v3357 = vld [vmem:[%s6 + $0xb8] sm:$0xff]
          %v3358 = vld [vmem:[%s6 + $0xc0] sm:$0xff]
          %v3359 = vld [vmem:[%s6 + $0xc8] sm:$0xff]
          %v3360 = vld [vmem:[%s6 + $0xd0] sm:$0xff]
          %v3361 = vld [vmem:[%s6 + $0xd8] sm:$0xff]
          %v3362 = vld [vmem:[%s6 + $0xe0] sm:$0xff]
          %v3363 = vld [vmem:[%s6 + $0xe8] sm:$0xff]
          %v3364 = vld [vmem:[%s6 + $0xf0] sm:$0xff]
          %v3365 = vld [vmem:[%s6 + $0xf8] sm:$0xff]
          %3366 = vmatprep.subr.mxu0 0.0
          %3367 = vmatpush1.msra.mxu0 %v3350
          %3368 = vmatprep.subr.mxu0 0.0
          %3369 = vmatpush1.msra.mxu0 %v3351
          %3370 = vmatprep.subr.mxu0 0.0
          %3371 = vmatpush1.msra.mxu0 %v3352
          %3372 = vmatprep.subr.mxu0 0.0
          %3373 = vmatpush1.msra.mxu0 %v3353
          %3374 = vmatprep.subr.mxu0 0.0
          %3375 = vmatpush1.msra.mxu0 %v3354
          %3376 = vmatprep.subr.mxu0 0.0
          %3377 = vmatpush1.msra.mxu0 %v3355
          %3378 = vmatprep.subr.mxu0 0.0
          %3379 = vmatpush1.msra.mxu0 %v3356
          %3380 = vmatprep.subr.mxu0 0.0
          %3381 = vmatpush1.msra.mxu0 %v3357
          %3382 = vmatprep.subr.mxu0 0.0
          %3383 = vmatpush1.msra.mxu0 %v3358
          %3384 = vmatprep.subr.mxu0 0.0
          %3385 = vmatpush1.msra.mxu0 %v3359
          %3386 = vmatprep.subr.mxu0 0.0
          %3387 = vmatpush1.msra.mxu0 %v3360
          %3388 = vmatprep.subr.mxu0 0.0
          %3389 = vmatpush1.msra.mxu0 %v3361
          %3390 = vmatprep.subr.mxu0 0.0
          %3391 = vmatpush1.msra.mxu0 %v3362
          %3392 = vmatprep.subr.mxu0 0.0
          %3393 = vmatpush1.msra.mxu0 %v3363
          %3394 = vmatprep.subr.mxu0 0.0
          %3395 = vmatpush1.msra.mxu0 %v3364
          %3396 = vmatprep.subr.mxu0 0.0
          %3397 = vmatpush1.msra.mxu0 %v3365
          %3398 = vmatprep.subr.mxu0 0.0
          %3399 = vmatpush1.msra.mxu0 0.0
          %3400 = vmatprep.subr.mxu0 0.0
          %3401 = vmatpush1.msra.mxu0 0.0
          %3402 = vmatprep.subr.mxu0 0.0
          %3403 = vmatpush1.msra.mxu0 0.0
          %3404 = vmatprep.subr.mxu0 0.0
          %3405 = vmatpush1.msra.mxu0 0.0
          %3406 = vmatprep.subr.mxu0 0.0
          %3407 = vmatpush1.msra.mxu0 0.0
          %3408 = vmatprep.subr.mxu0 0.0
          %3409 = vmatpush1.msra.mxu0 0.0
          %3410 = vmatprep.subr.mxu0 0.0
          %3411 = vmatpush1.msra.mxu0 0.0
          %3412 = vmatprep.subr.mxu0 0.0
          %3413 = vmatpush1.msra.mxu0 0.0
          %3414 = vmatprep.subr.mxu0 0.0
          %3415 = vmatpush1.msra.mxu0 0.0
          %3416 = vmatprep.subr.mxu0 0.0
          %3417 = vmatpush1.msra.mxu0 0.0
          %3418 = vmatprep.subr.mxu0 0.0
          %3419 = vmatpush1.msra.mxu0 0.0
          %3420 = vmatprep.subr.mxu0 0.0
          %3421 = vmatpush1.msra.mxu0 0.0
          %3422 = vmatprep.subr.mxu0 0.0
          %3423 = vmatpush1.msra.mxu0 0.0
          %3424 = vmatprep.subr.mxu0 0.0
          %3425 = vmatpush1.msra.mxu0 0.0
          %3426 = vmatprep.subr.mxu0 0.0
          %3427 = vmatpush1.msra.mxu0 0.0
          %3428 = vmatprep.subr.mxu0 0.0
          %3429 = vmatpush1.msra.mxu0 0.0
          %3430 = vmatprep.mubr.f32.mxu0 0.0
          %3431 = vmatmul.mubr.f32.gmra.mrb[0].mxu0 %v3333
          %v3432 = vpop.f32.mrb[0].mxu0
          %v3433 = vadd.f32 0.0, %v3432
          %v3434 = vpop.f32.mrb[0].mxu0
          %3435 = vdwg.mxu0
          %3436 = vmatprep.subr.mxu0 0.0
          %3437 = vmatpush1.msra.mxu0 %v3334
          %3438 = vmatprep.subr.mxu0 0.0
          %3439 = vmatpush1.msra.mxu0 %v3335
          %3440 = vmatprep.subr.mxu0 0.0
          %3441 = vmatpush1.msra.mxu0 %v3336
          %3442 = vmatprep.subr.mxu0 0.0
          %3443 = vmatpush1.msra.mxu0 %v3337
          %3444 = vmatprep.subr.mxu0 0.0
          %3445 = vmatpush1.msra.mxu0 %v3338
          %3446 = vmatprep.subr.mxu0 0.0
          %3447 = vmatpush1.msra.mxu0 %v3339
          %3448 = vmatprep.subr.mxu0 0.0
          %3449 = vmatpush1.msra.mxu0 %v3340
          %3450 = vmatprep.subr.mxu0 0.0
          %3451 = vmatpush1.msra.mxu0 %v3341
          %3452 = vmatprep.subr.mxu0 0.0
          %3453 = vmatpush1.msra.mxu0 %v3342
          %3454 = vmatprep.subr.mxu0 0.0
          %3455 = vmatpush1.msra.mxu0 %v3343
          %3456 = vmatprep.subr.mxu0 0.0
          %3457 = vmatpush1.msra.mxu0 %v3344
          %3458 = vmatprep.subr.mxu0 0.0
          %3459 = vmatpush1.msra.mxu0 %v3345
          %3460 = vmatprep.subr.mxu0 0.0
          %3461 = vmatpush1.msra.mxu0 %v3346
          %3462 = vmatprep.subr.mxu0 0.0
          %3463 = vmatpush1.msra.mxu0 %v3347
          %3464 = vmatprep.subr.mxu0 0.0
          %3465 = vmatpush1.msra.mxu0 %v3348
          %3466 = vmatprep.subr.mxu0 0.0
          %3467 = vmatpush1.msra.mxu0 %v3349
          %3468 = vmatprep.subr.mxu0 0.0
          %3469 = vmatpush1.msra.mxu0 0.0
          %3470 = vmatprep.subr.mxu0 0.0
          %3471 = vmatpush1.msra.mxu0 0.0
          %3472 = vmatprep.subr.mxu0 0.0
          %3473 = vmatpush1.msra.mxu0 0.0
          %3474 = vmatprep.subr.mxu0 0.0
          %3475 = vmatpush1.msra.mxu0 0.0
          %3476 = vmatprep.subr.mxu0 0.0
          %3477 = vmatpush1.msra.mxu0 0.0
          %3478 = vmatprep.subr.mxu0 0.0
          %3479 = vmatpush1.msra.mxu0 0.0
          %3480 = vmatprep.subr.mxu0 0.0
          %3481 = vmatpush1.msra.mxu0 0.0
          %3482 = vmatprep.subr.mxu0 0.0
          %3483 = vmatpush1.msra.mxu0 0.0
          %3484 = vmatprep.subr.mxu0 0.0
          %3485 = vmatpush1.msra.mxu0 0.0
          %3486 = vmatprep.subr.mxu0 0.0
          %3487 = vmatpush1.msra.mxu0 0.0
          %3488 = vmatprep.subr.mxu0 0.0
          %3489 = vmatpush1.msra.mxu0 0.0
          %3490 = vmatprep.subr.mxu0 0.0
          %3491 = vmatpush1.msra.mxu0 0.0
          %3492 = vmatprep.subr.mxu0 0.0
          %3493 = vmatpush1.msra.mxu0 0.0
          %3494 = vmatprep.subr.mxu0 0.0
          %3495 = vmatpush1.msra.mxu0 0.0
          %3496 = vmatprep.subr.mxu0 0.0
          %3497 = vmatpush1.msra.mxu0 0.0
          %3498 = vmatprep.subr.mxu0 0.0
          %3499 = vmatpush1.msra.mxu0 0.0
          %3500 = vmatprep.mubr.f32.mxu0 0.0
          %3501 = vmatmul.mubr.f32.gmra.mrb[0].mxu0 %v3329
          %v3502 = vpop.f32.mrb[0].mxu0
          %v3503 = vadd.f32 %v3433, %v3502
          %v3504 = vpop.f32.mrb[0].mxu0
          %3505 = vdwg.mxu0
          %v3506 = vld [vmem:[#allocation13] sm:$0x1]
          %v3508 = vlaneseq
          %v3509 = vshrl.u32 %v3508, 7
          %v3510 = vsub.s32 0, %v3509
          %v3511 = vrot.slane %v3506, %v3510
          %v3513 = vadd.f32 %v3503, %v3511
          %vm3514 = vcmask 80896
          %v3515 = vsel %vm3514, %v3513, -inf
          %3516 = vmax.xlane.f32.xlu0 %v3515
          %v3517 = vpop.xlane.xlu0 %3516
          %v3518 = vsub.f32 %v3513, %v3517
          %v3519 = vmul.f32 %v3518, 1.442695
          %v3520 = vpow.pop %v3519
          %v3521 = vsel %vm3514, %v3520, 0.0
          %3522 = vadd.xlane.f32.xlu0 %v3521
          %v3523 = vpop.xlane.xlu0 %3522
          %v3524 = vlog2.pop %v3523
          %v3525 = vmul.f32 %v3524, 0.6931472
          %v3526 = vadd.f32 %v3517, %v3525
          %v3527 = vsub.f32 %v3513, %v3526
          %3528 = vst.msk [vmem:[#allocation18] sm:$0xff] %vm3514, %v3527
        $region84: #{net_forward.1} parent=51 // pred_fallthru
          _
        %s3529 = sand.u32 %s263, 1
        %s3530 = scalar_lea.sflag [#allocation6], %s3529
        %s3531 = sand.u32 %s263, 1
        %s3532 = smul.addr %s3531, 8
        %s3533 = scalar_lea.vmem [#allocation15], %s3532
        %s3534 = sand.u32 %s38, 1
        %s3535 = scalar_lea.sflag [#allocation17], %s3534
        %s3536 = sand.u32 %s291, 1
        %s3537 = smul.addr %s3536, 8
        %s3538 = scalar_lea.vmem [#allocation16], %s3537
        // Predicated region
        $region85: #{net_forward.1} parent=51 // pred_check
          %p3539 = pneg %p273
        $region86: #{net_forward.1} parent=51 // pred_check_branch
          %3541 = sbr.rel (%p3539) target = $region88
        $region87: #{net_forward.1} parent=51 // pred_region
          %s3543 = ssub.s32 128, 128
          %3544 = vsyncadd %s3530, %s3543
          %s3545 = smul.addr %s42, 2
          %s3546 = sadd.s32 %s43, %s3545
          %s3547 = smul.addr %s3546, 128
          %s3548 = scalar_lea.hbm %s8, %s3547
          %s3550 = sshll.u32 %s3533, 4
          %s3551 = int_to_ptr.vmem [resolvable:$true] %s3550
          %3553 = dma.vmem_to_hbm [thread:$0]  %s3551, 128, %s3548, %s3530
        $region88: #{net_forward.1} parent=51 // pred_fallthru
          _
        // Predicated region
        $region89: #{net_forward.1} parent=51 // pred_check
          %p3554 = pneg %p301
        $region90: #{net_forward.1} parent=51 // pred_check_branch
          %3556 = sbr.rel (%p3554) target = $region92
        $region91: #{net_forward.1} parent=51 // pred_region
          %s3558 = ssub.s32 128, 128
          %3559 = vsyncadd %s3535, %s3558
          %s3560 = smul.addr %s42, 2
          %s3561 = sadd.s32 %s43, %s3560
          %s3562 = smul.addr %s3561, 128
          %s3563 = scalar_lea.hbm %s9, %s3562
          %s3565 = sshll.u32 %s3538, 4
          %s3566 = int_to_ptr.vmem [resolvable:$true] %s3565
          %3568 = dma.vmem_to_hbm [thread:$0]  %s3566, 128, %s3563, %s3535
        $region92: #{net_forward.1} parent=51 // pred_fallthru
          _
        // Predicated region
        $region93: #{net_forward.1} parent=51 // pred_check
          %p3569 = pneg %p322
        $region94: #{net_forward.1} parent=51 // pred_check_branch
          %3571 = sbr.rel (%p3569) target = $region96
        $region95: #{net_forward.1} parent=51 // pred_region
          %s3573 = ssub.s32 128, 128
          %3574 = vsyncadd [#allocation17], %s3573
          %s3576 = sshll.u32 [#allocation18], 4
          %s3577 = int_to_ptr.vmem [resolvable:$true] %s3576
          %3579 = dma.vmem_to_hbm [thread:$0]  %s3577, 128, %s10, [#allocation17]
        $region96: #{net_forward.1} parent=51 // pred_fallthru
          _
        // Predicated region
        $region97: #{net_forward.1} parent=51 // pred_check
          %p3580 = pneg %p322
        $region98: #{net_forward.1} parent=51 // pred_check_branch
          %3582 = sbr.rel (%p3580) target = $region100
        $region99: #{net_forward.1} parent=51 // pred_region
          %3583 = dma.done [#allocation17], 128
        $region100: #{net_forward.1} parent=51 // pred_fallthru
          _
      $region52: #{net_forward.1} parent=5 // pred_fallthru
        _
      %p3584 = scmp.le.s32.totalorder 2, %s33
      // Predicated region
      $region101: #{net_forward.1} parent=5 // pred_check
        %p3585 = pneg %p3584
      $region102: #{net_forward.1} parent=5 // pred_check_branch
        %3587 = sbr.rel (%p3585) target = $region104
      $region103: #{net_forward.1} parent=5 // pred_region
        %s3588 = ssub.s32 %s33, 2
        // Predicated region
        $region105: #{net_forward.1} parent=103 // pred_check
          %p3589 = pneg %p279
        $region106: #{net_forward.1} parent=103 // pred_check_branch
          %3591 = sbr.rel (%p3589) target = $region108
        $region107: #{net_forward.1} parent=103 // pred_region
          %s3592 = sand.u32 %s264, 1
          %s3593 = scalar_lea.sflag [#allocation6], %s3592
          %s3594 = sand.u32 %s264, 1
          %s3595 = smul.addr %s3594, 8
          %s3596 = scalar_lea.vmem [#allocation15], %s3595
          %3597 = dma.done %s3593, 128
        $region108: #{net_forward.1} parent=103 // pred_fallthru
          _
        // Predicated region
        $region109: #{net_forward.1} parent=103 // pred_check
          %p3598 = pneg %p307
        $region110: #{net_forward.1} parent=103 // pred_check_branch
          %3600 = sbr.rel (%p3598) target = $region112
        $region111: #{net_forward.1} parent=103 // pred_region
          %s3601 = sand.u32 %s39, 1
          %s3602 = scalar_lea.sflag [#allocation17], %s3601
          %s3603 = sand.u32 %s292, 1
          %s3604 = smul.addr %s3603, 8
          %s3605 = scalar_lea.vmem [#allocation16], %s3604
          %3606 = dma.done %s3602, 128
        $region112: #{net_forward.1} parent=103 // pred_fallthru
          _
      $region104: #{net_forward.1} parent=5 // pred_fallthru
        _
    $region6: #{net_forward.1} parent=1 // loop_footer
      %s37 = sadd.s32 1, %s33
    $region7: #{net_forward.1} parent=1 // loop_footer_branch
      %32 = sbr.rel target = $region3
    $region8: #{net_forward.1} parent=1 // loop_exit
      _
    %3607 = vsyncpa [#allocation5], 1
    %s3608 = scalar_lea.sflag [#allocation5], 1
    %3609 = vsyncpa %s3608, 1
    %3610 = vsyncpa [#allocation8], 1
    %s3611 = scalar_lea.sflag [#allocation8], 1
    %3612 = vsyncpa %s3611, 1
    %3613 = vsyncpa [#allocation11], 1
    %s3614 = scalar_lea.sflag [#allocation11], 1
    %3615 = vsyncpa %s3614, 1
    %3616 = vsyncpa [#allocation14], 1
    %3617 = vsyncpa [#allocation6], 1
    %s3618 = scalar_lea.sflag [#allocation6], 1
    %3619 = vsyncpa %s3618, 1
    %3620 = vsyncpa [#allocation17], 1
    %s3621 = scalar_lea.sflag [#allocation17], 1
    %3622 = vsyncpa %s3621, 1

</llo_original>
